<compile_context>
chip_gen: v6e
topology: v6e:2x2x1
jax: 0.10.0
libtpu: 0.0.40
codegen_flags: <defaults>
</compile_context>

<pallas_src>
import math

import jax
import jax.numpy as jnp
import numpy as np
from jax import lax
from jax.experimental import pallas as pl
from jax.experimental.pallas import tpu as pltpu

BN_EPS = 1e-5  # PyTorch BatchNorm1d default

_CONV_CFG = [  # (in, out, k, stride, pad)  -> ConvBlock: Conv1d + BN + ReLU
    (128, 64, 7, 2, 1),
    (64, 32, 7, 2, 1),
    (32, 16, 7, 1, 1),
    (16, 8, 5, 1, 1),
]
_OUT_CFG = [  # plain Conv1d layers
    (8, 4, 7, 1, 1),
    (4, 2, 5, 1, 1),
    (2, 1, 2, 1, 0),
]


def _round8(n):
    return max(8, ((n + 7) // 8) * 8)


# ------------------------------- fused kernel -------------------------------

def _make_fused_kernel(meta):
    """meta: tuple of (K, B*L_out, relu) per layer — all static Python ints."""

    def kernel(*refs):
        x_ref, o_ref = refs[0], refs[-1]
        layer_refs = refs[1:-1]
        x = x_ref[...]                                     # (C0, B*L0), lane-dense
        for i, (K, BL, relu) in enumerate(meta):
            s_ref, w_ref, sc_ref, sh_ref = layer_refs[4 * i: 4 * i + 4]
            # One gather matmul builds all K taps (stride + zero padding are
            # encoded in the 0/1 unfold matrix) -> (C_in_pad, K*B*L_out).
            taps = jnp.dot(x, s_ref[...], preferred_element_type=jnp.float32)
            # Stack taps along sublanes -> (C_in_pad*K, B*L_out)  (8-aligned).
            patches = jnp.concatenate(
                [taps[:, t * BL:(t + 1) * BL] for t in range(K)], axis=0)
            # Single conv matmul with full C_in*K contraction depth.
            y = jnp.dot(w_ref[...], patches, preferred_element_type=jnp.float32)
            # Fused bias + eval-mode BatchNorm epilogue.
            y = y * sc_ref[...] + sh_ref[...]
            if relu:
                y = jnp.maximum(y, 0.0)
            x = y
        o_ref[...] = x                                     # (C_final_pad, B*L_final)

    return kernel


def build_forward(params, B, L_in):
    """Pack parameters (unfold matrices, reshaped weights, folded scale/shift)
    and return a jitted forward: x(B, 128, L_in) -> (B, 1, L_final)."""
    layers = params["conv"] + params["out_conv"]
    meta, args = [], []
    L = L_in
    cin_pad = layers[0]["w"].shape[1]          # 128, already a multiple of 8

    for layer in layers:
        w = np.asarray(layer["w"], np.float32)
        cout, cin, k = w.shape
        s, p = layer["stride"], layer["padding"]
        L_out = (L + 2 * p - k) // s + 1
        cout_pad = _round8(cout)

        # 0/1 unfold matrix: column (t, b, l) selects x[b, :, l*s + t - p]
        # (out-of-range positions stay an all-zero column == conv zero padding).
        S = np.zeros((B * L, k * B * L_out), np.float32)
        for t in range(k):
            for b in range(B):
                for l in range(L_out):
                    j = l * s + t - p
                    if 0 <= j < L:
                        S[b * L + j, (t * B + b) * L_out + l] = 1.0

        # Weight packed for the single big matmul; contraction idx = t*cin_pad + ci.
        W2d = np.zeros((cout_pad, k * cin_pad), np.float32)
        for t in range(k):
            W2d[:cout, t * cin_pad: t * cin_pad + cin] = w[:, :, t]

        # Fold conv bias + eval-mode BatchNorm into (scale, shift); padded rows = 0.
        bias = np.asarray(layer["b"], np.float32)
        scale = np.zeros((cout_pad, 1), np.float32)
        shift = np.zeros((cout_pad, 1), np.float32)
        if layer["bn"] is not None:
            gamma, beta, mean, var = (np.asarray(v, np.float32) for v in layer["bn"])
            sc = gamma / np.sqrt(var + BN_EPS)
            scale[:cout, 0] = sc
            shift[:cout, 0] = beta + (bias - mean) * sc
        else:
            scale[:cout, 0] = 1.0
            shift[:cout, 0] = bias

        args += [jnp.asarray(S), jnp.asarray(W2d), jnp.asarray(scale), jnp.asarray(shift)]
        meta.append((k, B * L_out, layer["bn"] is not None))
        L = L_out
        cin_pad = cout_pad

    L_final, c_final_pad = L, cin_pad
    C0 = layers[0]["w"].shape[1]
    vspec = pl.BlockSpec(memory_space=pltpu.MemorySpace.VMEM)   # whole array in VMEM

    fused = pl.pallas_call(
        _make_fused_kernel(tuple(meta)),
        out_shape=jax.ShapeDtypeStruct((c_final_pad, B * L_final), jnp.float32),
        in_specs=[vspec] * (1 + len(args)),
        out_specs=vspec,
    )

    @jax.jit
    def forward(x):
        # Layout plumbing only: fold batch into the lane axis -> (C, B*L).
        x0 = jnp.transpose(x.astype(jnp.float32), (1, 0, 2)).reshape(C0, B * L_in)
        y = fused(x0, *args)
        # Channel 0 of the (channel-padded) last layer is the real output channel.
        return y[0].reshape(B, L_final)[:, None, :]

    return forward


def cnn_lstm_decoder_forward(x, params):
    """Convenience wrapper: Pallas implementation of CNNLSTMDecoder.forward."""
    B, _, L = x.shape
    return build_forward(params, B, L)(x)


# ------------------------- parameter construction -------------------------

def init_params(key):
    params = {"conv": [], "out_conv": []}
    for (cin, cout, k, s, p) in _CONV_CFG:
        key, k1, k2, k3, k4, k5, k6 = jax.random.split(key, 7)
        bound = 1.0 / math.sqrt(cin * k)
        layer = dict(
            w=jax.random.uniform(k1, (cout, cin, k), jnp.float32, -bound, bound),
            b=jax.random.uniform(k2, (cout,), jnp.float32, -bound, bound),
            bn=(
                1.0 + 0.1 * jax.random.normal(k3, (cout,), jnp.float32),   # gamma
                0.1 * jax.random.normal(k4, (cout,), jnp.float32),         # beta
                0.1 * jax.random.normal(k5, (cout,), jnp.float32),         # running_mean
                1.0 + 0.2 * jax.random.uniform(k6, (cout,), jnp.float32),  # running_var
            ),
            stride=s,
            padding=p,
        )
        params["conv"].append(layer)
    for (cin, cout, k, s, p) in _OUT_CFG:
        key, k1, k2 = jax.random.split(key, 3)
        bound = 1.0 / math.sqrt(cin * k)
        layer = dict(
            w=jax.random.uniform(k1, (cout, cin, k), jnp.float32, -bound, bound),
            b=jax.random.uniform(k2, (cout,), jnp.float32, -bound, bound),
            bn=None,
            stride=s,
            padding=p,
        )
        params["out_conv"].append(layer)
    return params


# ---------------------------- pure-JAX reference ----------------------------

def ref_forward(x, params):
    def conv(x, w, b, s, p):
        y = lax.conv_general_dilated(
            x, w, (s,), [(p, p)], dimension_numbers=("NCH", "OIH", "NCH")
        )
        return y + b[None, :, None]

    for layer in params["conv"]:
        x = conv(x, layer["w"], layer["b"], layer["stride"], layer["padding"])
        gamma, beta, mean, var = layer["bn"]
        x = (x - mean[None, :, None]) / jnp.sqrt(var[None, :, None] + BN_EPS)
        x = x * gamma[None, :, None] + beta[None, :, None]
        x = jnp.maximum(x, 0.0)
    for layer in params["out_conv"]:
        x = conv(x, layer["w"], layer["b"], layer["stride"], layer["padding"])
    return x


if __name__ == "__main__":
    key = jax.random.PRNGKey(0)
    kx, kp = jax.random.split(key)

    B, C, L = 2, 128, 96  # input matches Conv1d(128, ...) first layer
    x = jax.random.normal(kx, (B, C, L), jnp.float32)
    params = init_params(kp)

    forward = build_forward(params, B, L)
    y = jax.block_until_ready(forward(x))

    y_ref = ref_forward(x, params)
    np.testing.assert_allclose(np.asarray(y), np.asarray(y_ref), rtol=1e-4, atol=1e-4)
    assert y.shape == (B, 1, 8), y.shape

    print("KERNEL_OK")
</pallas_src>

<mosaic_0001>
module attributes {stable_mosaic.version = 11 : i64} {
  func.func @kernel(%arg0: memref<128x192xf32, #tpu.memory_space<vmem>>, %arg1: memref<192x644xf32, #tpu.memory_space<vmem>>, %arg2: memref<64x896xf32, #tpu.memory_space<vmem>>, %arg3: memref<64x1xf32, #tpu.memory_space<vmem>>, %arg4: memref<64x1xf32, #tpu.memory_space<vmem>>, %arg5: memref<92x294xf32, #tpu.memory_space<vmem>>, %arg6: memref<32x448xf32, #tpu.memory_space<vmem>>, %arg7: memref<32x1xf32, #tpu.memory_space<vmem>>, %arg8: memref<32x1xf32, #tpu.memory_space<vmem>>, %arg9: memref<42x238xf32, #tpu.memory_space<vmem>>, %arg10: memref<16x224xf32, #tpu.memory_space<vmem>>, %arg11: memref<16x1xf32, #tpu.memory_space<vmem>>, %arg12: memref<16x1xf32, #tpu.memory_space<vmem>>, %arg13: memref<34x150xf32, #tpu.memory_space<vmem>>, %arg14: memref<8x80xf32, #tpu.memory_space<vmem>>, %arg15: memref<8x1xf32, #tpu.memory_space<vmem>>, %arg16: memref<8x1xf32, #tpu.memory_space<vmem>>, %arg17: memref<30x154xf32, #tpu.memory_space<vmem>>, %arg18: memref<8x56xf32, #tpu.memory_space<vmem>>, %arg19: memref<8x1xf32, #tpu.memory_space<vmem>>, %arg20: memref<8x1xf32, #tpu.memory_space<vmem>>, %arg21: memref<22x90xf32, #tpu.memory_space<vmem>>, %arg22: memref<8x40xf32, #tpu.memory_space<vmem>>, %arg23: memref<8x1xf32, #tpu.memory_space<vmem>>, %arg24: memref<8x1xf32, #tpu.memory_space<vmem>>, %arg25: memref<18x32xf32, #tpu.memory_space<vmem>>, %arg26: memref<8x16xf32, #tpu.memory_space<vmem>>, %arg27: memref<8x1xf32, #tpu.memory_space<vmem>>, %arg28: memref<8x1xf32, #tpu.memory_space<vmem>>, %arg29: memref<8x16xf32, #tpu.memory_space<vmem>>) attributes {dimension_semantics = [], scalar_prefetch = 0 : i64, scratch_operands = 0 : i64, tpu.core_type = #tpu.core_type<tc>} {
    %c0 = arith.constant 0 : index
    %c0_0 = arith.constant 0 : index
    %0 = vector.load %arg0[%c0, %c0_0] : memref<128x192xf32, #tpu.memory_space<vmem>>, vector<128x192xf32>
    %c0_1 = arith.constant 0 : index
    %c0_2 = arith.constant 0 : index
    %1 = vector.load %arg1[%c0_1, %c0_2] : memref<192x644xf32, #tpu.memory_space<vmem>>, vector<192x644xf32>
    %cst = arith.constant dense<0.000000e+00> : vector<128x644xf32>
    %2 = tpu.matmul %0, %1, %cst {dimension_numbers = #tpu.dot_dimension_numbers<[1], [0], [0], [1], [0, 0, 1, 1], [], []>} : vector<128x192xf32>, vector<192x644xf32>, vector<128x644xf32> -> vector<128x644xf32>
    %3 = vector.extract_strided_slice %2 {offsets = [0, 0], sizes = [128, 92], strides = [1, 1]} : vector<128x644xf32> to vector<128x92xf32>
    %4 = vector.extract_strided_slice %2 {offsets = [0, 92], sizes = [128, 92], strides = [1, 1]} : vector<128x644xf32> to vector<128x92xf32>
    %5 = vector.extract_strided_slice %2 {offsets = [0, 184], sizes = [128, 92], strides = [1, 1]} : vector<128x644xf32> to vector<128x92xf32>
    %6 = vector.extract_strided_slice %2 {offsets = [0, 276], sizes = [128, 92], strides = [1, 1]} : vector<128x644xf32> to vector<128x92xf32>
    %7 = vector.extract_strided_slice %2 {offsets = [0, 368], sizes = [128, 92], strides = [1, 1]} : vector<128x644xf32> to vector<128x92xf32>
    %8 = vector.extract_strided_slice %2 {offsets = [0, 460], sizes = [128, 92], strides = [1, 1]} : vector<128x644xf32> to vector<128x92xf32>
    %9 = vector.extract_strided_slice %2 {offsets = [0, 552], sizes = [128, 92], strides = [1, 1]} : vector<128x644xf32> to vector<128x92xf32>
    %10 = tpu.concatenate %3, %4, %5, %6, %7, %8, %9 in 0 : vector<128x92xf32>, vector<128x92xf32>, vector<128x92xf32>, vector<128x92xf32>, vector<128x92xf32>, vector<128x92xf32>, vector<128x92xf32> -> vector<896x92xf32>
    %c0_3 = arith.constant 0 : index
    %c0_4 = arith.constant 0 : index
    %11 = vector.load %arg2[%c0_3, %c0_4] : memref<64x896xf32, #tpu.memory_space<vmem>>, vector<64x896xf32>
    %cst_5 = arith.constant dense<0.000000e+00> : vector<64x92xf32>
    %12 = tpu.matmul %11, %10, %cst_5 {dimension_numbers = #tpu.dot_dimension_numbers<[1], [0], [0], [1], [0, 0, 1, 1], [], []>} : vector<64x896xf32>, vector<896x92xf32>, vector<64x92xf32> -> vector<64x92xf32>
    %c0_6 = arith.constant 0 : index
    %c0_7 = arith.constant 0 : index
    %13 = vector.load %arg3[%c0_6, %c0_7] : memref<64x1xf32, #tpu.memory_space<vmem>>, vector<64x1xf32>
    %14 = vector.broadcast %13 : vector<64x1xf32> to vector<64x92xf32>
    %15 = arith.mulf %12, %14 : vector<64x92xf32>
    %c0_8 = arith.constant 0 : index
    %c0_9 = arith.constant 0 : index
    %16 = vector.load %arg4[%c0_8, %c0_9] : memref<64x1xf32, #tpu.memory_space<vmem>>, vector<64x1xf32>
    %17 = vector.broadcast %16 : vector<64x1xf32> to vector<64x92xf32>
    %18 = arith.addf %15, %17 : vector<64x92xf32>
    %cst_10 = arith.constant 0.000000e+00 : f32
    %19 = vector.broadcast %cst_10 : f32 to vector<64x92xf32>
    %20 = arith.maximumf %18, %19 : vector<64x92xf32>
    %c0_11 = arith.constant 0 : index
    %c0_12 = arith.constant 0 : index
    %21 = vector.load %arg5[%c0_11, %c0_12] : memref<92x294xf32, #tpu.memory_space<vmem>>, vector<92x294xf32>
    %cst_13 = arith.constant dense<0.000000e+00> : vector<64x294xf32>
    %22 = tpu.matmul %20, %21, %cst_13 {dimension_numbers = #tpu.dot_dimension_numbers<[1], [0], [0], [1], [0, 0, 1, 1], [], []>} : vector<64x92xf32>, vector<92x294xf32>, vector<64x294xf32> -> vector<64x294xf32>
    %23 = vector.extract_strided_slice %22 {offsets = [0, 0], sizes = [64, 42], strides = [1, 1]} : vector<64x294xf32> to vector<64x42xf32>
    %24 = vector.extract_strided_slice %22 {offsets = [0, 42], sizes = [64, 42], strides = [1, 1]} : vector<64x294xf32> to vector<64x42xf32>
    %25 = vector.extract_strided_slice %22 {offsets = [0, 84], sizes = [64, 42], strides = [1, 1]} : vector<64x294xf32> to vector<64x42xf32>
    %26 = vector.extract_strided_slice %22 {offsets = [0, 126], sizes = [64, 42], strides = [1, 1]} : vector<64x294xf32> to vector<64x42xf32>
    %27 = vector.extract_strided_slice %22 {offsets = [0, 168], sizes = [64, 42], strides = [1, 1]} : vector<64x294xf32> to vector<64x42xf32>
    %28 = vector.extract_strided_slice %22 {offsets = [0, 210], sizes = [64, 42], strides = [1, 1]} : vector<64x294xf32> to vector<64x42xf32>
    %29 = vector.extract_strided_slice %22 {offsets = [0, 252], sizes = [64, 42], strides = [1, 1]} : vector<64x294xf32> to vector<64x42xf32>
    %30 = tpu.concatenate %23, %24, %25, %26, %27, %28, %29 in 0 : vector<64x42xf32>, vector<64x42xf32>, vector<64x42xf32>, vector<64x42xf32>, vector<64x42xf32>, vector<64x42xf32>, vector<64x42xf32> -> vector<448x42xf32>
    %c0_14 = arith.constant 0 : index
    %c0_15 = arith.constant 0 : index
    %31 = vector.load %arg6[%c0_14, %c0_15] : memref<32x448xf32, #tpu.memory_space<vmem>>, vector<32x448xf32>
    %cst_16 = arith.constant dense<0.000000e+00> : vector<32x42xf32>
    %32 = tpu.matmul %31, %30, %cst_16 {dimension_numbers = #tpu.dot_dimension_numbers<[1], [0], [0], [1], [0, 0, 1, 1], [], []>} : vector<32x448xf32>, vector<448x42xf32>, vector<32x42xf32> -> vector<32x42xf32>
    %c0_17 = arith.constant 0 : index
    %c0_18 = arith.constant 0 : index
    %33 = vector.load %arg7[%c0_17, %c0_18] : memref<32x1xf32, #tpu.memory_space<vmem>>, vector<32x1xf32>
    %34 = vector.broadcast %33 : vector<32x1xf32> to vector<32x42xf32>
    %35 = arith.mulf %32, %34 : vector<32x42xf32>
    %c0_19 = arith.constant 0 : index
    %c0_20 = arith.constant 0 : index
    %36 = vector.load %arg8[%c0_19, %c0_20] : memref<32x1xf32, #tpu.memory_space<vmem>>, vector<32x1xf32>
    %37 = vector.broadcast %36 : vector<32x1xf32> to vector<32x42xf32>
    %38 = arith.addf %35, %37 : vector<32x42xf32>
    %cst_21 = arith.constant 0.000000e+00 : f32
    %39 = vector.broadcast %cst_21 : f32 to vector<32x42xf32>
    %40 = arith.maximumf %38, %39 : vector<32x42xf32>
    %c0_22 = arith.constant 0 : index
    %c0_23 = arith.constant 0 : index
    %41 = vector.load %arg9[%c0_22, %c0_23] : memref<42x238xf32, #tpu.memory_space<vmem>>, vector<42x238xf32>
    %cst_24 = arith.constant dense<0.000000e+00> : vector<32x238xf32>
    %42 = tpu.matmul %40, %41, %cst_24 {dimension_numbers = #tpu.dot_dimension_numbers<[1], [0], [0], [1], [0, 0, 1, 1], [], []>} : vector<32x42xf32>, vector<42x238xf32>, vector<32x238xf32> -> vector<32x238xf32>
    %43 = vector.extract_strided_slice %42 {offsets = [0, 0], sizes = [32, 34], strides = [1, 1]} : vector<32x238xf32> to vector<32x34xf32>
    %44 = vector.extract_strided_slice %42 {offsets = [0, 34], sizes = [32, 34], strides = [1, 1]} : vector<32x238xf32> to vector<32x34xf32>
    %45 = vector.extract_strided_slice %42 {offsets = [0, 68], sizes = [32, 34], strides = [1, 1]} : vector<32x238xf32> to vector<32x34xf32>
    %46 = vector.extract_strided_slice %42 {offsets = [0, 102], sizes = [32, 34], strides = [1, 1]} : vector<32x238xf32> to vector<32x34xf32>
    %47 = vector.extract_strided_slice %42 {offsets = [0, 136], sizes = [32, 34], strides = [1, 1]} : vector<32x238xf32> to vector<32x34xf32>
    %48 = vector.extract_strided_slice %42 {offsets = [0, 170], sizes = [32, 34], strides = [1, 1]} : vector<32x238xf32> to vector<32x34xf32>
    %49 = vector.extract_strided_slice %42 {offsets = [0, 204], sizes = [32, 34], strides = [1, 1]} : vector<32x238xf32> to vector<32x34xf32>
    %50 = tpu.concatenate %43, %44, %45, %46, %47, %48, %49 in 0 : vector<32x34xf32>, vector<32x34xf32>, vector<32x34xf32>, vector<32x34xf32>, vector<32x34xf32>, vector<32x34xf32>, vector<32x34xf32> -> vector<224x34xf32>
    %c0_25 = arith.constant 0 : index
    %c0_26 = arith.constant 0 : index
    %51 = vector.load %arg10[%c0_25, %c0_26] : memref<16x224xf32, #tpu.memory_space<vmem>>, vector<16x224xf32>
    %cst_27 = arith.constant dense<0.000000e+00> : vector<16x34xf32>
    %52 = tpu.matmul %51, %50, %cst_27 {dimension_numbers = #tpu.dot_dimension_numbers<[1], [0], [0], [1], [0, 0, 1, 1], [], []>} : vector<16x224xf32>, vector<224x34xf32>, vector<16x34xf32> -> vector<16x34xf32>
    %c0_28 = arith.constant 0 : index
    %c0_29 = arith.constant 0 : index
    %53 = vector.load %arg11[%c0_28, %c0_29] : memref<16x1xf32, #tpu.memory_space<vmem>>, vector<16x1xf32>
    %54 = vector.broadcast %53 : vector<16x1xf32> to vector<16x34xf32>
    %55 = arith.mulf %52, %54 : vector<16x34xf32>
    %c0_30 = arith.constant 0 : index
    %c0_31 = arith.constant 0 : index
    %56 = vector.load %arg12[%c0_30, %c0_31] : memref<16x1xf32, #tpu.memory_space<vmem>>, vector<16x1xf32>
    %57 = vector.broadcast %56 : vector<16x1xf32> to vector<16x34xf32>
    %58 = arith.addf %55, %57 : vector<16x34xf32>
    %cst_32 = arith.constant 0.000000e+00 : f32
    %59 = vector.broadcast %cst_32 : f32 to vector<16x34xf32>
    %60 = arith.maximumf %58, %59 : vector<16x34xf32>
    %c0_33 = arith.constant 0 : index
    %c0_34 = arith.constant 0 : index
    %61 = vector.load %arg13[%c0_33, %c0_34] : memref<34x150xf32, #tpu.memory_space<vmem>>, vector<34x150xf32>
    %cst_35 = arith.constant dense<0.000000e+00> : vector<16x150xf32>
    %62 = tpu.matmul %60, %61, %cst_35 {dimension_numbers = #tpu.dot_dimension_numbers<[1], [0], [0], [1], [0, 0, 1, 1], [], []>} : vector<16x34xf32>, vector<34x150xf32>, vector<16x150xf32> -> vector<16x150xf32>
    %63 = vector.extract_strided_slice %62 {offsets = [0, 0], sizes = [16, 30], strides = [1, 1]} : vector<16x150xf32> to vector<16x30xf32>
    %64 = vector.extract_strided_slice %62 {offsets = [0, 30], sizes = [16, 30], strides = [1, 1]} : vector<16x150xf32> to vector<16x30xf32>
    %65 = vector.extract_strided_slice %62 {offsets = [0, 60], sizes = [16, 30], strides = [1, 1]} : vector<16x150xf32> to vector<16x30xf32>
    %66 = vector.extract_strided_slice %62 {offsets = [0, 90], sizes = [16, 30], strides = [1, 1]} : vector<16x150xf32> to vector<16x30xf32>
    %67 = vector.extract_strided_slice %62 {offsets = [0, 120], sizes = [16, 30], strides = [1, 1]} : vector<16x150xf32> to vector<16x30xf32>
    %68 = tpu.concatenate %63, %64, %65, %66, %67 in 0 : vector<16x30xf32>, vector<16x30xf32>, vector<16x30xf32>, vector<16x30xf32>, vector<16x30xf32> -> vector<80x30xf32>
    %c0_36 = arith.constant 0 : index
    %c0_37 = arith.constant 0 : index
    %69 = vector.load %arg14[%c0_36, %c0_37] : memref<8x80xf32, #tpu.memory_space<vmem>>, vector<8x80xf32>
    %cst_38 = arith.constant dense<0.000000e+00> : vector<8x30xf32>
    %70 = tpu.matmul %69, %68, %cst_38 {dimension_numbers = #tpu.dot_dimension_numbers<[1], [0], [0], [1], [0, 0, 1, 1], [], []>} : vector<8x80xf32>, vector<80x30xf32>, vector<8x30xf32> -> vector<8x30xf32>
    %c0_39 = arith.constant 0 : index
    %c0_40 = arith.constant 0 : index
    %71 = vector.load %arg15[%c0_39, %c0_40] : memref<8x1xf32, #tpu.memory_space<vmem>>, vector<8x1xf32>
    %72 = vector.broadcast %71 : vector<8x1xf32> to vector<8x30xf32>
    %73 = arith.mulf %70, %72 : vector<8x30xf32>
    %c0_41 = arith.constant 0 : index
    %c0_42 = arith.constant 0 : index
    %74 = vector.load %arg16[%c0_41, %c0_42] : memref<8x1xf32, #tpu.memory_space<vmem>>, vector<8x1xf32>
    %75 = vector.broadcast %74 : vector<8x1xf32> to vector<8x30xf32>
    %76 = arith.addf %73, %75 : vector<8x30xf32>
    %cst_43 = arith.constant 0.000000e+00 : f32
    %77 = vector.broadcast %cst_43 : f32 to vector<8x30xf32>
    %78 = arith.maximumf %76, %77 : vector<8x30xf32>
    %c0_44 = arith.constant 0 : index
    %c0_45 = arith.constant 0 : index
    %79 = vector.load %arg17[%c0_44, %c0_45] : memref<30x154xf32, #tpu.memory_space<vmem>>, vector<30x154xf32>
    %cst_46 = arith.constant dense<0.000000e+00> : vector<8x154xf32>
    %80 = tpu.matmul %78, %79, %cst_46 {dimension_numbers = #tpu.dot_dimension_numbers<[1], [0], [0], [1], [0, 0, 1, 1], [], []>} : vector<8x30xf32>, vector<30x154xf32>, vector<8x154xf32> -> vector<8x154xf32>
    %81 = vector.extract_strided_slice %80 {offsets = [0, 0], sizes = [8, 22], strides = [1, 1]} : vector<8x154xf32> to vector<8x22xf32>
    %82 = vector.extract_strided_slice %80 {offsets = [0, 22], sizes = [8, 22], strides = [1, 1]} : vector<8x154xf32> to vector<8x22xf32>
    %83 = vector.extract_strided_slice %80 {offsets = [0, 44], sizes = [8, 22], strides = [1, 1]} : vector<8x154xf32> to vector<8x22xf32>
    %84 = vector.extract_strided_slice %80 {offsets = [0, 66], sizes = [8, 22], strides = [1, 1]} : vector<8x154xf32> to vector<8x22xf32>
    %85 = vector.extract_strided_slice %80 {offsets = [0, 88], sizes = [8, 22], strides = [1, 1]} : vector<8x154xf32> to vector<8x22xf32>
    %86 = vector.extract_strided_slice %80 {offsets = [0, 110], sizes = [8, 22], strides = [1, 1]} : vector<8x154xf32> to vector<8x22xf32>
    %87 = vector.extract_strided_slice %80 {offsets = [0, 132], sizes = [8, 22], strides = [1, 1]} : vector<8x154xf32> to vector<8x22xf32>
    %88 = tpu.concatenate %81, %82, %83, %84, %85, %86, %87 in 0 : vector<8x22xf32>, vector<8x22xf32>, vector<8x22xf32>, vector<8x22xf32>, vector<8x22xf32>, vector<8x22xf32>, vector<8x22xf32> -> vector<56x22xf32>
    %c0_47 = arith.constant 0 : index
    %c0_48 = arith.constant 0 : index
    %89 = vector.load %arg18[%c0_47, %c0_48] : memref<8x56xf32, #tpu.memory_space<vmem>>, vector<8x56xf32>
    %cst_49 = arith.constant dense<0.000000e+00> : vector<8x22xf32>
    %90 = tpu.matmul %89, %88, %cst_49 {dimension_numbers = #tpu.dot_dimension_numbers<[1], [0], [0], [1], [0, 0, 1, 1], [], []>} : vector<8x56xf32>, vector<56x22xf32>, vector<8x22xf32> -> vector<8x22xf32>
    %c0_50 = arith.constant 0 : index
    %c0_51 = arith.constant 0 : index
    %91 = vector.load %arg19[%c0_50, %c0_51] : memref<8x1xf32, #tpu.memory_space<vmem>>, vector<8x1xf32>
    %92 = vector.broadcast %91 : vector<8x1xf32> to vector<8x22xf32>
    %93 = arith.mulf %90, %92 : vector<8x22xf32>
    %c0_52 = arith.constant 0 : index
    %c0_53 = arith.constant 0 : index
    %94 = vector.load %arg20[%c0_52, %c0_53] : memref<8x1xf32, #tpu.memory_space<vmem>>, vector<8x1xf32>
    %95 = vector.broadcast %94 : vector<8x1xf32> to vector<8x22xf32>
    %96 = arith.addf %93, %95 : vector<8x22xf32>
    %c0_54 = arith.constant 0 : index
    %c0_55 = arith.constant 0 : index
    %97 = vector.load %arg21[%c0_54, %c0_55] : memref<22x90xf32, #tpu.memory_space<vmem>>, vector<22x90xf32>
    %cst_56 = arith.constant dense<0.000000e+00> : vector<8x90xf32>
    %98 = tpu.matmul %96, %97, %cst_56 {dimension_numbers = #tpu.dot_dimension_numbers<[1], [0], [0], [1], [0, 0, 1, 1], [], []>} : vector<8x22xf32>, vector<22x90xf32>, vector<8x90xf32> -> vector<8x90xf32>
    %99 = vector.extract_strided_slice %98 {offsets = [0, 0], sizes = [8, 18], strides = [1, 1]} : vector<8x90xf32> to vector<8x18xf32>
    %100 = vector.extract_strided_slice %98 {offsets = [0, 18], sizes = [8, 18], strides = [1, 1]} : vector<8x90xf32> to vector<8x18xf32>
    %101 = vector.extract_strided_slice %98 {offsets = [0, 36], sizes = [8, 18], strides = [1, 1]} : vector<8x90xf32> to vector<8x18xf32>
    %102 = vector.extract_strided_slice %98 {offsets = [0, 54], sizes = [8, 18], strides = [1, 1]} : vector<8x90xf32> to vector<8x18xf32>
    %103 = vector.extract_strided_slice %98 {offsets = [0, 72], sizes = [8, 18], strides = [1, 1]} : vector<8x90xf32> to vector<8x18xf32>
    %104 = tpu.concatenate %99, %100, %101, %102, %103 in 0 : vector<8x18xf32>, vector<8x18xf32>, vector<8x18xf32>, vector<8x18xf32>, vector<8x18xf32> -> vector<40x18xf32>
    %c0_57 = arith.constant 0 : index
    %c0_58 = arith.constant 0 : index
    %105 = vector.load %arg22[%c0_57, %c0_58] : memref<8x40xf32, #tpu.memory_space<vmem>>, vector<8x40xf32>
    %cst_59 = arith.constant dense<0.000000e+00> : vector<8x18xf32>
    %106 = tpu.matmul %105, %104, %cst_59 {dimension_numbers = #tpu.dot_dimension_numbers<[1], [0], [0], [1], [0, 0, 1, 1], [], []>} : vector<8x40xf32>, vector<40x18xf32>, vector<8x18xf32> -> vector<8x18xf32>
    %c0_60 = arith.constant 0 : index
    %c0_61 = arith.constant 0 : index
    %107 = vector.load %arg23[%c0_60, %c0_61] : memref<8x1xf32, #tpu.memory_space<vmem>>, vector<8x1xf32>
    %108 = vector.broadcast %107 : vector<8x1xf32> to vector<8x18xf32>
    %109 = arith.mulf %106, %108 : vector<8x18xf32>
    %c0_62 = arith.constant 0 : index
    %c0_63 = arith.constant 0 : index
    %110 = vector.load %arg24[%c0_62, %c0_63] : memref<8x1xf32, #tpu.memory_space<vmem>>, vector<8x1xf32>
    %111 = vector.broadcast %110 : vector<8x1xf32> to vector<8x18xf32>
    %112 = arith.addf %109, %111 : vector<8x18xf32>
    %c0_64 = arith.constant 0 : index
    %c0_65 = arith.constant 0 : index
    %113 = vector.load %arg25[%c0_64, %c0_65] : memref<18x32xf32, #tpu.memory_space<vmem>>, vector<18x32xf32>
    %cst_66 = arith.constant dense<0.000000e+00> : vector<8x32xf32>
    %114 = tpu.matmul %112, %113, %cst_66 {dimension_numbers = #tpu.dot_dimension_numbers<[1], [0], [0], [1], [0, 0, 1, 1], [], []>} : vector<8x18xf32>, vector<18x32xf32>, vector<8x32xf32> -> vector<8x32xf32>
    %115 = vector.extract_strided_slice %114 {offsets = [0, 0], sizes = [8, 16], strides = [1, 1]} : vector<8x32xf32> to vector<8x16xf32>
    %116 = vector.extract_strided_slice %114 {offsets = [0, 16], sizes = [8, 16], strides = [1, 1]} : vector<8x32xf32> to vector<8x16xf32>
    %117 = tpu.concatenate %115, %116 in 0 : vector<8x16xf32>, vector<8x16xf32> -> vector<16x16xf32>
    %c0_67 = arith.constant 0 : index
    %c0_68 = arith.constant 0 : index
    %118 = vector.load %arg26[%c0_67, %c0_68] : memref<8x16xf32, #tpu.memory_space<vmem>>, vector<8x16xf32>
    %cst_69 = arith.constant dense<0.000000e+00> : vector<8x16xf32>
    %119 = tpu.matmul %118, %117, %cst_69 {dimension_numbers = #tpu.dot_dimension_numbers<[1], [0], [0], [1], [0, 0, 1, 1], [], []>} : vector<8x16xf32>, vector<16x16xf32>, vector<8x16xf32> -> vector<8x16xf32>
    %c0_70 = arith.constant 0 : index
    %c0_71 = arith.constant 0 : index
    %120 = vector.load %arg27[%c0_70, %c0_71] : memref<8x1xf32, #tpu.memory_space<vmem>>, vector<8x1xf32>
    %121 = vector.broadcast %120 : vector<8x1xf32> to vector<8x16xf32>
    %122 = arith.mulf %119, %121 : vector<8x16xf32>
    %c0_72 = arith.constant 0 : index
    %c0_73 = arith.constant 0 : index
    %123 = vector.load %arg28[%c0_72, %c0_73] : memref<8x1xf32, #tpu.memory_space<vmem>>, vector<8x1xf32>
    %124 = vector.broadcast %123 : vector<8x1xf32> to vector<8x16xf32>
    %125 = arith.addf %122, %124 : vector<8x16xf32>
    %c0_74 = arith.constant 0 : index
    %c0_75 = arith.constant 0 : index
    %126 = vector.load %arg29[%c0_74, %c0_75] : memref<8x16xf32, #tpu.memory_space<vmem>>, vector<8x16xf32>
    tpu.vector_store %arg29[%c0_74, %c0_75], %125 {strides = array<i32>} : memref<8x16xf32, #tpu.memory_space<vmem>>, vector<8x16xf32>,
    return
  }
}

</mosaic_0001>

<llo_original>
// kernel: squeeze.1
$region0: #{squeeze.1}
  %s0 = inlined_call_operand.vmem [shape: f32[16], index: 0, kind: input, shape index: {}]
  %s1 = inlined_call_operand.hbm [shape: f32[2,1,8], index: 1, kind: output, shape index: {}]
  $region1: #{squeeze.1} parent=0
    #allocation0 [shape = 'u8[1024]{0}', space=vmem, size = 0x400, scoped, tag = 'operand span for operand 1']
    #allocation1 [shape = 's32[1]{0}', space=sflag, size = 0x4, scoped, tag = 'scoped memory for squeeze.1']
    #allocation2 [shape = 'u8[4096]{0}', space=vmem, size = 0x1000, scoped, tag = 'scoped mem for output reshape']
    #allocation3 [shape = 'u8[4096]{0}', space=vmem, size = 0x1000, scoped, tag = 'scoped mem for input reshape']
    %2 = vsyncpa [#allocation1], 0
    %s4 = sshll.u32 1, 1
    %s5 = ssub.s32 %s4, 1
    %v6 = vld [vmem:[%s0] sm:%s5]
    %7 = vst [vmem:[#allocation3] sm:%s5] %v6
    %v8 = vld [vmem:[#allocation3] sm:$0x1]
    %vm9 = vcmask 64512
    %10 = vst.msk [vmem:[#allocation2] sm:$0x1] %vm9, %v8
    %v11 = vld [vmem:[#allocation3] sm:$0x1]
    %12 = vrot.lane.b32.xlu0 %v11, 120
    %v13 = vpop.permute.xlu0 %12
    %vm14 = vcmask 64512
    %s15 = scalar_lea.vmem [#allocation2], 1
    %16 = vst.msk [vmem:[%s15] sm:$0x1] %vm14, %v13
    %s18 = sshll.u32 1, 2
    %s19 = ssub.s32 %s18, 1
    %v21 = vld [vmem:[#allocation2] sm:%s19]
    %s22 = sshll.u32 1, 2
    %s23 = ssub.s32 %s22, 1
    %24 = vst [vmem:[#allocation0] sm:%s23] %v21
    %s26 = ssub.s32 32, 32
    %27 = vsyncadd [#allocation1], %s26
    %s29 = sshll.u32 [#allocation0], 4
    %s30 = int_to_ptr.vmem [resolvable:$true] %s29
    %32 = dma.vmem_to_hbm [thread:$0]  %s30, 32, %s1, [#allocation1]
    %33 = dma.done [#allocation1], 32
    %34 = vsyncpa [#allocation1], 1

// kernel: forward.1
$region0: #{forward.1}
  #allocation0 [shape = 'u32[]', space=smem, size = 0x4, offset = 0x4, fixed_abs, tag = 'smem constant byte address 0x4 - core index']
  #allocation1 [shape = 'u32[144,128]{1,0:T(1,128)}', space=vmem, size = 0x12000, scoped, tag = 'internal scratch']
  %s0 = inlined_call_operand.smem [shape: u32[30], index: -1, kind: input, shape index: {}]
  %s1 = sld [smem:[%s0]]
  %s2 = scalar_lea.smem %s0, 1
  %s3 = sld [smem:[%s2]]
  %s4 = scalar_lea.smem %s0, 2
  %s5 = sld [smem:[%s4]]
  %s6 = scalar_lea.smem %s0, 3
  %s7 = sld [smem:[%s6]]
  %s8 = scalar_lea.smem %s0, 4
  %s9 = sld [smem:[%s8]]
  %s10 = scalar_lea.smem %s0, 5
  %s11 = sld [smem:[%s10]]
  %s12 = scalar_lea.smem %s0, 6
  %s13 = sld [smem:[%s12]]
  %s14 = scalar_lea.smem %s0, 7
  %s15 = sld [smem:[%s14]]
  %s16 = scalar_lea.smem %s0, 8
  %s17 = sld [smem:[%s16]]
  %s18 = scalar_lea.smem %s0, 9
  %s19 = sld [smem:[%s18]]
  %s20 = scalar_lea.smem %s0, 10
  %s21 = sld [smem:[%s20]]
  %s22 = scalar_lea.smem %s0, 11
  %s23 = sld [smem:[%s22]]
  %s24 = scalar_lea.smem %s0, 12
  %s25 = sld [smem:[%s24]]
  %s26 = scalar_lea.smem %s0, 13
  %s27 = sld [smem:[%s26]]
  %s28 = scalar_lea.smem %s0, 14
  %s29 = sld [smem:[%s28]]
  %s30 = scalar_lea.smem %s0, 15
  %s31 = sld [smem:[%s30]]
  %s32 = scalar_lea.smem %s0, 16
  %s33 = sld [smem:[%s32]]
  %s34 = scalar_lea.smem %s0, 17
  %s35 = sld [smem:[%s34]]
  %s36 = scalar_lea.smem %s0, 18
  %s37 = sld [smem:[%s36]]
  %s38 = scalar_lea.smem %s0, 19
  %s39 = sld [smem:[%s38]]
  %s40 = scalar_lea.smem %s0, 20
  %s41 = sld [smem:[%s40]]
  %s42 = scalar_lea.smem %s0, 21
  %s43 = sld [smem:[%s42]]
  %s44 = scalar_lea.smem %s0, 22
  %s45 = sld [smem:[%s44]]
  %s46 = scalar_lea.smem %s0, 23
  %s47 = sld [smem:[%s46]]
  %s48 = scalar_lea.smem %s0, 24
  %s49 = sld [smem:[%s48]]
  %s50 = scalar_lea.smem %s0, 25
  %s51 = sld [smem:[%s50]]
  %s52 = scalar_lea.smem %s0, 26
  %s53 = sld [smem:[%s52]]
  %s54 = scalar_lea.smem %s0, 27
  %s55 = sld [smem:[%s54]]
  %s56 = scalar_lea.smem %s0, 28
  %s57 = sld [smem:[%s56]]
  %s58 = scalar_lea.smem %s0, 29
  %s59 = sld [smem:[%s58]]
  %s60 = sld [smem:[#allocation0]]
  $region218: #{forward.1} parent=0
    _
  %s62 = ssub.s32 1, %s60
  %s63 = scalar_select 0, %s62, %s60
  $region1: #{forward.1} parent=0
    #allocation2 [shape = 'u8[589824]{0}', space=vmem, size = 0x90000, scoped, tag = 'input window, operand 1, single buffered']
    #allocation3 [shape = 's32[1]{0}', space=sflag, size = 0x4, scoped, tag = 'scoped memory for forward.1']
    #allocation4 [shape = 'u8[32768]{0}', space=vmem, size = 0x8000, scoped, tag = 'input window, operand 3, single buffered']
    #allocation5 [shape = 's32[1]{0}', space=sflag, size = 0x4, scoped, tag = 'scoped memory for forward.1']
    #allocation6 [shape = 'u8[32768]{0}', space=vmem, size = 0x8000, scoped, tag = 'input window, operand 4, single buffered']
    #allocation7 [shape = 'u8[147456]{0}', space=vmem, size = 0x24000, scoped, tag = 'input window, operand 5, single buffered']
    #allocation8 [shape = 's32[1]{0}', space=sflag, size = 0x4, scoped, tag = 'scoped memory for forward.1']
    #allocation9 [shape = 'u8[65536]{0}', space=vmem, size = 0x10000, scoped, tag = 'input window, operand 6, single buffered']
    #allocation10 [shape = 'u8[16384]{0}', space=vmem, size = 0x4000, scoped, tag = 'input window, operand 7, single buffered']
    #allocation11 [shape = 's32[1]{0}', space=sflag, size = 0x4, scoped, tag = 'scoped memory for forward.1']
    #allocation12 [shape = 'u8[16384]{0}', space=vmem, size = 0x4000, scoped, tag = 'input window, operand 8, single buffered']
    #allocation13 [shape = 'u8[49152]{0}', space=vmem, size = 0xc000, scoped, tag = 'input window, operand 9, single buffered']
    #allocation14 [shape = 's32[1]{0}', space=sflag, size = 0x4, scoped, tag = 'scoped memory for forward.1']
    #allocation15 [shape = 'u8[16384]{0}', space=vmem, size = 0x4000, scoped, tag = 'input window, operand 10, single buffered']
    #allocation16 [shape = 'u8[8192]{0}', space=vmem, size = 0x2000, scoped, tag = 'input window, operand 11, single buffered']
    #allocation17 [shape = 's32[1]{0}', space=sflag, size = 0x4, scoped, tag = 'scoped memory for forward.1']
    #allocation18 [shape = 'u8[8192]{0}', space=vmem, size = 0x2000, scoped, tag = 'input window, operand 12, single buffered']
    #allocation19 [shape = 'u8[40960]{0}', space=vmem, size = 0xa000, scoped, tag = 'input window, operand 13, single buffered']
    #allocation20 [shape = 's32[1]{0}', space=sflag, size = 0x4, scoped, tag = 'scoped memory for forward.1']
    #allocation21 [shape = 'u8[4096]{0}', space=vmem, size = 0x1000, scoped, tag = 'input window, operand 14, single buffered']
    #allocation22 [shape = 'u8[4096]{0}', space=vmem, size = 0x1000, scoped, tag = 'input window, operand 15, single buffered']
    #allocation23 [shape = 's32[1]{0}', space=sflag, size = 0x4, scoped, tag = 'scoped memory for forward.1']
    #allocation24 [shape = 'u8[4096]{0}', space=vmem, size = 0x1000, scoped, tag = 'input window, operand 16, single buffered']
    #allocation25 [shape = 'u8[32768]{0}', space=vmem, size = 0x8000, scoped, tag = 'input window, operand 17, single buffered']
    #allocation26 [shape = 's32[1]{0}', space=sflag, size = 0x4, scoped, tag = 'scoped memory for forward.1']
    #allocation27 [shape = 'u8[4096]{0}', space=vmem, size = 0x1000, scoped, tag = 'input window, operand 18, single buffered']
    #allocation28 [shape = 'u8[4096]{0}', space=vmem, size = 0x1000, scoped, tag = 'input window, operand 19, single buffered']
    #allocation29 [shape = 's32[1]{0}', space=sflag, size = 0x4, scoped, tag = 'scoped memory for forward.1']
    #allocation30 [shape = 'u8[4096]{0}', space=vmem, size = 0x1000, scoped, tag = 'input window, operand 20, single buffered']
    #allocation31 [shape = 'u8[12288]{0}', space=vmem, size = 0x3000, scoped, tag = 'input window, operand 21, single buffered']
    #allocation32 [shape = 's32[1]{0}', space=sflag, size = 0x4, scoped, tag = 'scoped memory for forward.1']
    #allocation33 [shape = 'u8[4096]{0}', space=vmem, size = 0x1000, scoped, tag = 'input window, operand 22, single buffered']
    #allocation34 [shape = 'u8[4096]{0}', space=vmem, size = 0x1000, scoped, tag = 'input window, operand 23, single buffered']
    #allocation35 [shape = 's32[1]{0}', space=sflag, size = 0x4, scoped, tag = 'scoped memory for forward.1']
    #allocation36 [shape = 'u8[4096]{0}', space=vmem, size = 0x1000, scoped, tag = 'input window, operand 24, single buffered']
    %64 = vsyncpa [#allocation3], 0
    %65 = vsyncpa [#allocation5], 0
    %66 = vsyncpa [#allocation8], 0
    %67 = vsyncpa [#allocation11], 0
    %68 = vsyncpa [#allocation14], 0
    %69 = vsyncpa [#allocation17], 0
    %70 = vsyncpa [#allocation20], 0
    %71 = vsyncpa [#allocation23], 0
    %72 = vsyncpa [#allocation26], 0
    %73 = vsyncpa [#allocation29], 0
    %74 = vsyncpa [#allocation32], 0
    %75 = vsyncpa [#allocation35], 0
    // Predicated region
    $region2: #{forward.1} parent=1 // pred_check
      _
    $region3: #{forward.1} parent=1 // pred_check_branch
      %77 = sbr.rel (0) target = $region5
    $region4: #{forward.1} parent=1 // pred_region
      _
    $region5: #{forward.1} parent=1 // pred_fallthru
      _
    // Predicated region
    $region6: #{forward.1} parent=1 // pred_check
      _
    $region7: #{forward.1} parent=1 // pred_check_branch
      %79 = sbr.rel (0) target = $region9
    $region8: #{forward.1} parent=1 // pred_region
      %s81 = ssub.s32 18432, 18432
      %82 = vsyncadd [#allocation3], %s81
      %s83 = sshll.u32 [#allocation2], 4
      %s84 = int_to_ptr.vmem [resolvable:$true] %s83
      %89 = dma.hbm_to_vmem [thread:$0]  %s3, 18432, %s84, [#allocation3], 768, 768, 48
    $region9: #{forward.1} parent=1 // pred_fallthru
      _
    // Predicated region
    $region10: #{forward.1} parent=1 // pred_check
      _
    $region11: #{forward.1} parent=1 // pred_check_branch
      %91 = sbr.rel (0) target = $region13
    $region12: #{forward.1} parent=1 // pred_region
      _
    $region13: #{forward.1} parent=1 // pred_fallthru
      _
    // Predicated region
    $region14: #{forward.1} parent=1 // pred_check
      _
    $region15: #{forward.1} parent=1 // pred_check_branch
      %93 = sbr.rel (0) target = $region17
    $region16: #{forward.1} parent=1 // pred_region
      %s95 = ssub.s32 1024, 1024
      %96 = vsyncadd [#allocation5], %s95
      %s97 = sshll.u32 [#allocation4], 4
      %s98 = int_to_ptr.vmem [resolvable:$true] %s97
      %103 = dma.hbm_to_vmem [thread:$0]  %s7, 1024, %s98, [#allocation5], 128, 128, 8
    $region17: #{forward.1} parent=1 // pred_fallthru
      _
    // Predicated region
    $region18: #{forward.1} parent=1 // pred_check
      _
    $region19: #{forward.1} parent=1 // pred_check_branch
      %105 = sbr.rel (0) target = $region21
    $region20: #{forward.1} parent=1 // pred_region
      %s107 = ssub.s32 1024, 1024
      %108 = vsyncadd [#allocation5], %s107
      %s109 = sshll.u32 [#allocation6], 4
      %s110 = int_to_ptr.vmem [resolvable:$true] %s109
      %115 = dma.hbm_to_vmem [thread:$0]  %s9, 1024, %s110, [#allocation5], 128, 128, 8
    $region21: #{forward.1} parent=1 // pred_fallthru
      _
    // Predicated region
    $region22: #{forward.1} parent=1 // pred_check
      _
    $region23: #{forward.1} parent=1 // pred_check_branch
      %117 = sbr.rel (0) target = $region25
    $region24: #{forward.1} parent=1 // pred_region
      %s119 = ssub.s32 4608, 4608
      %120 = vsyncadd [#allocation8], %s119
      %s121 = sshll.u32 [#allocation7], 4
      %s122 = int_to_ptr.vmem [resolvable:$true] %s121
      %127 = dma.hbm_to_vmem [thread:$0]  %s11, 4608, %s122, [#allocation8], 384, 384, 24
    $region25: #{forward.1} parent=1 // pred_fallthru
      _
    // Predicated region
    $region26: #{forward.1} parent=1 // pred_check
      _
    $region27: #{forward.1} parent=1 // pred_check_branch
      %129 = sbr.rel (0) target = $region29
    $region28: #{forward.1} parent=1 // pred_region
      %s131 = ssub.s32 2048, 2048
      %132 = vsyncadd [#allocation8], %s131
      %s133 = sshll.u32 [#allocation9], 4
      %s134 = int_to_ptr.vmem [resolvable:$true] %s133
      %139 = dma.hbm_to_vmem [thread:$0]  %s13, 2048, %s134, [#allocation8], 512, 512, 32
    $region29: #{forward.1} parent=1 // pred_fallthru
      _
    // Predicated region
    $region30: #{forward.1} parent=1 // pred_check
      _
    $region31: #{forward.1} parent=1 // pred_check_branch
      %141 = sbr.rel (0) target = $region33
    $region32: #{forward.1} parent=1 // pred_region
      %s143 = ssub.s32 512, 512
      %144 = vsyncadd [#allocation11], %s143
      %s145 = sshll.u32 [#allocation10], 4
      %s146 = int_to_ptr.vmem [resolvable:$true] %s145
      %151 = dma.hbm_to_vmem [thread:$0]  %s15, 512, %s146, [#allocation11], 128, 128, 8
    $region33: #{forward.1} parent=1 // pred_fallthru
      _
    // Predicated region
    $region34: #{forward.1} parent=1 // pred_check
      _
    $region35: #{forward.1} parent=1 // pred_check_branch
      %153 = sbr.rel (0) target = $region37
    $region36: #{forward.1} parent=1 // pred_region
      %s155 = ssub.s32 512, 512
      %156 = vsyncadd [#allocation11], %s155
      %s157 = sshll.u32 [#allocation12], 4
      %s158 = int_to_ptr.vmem [resolvable:$true] %s157
      %163 = dma.hbm_to_vmem [thread:$0]  %s17, 512, %s158, [#allocation11], 128, 128, 8
    $region37: #{forward.1} parent=1 // pred_fallthru
      _
    // Predicated region
    $region38: #{forward.1} parent=1 // pred_check
      _
    $region39: #{forward.1} parent=1 // pred_check_branch
      %165 = sbr.rel (0) target = $region41
    $region40: #{forward.1} parent=1 // pred_region
      %s167 = ssub.s32 1536, 1536
      %168 = vsyncadd [#allocation14], %s167
      %s169 = sshll.u32 [#allocation13], 4
      %s170 = int_to_ptr.vmem [resolvable:$true] %s169
      %175 = dma.hbm_to_vmem [thread:$0]  %s19, 1536, %s170, [#allocation14], 256, 256, 16
    $region41: #{forward.1} parent=1 // pred_fallthru
      _
    // Predicated region
    $region42: #{forward.1} parent=1 // pred_check
      _
    $region43: #{forward.1} parent=1 // pred_check_branch
      %177 = sbr.rel (0) target = $region45
    $region44: #{forward.1} parent=1 // pred_region
      %s179 = ssub.s32 512, 512
      %180 = vsyncadd [#allocation14], %s179
      %s181 = sshll.u32 [#allocation15], 4
      %s182 = int_to_ptr.vmem [resolvable:$true] %s181
      %187 = dma.hbm_to_vmem [thread:$0]  %s21, 512, %s182, [#allocation14], 256, 256, 16
    $region45: #{forward.1} parent=1 // pred_fallthru
      _
    // Predicated region
    $region46: #{forward.1} parent=1 // pred_check
      _
    $region47: #{forward.1} parent=1 // pred_check_branch
      %189 = sbr.rel (0) target = $region49
    $region48: #{forward.1} parent=1 // pred_region
      %s191 = ssub.s32 256, 256
      %192 = vsyncadd [#allocation17], %s191
      %s193 = sshll.u32 [#allocation16], 4
      %s194 = int_to_ptr.vmem [resolvable:$true] %s193
      %199 = dma.hbm_to_vmem [thread:$0]  %s23, 256, %s194, [#allocation17], 128, 128, 8
    $region49: #{forward.1} parent=1 // pred_fallthru
      _
    // Predicated region
    $region50: #{forward.1} parent=1 // pred_check
      _
    $region51: #{forward.1} parent=1 // pred_check_branch
      %201 = sbr.rel (0) target = $region53
    $region52: #{forward.1} parent=1 // pred_region
      %s203 = ssub.s32 256, 256
      %204 = vsyncadd [#allocation17], %s203
      %s205 = sshll.u32 [#allocation18], 4
      %s206 = int_to_ptr.vmem [resolvable:$true] %s205
      %211 = dma.hbm_to_vmem [thread:$0]  %s25, 256, %s206, [#allocation17], 128, 128, 8
    $region53: #{forward.1} parent=1 // pred_fallthru
      _
    // Predicated region
    $region54: #{forward.1} parent=1 // pred_check
      _
    $region55: #{forward.1} parent=1 // pred_check_branch
      %213 = sbr.rel (0) target = $region57
    $region56: #{forward.1} parent=1 // pred_region
      %s215 = ssub.s32 1280, 1280
      %216 = vsyncadd [#allocation20], %s215
      %s217 = sshll.u32 [#allocation19], 4
      %s218 = int_to_ptr.vmem [resolvable:$true] %s217
      %223 = dma.hbm_to_vmem [thread:$0]  %s27, 1280, %s218, [#allocation20], 256, 256, 16
    $region57: #{forward.1} parent=1 // pred_fallthru
      _
    // Predicated region
    $region58: #{forward.1} parent=1 // pred_check
      _
    $region59: #{forward.1} parent=1 // pred_check_branch
      %225 = sbr.rel (0) target = $region61
    $region60: #{forward.1} parent=1 // pred_region
      %s227 = ssub.s32 128, 128
      %228 = vsyncadd [#allocation20], %s227
      %s230 = sshll.u32 [#allocation21], 4
      %s231 = int_to_ptr.vmem [resolvable:$true] %s230
      %233 = dma.hbm_to_vmem [thread:$0]  %s29, 128, %s231, [#allocation20]
    $region61: #{forward.1} parent=1 // pred_fallthru
      _
    // Predicated region
    $region62: #{forward.1} parent=1 // pred_check
      _
    $region63: #{forward.1} parent=1 // pred_check_branch
      %235 = sbr.rel (0) target = $region65
    $region64: #{forward.1} parent=1 // pred_region
      %s237 = ssub.s32 128, 128
      %238 = vsyncadd [#allocation23], %s237
      %s240 = sshll.u32 [#allocation22], 4
      %s241 = int_to_ptr.vmem [resolvable:$true] %s240
      %243 = dma.hbm_to_vmem [thread:$0]  %s31, 128, %s241, [#allocation23]
    $region65: #{forward.1} parent=1 // pred_fallthru
      _
    // Predicated region
    $region66: #{forward.1} parent=1 // pred_check
      _
    $region67: #{forward.1} parent=1 // pred_check_branch
      %245 = sbr.rel (0) target = $region69
    $region68: #{forward.1} parent=1 // pred_region
      %s247 = ssub.s32 128, 128
      %248 = vsyncadd [#allocation23], %s247
      %s250 = sshll.u32 [#allocation24], 4
      %s251 = int_to_ptr.vmem [resolvable:$true] %s250
      %253 = dma.hbm_to_vmem [thread:$0]  %s33, 128, %s251, [#allocation23]
    $region69: #{forward.1} parent=1 // pred_fallthru
      _
    // Predicated region
    $region70: #{forward.1} parent=1 // pred_check
      _
    $region71: #{forward.1} parent=1 // pred_check_branch
      %255 = sbr.rel (0) target = $region73
    $region72: #{forward.1} parent=1 // pred_region
      %s257 = ssub.s32 1024, 1024
      %258 = vsyncadd [#allocation26], %s257
      %s259 = sshll.u32 [#allocation25], 4
      %s260 = int_to_ptr.vmem [resolvable:$true] %s259
      %265 = dma.hbm_to_vmem [thread:$0]  %s35, 1024, %s260, [#allocation26], 256, 256, 16
    $region73: #{forward.1} parent=1 // pred_fallthru
      _
    // Predicated region
    $region74: #{forward.1} parent=1 // pred_check
      _
    $region75: #{forward.1} parent=1 // pred_check_branch
      %267 = sbr.rel (0) target = $region77
    $region76: #{forward.1} parent=1 // pred_region
      %s269 = ssub.s32 128, 128
      %270 = vsyncadd [#allocation26], %s269
      %s272 = sshll.u32 [#allocation27], 4
      %s273 = int_to_ptr.vmem [resolvable:$true] %s272
      %275 = dma.hbm_to_vmem [thread:$0]  %s37, 128, %s273, [#allocation26]
    $region77: #{forward.1} parent=1 // pred_fallthru
      _
    // Predicated region
    $region78: #{forward.1} parent=1 // pred_check
      _
    $region79: #{forward.1} parent=1 // pred_check_branch
      %277 = sbr.rel (0) target = $region81
    $region80: #{forward.1} parent=1 // pred_region
      %s279 = ssub.s32 128, 128
      %280 = vsyncadd [#allocation29], %s279
      %s282 = sshll.u32 [#allocation28], 4
      %s283 = int_to_ptr.vmem [resolvable:$true] %s282
      %285 = dma.hbm_to_vmem [thread:$0]  %s39, 128, %s283, [#allocation29]
    $region81: #{forward.1} parent=1 // pred_fallthru
      _
    // Predicated region
    $region82: #{forward.1} parent=1 // pred_check
      _
    $region83: #{forward.1} parent=1 // pred_check_branch
      %287 = sbr.rel (0) target = $region85
    $region84: #{forward.1} parent=1 // pred_region
      %s289 = ssub.s32 128, 128
      %290 = vsyncadd [#allocation29], %s289
      %s292 = sshll.u32 [#allocation30], 4
      %s293 = int_to_ptr.vmem [resolvable:$true] %s292
      %295 = dma.hbm_to_vmem [thread:$0]  %s41, 128, %s293, [#allocation29]
    $region85: #{forward.1} parent=1 // pred_fallthru
      _
    // Predicated region
    $region86: #{forward.1} parent=1 // pred_check
      _
    $region87: #{forward.1} parent=1 // pred_check_branch
      %297 = sbr.rel (0) target = $region89
    $region88: #{forward.1} parent=1 // pred_region
      %s299 = ssub.s32 384, 384
      %300 = vsyncadd [#allocation32], %s299
      %s301 = sshll.u32 [#allocation31], 4
      %s302 = int_to_ptr.vmem [resolvable:$true] %s301
      %307 = dma.hbm_to_vmem [thread:$0]  %s43, 384, %s302, [#allocation32], 128, 128, 8
    $region89: #{forward.1} parent=1 // pred_fallthru
      _
    // Predicated region
    $region90: #{forward.1} parent=1 // pred_check
      _
    $region91: #{forward.1} parent=1 // pred_check_branch
      %309 = sbr.rel (0) target = $region93
    $region92: #{forward.1} parent=1 // pred_region
      %s311 = ssub.s32 128, 128
      %312 = vsyncadd [#allocation32], %s311
      %s314 = sshll.u32 [#allocation33], 4
      %s315 = int_to_ptr.vmem [resolvable:$true] %s314
      %317 = dma.hbm_to_vmem [thread:$0]  %s45, 128, %s315, [#allocation32]
    $region93: #{forward.1} parent=1 // pred_fallthru
      _
    // Predicated region
    $region94: #{forward.1} parent=1 // pred_check
      _
    $region95: #{forward.1} parent=1 // pred_check_branch
      %319 = sbr.rel (0) target = $region97
    $region96: #{forward.1} parent=1 // pred_region
      %s321 = ssub.s32 128, 128
      %322 = vsyncadd [#allocation35], %s321
      %s324 = sshll.u32 [#allocation34], 4
      %s325 = int_to_ptr.vmem [resolvable:$true] %s324
      %327 = dma.hbm_to_vmem [thread:$0]  %s47, 128, %s325, [#allocation35]
    $region97: #{forward.1} parent=1 // pred_fallthru
      _
    // Predicated region
    $region98: #{forward.1} parent=1 // pred_check
      _
    $region99: #{forward.1} parent=1 // pred_check_branch
      %329 = sbr.rel (0) target = $region101
    $region100: #{forward.1} parent=1 // pred_region
      %s331 = ssub.s32 128, 128
      %332 = vsyncadd [#allocation35], %s331
      %s334 = sshll.u32 [#allocation36], 4
      %s335 = int_to_ptr.vmem [resolvable:$true] %s334
      %337 = dma.hbm_to_vmem [thread:$0]  %s49, 128, %s335, [#allocation35]
    $region101: #{forward.1} parent=1 // pred_fallthru
      _
    // Predicated region
    $region102: #{forward.1} parent=1 // pred_check
      _
    $region103: #{forward.1} parent=1 // pred_check_branch
      %339 = sbr.rel (0) target = $region105
    $region104: #{forward.1} parent=1 // pred_region
      _
    $region105: #{forward.1} parent=1 // pred_fallthru
      _
    // Predicated region
    $region106: #{forward.1} parent=1 // pred_check
      _
    $region107: #{forward.1} parent=1 // pred_check_branch
      %341 = sbr.rel (0) target = $region109
    $region108: #{forward.1} parent=1 // pred_region
      _
    $region109: #{forward.1} parent=1 // pred_fallthru
      _
    // Predicated region
    $region110: #{forward.1} parent=1 // pred_check
      _
    $region111: #{forward.1} parent=1 // pred_check_branch
      %343 = sbr.rel (0) target = $region113
    $region112: #{forward.1} parent=1 // pred_region
      _
    $region113: #{forward.1} parent=1 // pred_fallthru
      _
    // Predicated region
    $region114: #{forward.1} parent=1 // pred_check
      _
    $region115: #{forward.1} parent=1 // pred_check_branch
      %345 = sbr.rel (0) target = $region117
    $region116: #{forward.1} parent=1 // pred_region
      _
    $region117: #{forward.1} parent=1 // pred_fallthru
      _
    // Predicated region
    $region118: #{forward.1} parent=1 // pred_check
      _
    $region119: #{forward.1} parent=1 // pred_check_branch
      %347 = sbr.rel (0) target = $region121
    $region120: #{forward.1} parent=1 // pred_region
      %348 = dma.done [#allocation3], 18432
    $region121: #{forward.1} parent=1 // pred_fallthru
      _
    // Predicated region
    $region122: #{forward.1} parent=1 // pred_check
      _
    $region123: #{forward.1} parent=1 // pred_check_branch
      %350 = sbr.rel (0) target = $region125
    $region124: #{forward.1} parent=1 // pred_region
      %351 = dma.done [#allocation5], 1024
    $region125: #{forward.1} parent=1 // pred_fallthru
      _
    // Predicated region
    $region126: #{forward.1} parent=1 // pred_check
      _
    $region127: #{forward.1} parent=1 // pred_check_branch
      %353 = sbr.rel (0) target = $region129
    $region128: #{forward.1} parent=1 // pred_region
      %354 = dma.done [#allocation5], 1024
    $region129: #{forward.1} parent=1 // pred_fallthru
      _
    // Predicated region
    $region130: #{forward.1} parent=1 // pred_check
      _
    $region131: #{forward.1} parent=1 // pred_check_branch
      %356 = sbr.rel (0) target = $region133
    $region132: #{forward.1} parent=1 // pred_region
      %357 = dma.done [#allocation8], 4608
    $region133: #{forward.1} parent=1 // pred_fallthru
      _
    // Predicated region
    $region134: #{forward.1} parent=1 // pred_check
      _
    $region135: #{forward.1} parent=1 // pred_check_branch
      %359 = sbr.rel (0) target = $region137
    $region136: #{forward.1} parent=1 // pred_region
      %360 = dma.done [#allocation8], 2048
    $region137: #{forward.1} parent=1 // pred_fallthru
      _
    // Predicated region
    $region138: #{forward.1} parent=1 // pred_check
      _
    $region139: #{forward.1} parent=1 // pred_check_branch
      %362 = sbr.rel (0) target = $region141
    $region140: #{forward.1} parent=1 // pred_region
      %363 = dma.done [#allocation11], 512
    $region141: #{forward.1} parent=1 // pred_fallthru
      _
    // Predicated region
    $region142: #{forward.1} parent=1 // pred_check
      _
    $region143: #{forward.1} parent=1 // pred_check_branch
      %365 = sbr.rel (0) target = $region145
    $region144: #{forward.1} parent=1 // pred_region
      %366 = dma.done [#allocation11], 512
    $region145: #{forward.1} parent=1 // pred_fallthru
      _
    // Predicated region
    $region146: #{forward.1} parent=1 // pred_check
      _
    $region147: #{forward.1} parent=1 // pred_check_branch
      %368 = sbr.rel (0) target = $region149
    $region148: #{forward.1} parent=1 // pred_region
      %369 = dma.done [#allocation14], 1536
    $region149: #{forward.1} parent=1 // pred_fallthru
      _
    // Predicated region
    $region150: #{forward.1} parent=1 // pred_check
      _
    $region151: #{forward.1} parent=1 // pred_check_branch
      %371 = sbr.rel (0) target = $region153
    $region152: #{forward.1} parent=1 // pred_region
      %372 = dma.done [#allocation14], 512
    $region153: #{forward.1} parent=1 // pred_fallthru
      _
    // Predicated region
    $region154: #{forward.1} parent=1 // pred_check
      _
    $region155: #{forward.1} parent=1 // pred_check_branch
      %374 = sbr.rel (0) target = $region157
    $region156: #{forward.1} parent=1 // pred_region
      %375 = dma.done [#allocation17], 256
    $region157: #{forward.1} parent=1 // pred_fallthru
      _
    // Predicated region
    $region158: #{forward.1} parent=1 // pred_check
      _
    $region159: #{forward.1} parent=1 // pred_check_branch
      %377 = sbr.rel (0) target = $region161
    $region160: #{forward.1} parent=1 // pred_region
      %378 = dma.done [#allocation17], 256
    $region161: #{forward.1} parent=1 // pred_fallthru
      _
    // Predicated region
    $region162: #{forward.1} parent=1 // pred_check
      _
    $region163: #{forward.1} parent=1 // pred_check_branch
      %380 = sbr.rel (0) target = $region165
    $region164: #{forward.1} parent=1 // pred_region
      %381 = dma.done [#allocation20], 1280
    $region165: #{forward.1} parent=1 // pred_fallthru
      _
    // Predicated region
    $region166: #{forward.1} parent=1 // pred_check
      _
    $region167: #{forward.1} parent=1 // pred_check_branch
      %383 = sbr.rel (0) target = $region169
    $region168: #{forward.1} parent=1 // pred_region
      %384 = dma.done [#allocation20], 128
    $region169: #{forward.1} parent=1 // pred_fallthru
      _
    // Predicated region
    $region170: #{forward.1} parent=1 // pred_check
      _
    $region171: #{forward.1} parent=1 // pred_check_branch
      %386 = sbr.rel (0) target = $region173
    $region172: #{forward.1} parent=1 // pred_region
      %387 = dma.done [#allocation23], 128
    $region173: #{forward.1} parent=1 // pred_fallthru
      _
    // Predicated region
    $region174: #{forward.1} parent=1 // pred_check
      _
    $region175: #{forward.1} parent=1 // pred_check_branch
      %389 = sbr.rel (0) target = $region177
    $region176: #{forward.1} parent=1 // pred_region
      %390 = dma.done [#allocation23], 128
    $region177: #{forward.1} parent=1 // pred_fallthru
      _
    // Predicated region
    $region178: #{forward.1} parent=1 // pred_check
      _
    $region179: #{forward.1} parent=1 // pred_check_branch
      %392 = sbr.rel (0) target = $region181
    $region180: #{forward.1} parent=1 // pred_region
      %393 = dma.done [#allocation26], 1024
    $region181: #{forward.1} parent=1 // pred_fallthru
      _
    // Predicated region
    $region182: #{forward.1} parent=1 // pred_check
      _
    $region183: #{forward.1} parent=1 // pred_check_branch
      %395 = sbr.rel (0) target = $region185
    $region184: #{forward.1} parent=1 // pred_region
      %396 = dma.done [#allocation26], 128
    $region185: #{forward.1} parent=1 // pred_fallthru
      _
    // Predicated region
    $region186: #{forward.1} parent=1 // pred_check
      _
    $region187: #{forward.1} parent=1 // pred_check_branch
      %398 = sbr.rel (0) target = $region189
    $region188: #{forward.1} parent=1 // pred_region
      %399 = dma.done [#allocation29], 128
    $region189: #{forward.1} parent=1 // pred_fallthru
      _
    // Predicated region
    $region190: #{forward.1} parent=1 // pred_check
      _
    $region191: #{forward.1} parent=1 // pred_check_branch
      %401 = sbr.rel (0) target = $region193
    $region192: #{forward.1} parent=1 // pred_region
      %402 = dma.done [#allocation29], 128
    $region193: #{forward.1} parent=1 // pred_fallthru
      _
    // Predicated region
    $region194: #{forward.1} parent=1 // pred_check
      _
    $region195: #{forward.1} parent=1 // pred_check_branch
      %404 = sbr.rel (0) target = $region197
    $region196: #{forward.1} parent=1 // pred_region
      %405 = dma.done [#allocation32], 384
    $region197: #{forward.1} parent=1 // pred_fallthru
      _
    // Predicated region
    $region198: #{forward.1} parent=1 // pred_check
      _
    $region199: #{forward.1} parent=1 // pred_check_branch
      %407 = sbr.rel (0) target = $region201
    $region200: #{forward.1} parent=1 // pred_region
      %408 = dma.done [#allocation32], 128
    $region201: #{forward.1} parent=1 // pred_fallthru
      _
    // Predicated region
    $region202: #{forward.1} parent=1 // pred_check
      _
    $region203: #{forward.1} parent=1 // pred_check_branch
      %410 = sbr.rel (0) target = $region205
    $region204: #{forward.1} parent=1 // pred_region
      %411 = dma.done [#allocation35], 128
    $region205: #{forward.1} parent=1 // pred_fallthru
      _
    // Predicated region
    $region206: #{forward.1} parent=1 // pred_check
      _
    $region207: #{forward.1} parent=1 // pred_check_branch
      %413 = sbr.rel (0) target = $region209
    $region208: #{forward.1} parent=1 // pred_region
      %414 = dma.done [#allocation35], 128
    $region209: #{forward.1} parent=1 // pred_fallthru
      _
    %v415 = vld [vmem:[%s1] sm:$0xff]
    %v416 = vld [vmem:[%s1 + $0x8] sm:$0xff]
    %v417 = vld [vmem:[%s1 + $0x10] sm:$0xff]
    %v418 = vld [vmem:[%s1 + $0x18] sm:$0xff]
    %v419 = vld [vmem:[%s1 + $0x20] sm:$0xff]
    %v420 = vld [vmem:[%s1 + $0x28] sm:$0xff]
    %v421 = vld [vmem:[%s1 + $0x30] sm:$0xff]
    %v422 = vld [vmem:[%s1 + $0x38] sm:$0xff]
    %v423 = vld [vmem:[%s1 + $0x40] sm:$0xff]
    %v424 = vld [vmem:[%s1 + $0x48] sm:$0xff]
    %v425 = vld [vmem:[%s1 + $0x50] sm:$0xff]
    %v426 = vld [vmem:[%s1 + $0x58] sm:$0xff]
    %v427 = vld [vmem:[%s1 + $0x60] sm:$0xff]
    %v428 = vld [vmem:[%s1 + $0x68] sm:$0xff]
    %v429 = vld [vmem:[%s1 + $0x70] sm:$0xff]
    %v430 = vld [vmem:[%s1 + $0x78] sm:$0xff]
    %v431 = vld [vmem:[%s1 + $0x80] sm:$0xff]
    %v432 = vld [vmem:[%s1 + $0x88] sm:$0xff]
    %v433 = vld [vmem:[%s1 + $0x90] sm:$0xff]
    %v434 = vld [vmem:[%s1 + $0x98] sm:$0xff]
    %v435 = vld [vmem:[%s1 + $0xa0] sm:$0xff]
    %v436 = vld [vmem:[%s1 + $0xa8] sm:$0xff]
    %v437 = vld [vmem:[%s1 + $0xb0] sm:$0xff]
    %v438 = vld [vmem:[%s1 + $0xb8] sm:$0xff]
    %v439 = vld [vmem:[%s1 + $0xc0] sm:$0xff]
    %v440 = vld [vmem:[%s1 + $0xc8] sm:$0xff]
    %v441 = vld [vmem:[%s1 + $0xd0] sm:$0xff]
    %v442 = vld [vmem:[%s1 + $0xd8] sm:$0xff]
    %v443 = vld [vmem:[%s1 + $0xe0] sm:$0xff]
    %v444 = vld [vmem:[%s1 + $0xe8] sm:$0xff]
    %v445 = vld [vmem:[%s1 + $0xf0] sm:$0xff]
    %v446 = vld [vmem:[%s1 + $0xf8] sm:$0xff]
    %v447 = vld [vmem:[#allocation2] sm:$0xff]
    %v448 = vld [vmem:[#allocation2 + $0x8] sm:$0xff]
    %v449 = vld [vmem:[#allocation2 + $0x10] sm:$0xff]
    %v450 = vld [vmem:[#allocation2 + $0x18] sm:$0xff]
    %v451 = vld [vmem:[#allocation2 + $0x20] sm:$0xff]
    %v452 = vld [vmem:[#allocation2 + $0x28] sm:$0xff]
    %v453 = vld [vmem:[#allocation2 + $0x30] sm:$0xff]
    %v454 = vld [vmem:[#allocation2 + $0x38] sm:$0xff]
    %v455 = vld [vmem:[#allocation2 + $0x40] sm:$0xff]
    %v456 = vld [vmem:[#allocation2 + $0x48] sm:$0xff]
    %v457 = vld [vmem:[#allocation2 + $0x50] sm:$0xff]
    %v458 = vld [vmem:[#allocation2 + $0x58] sm:$0xff]
    %v459 = vld [vmem:[#allocation2 + $0x60] sm:$0xff]
    %v460 = vld [vmem:[#allocation2 + $0x68] sm:$0xff]
    %v461 = vld [vmem:[#allocation2 + $0x70] sm:$0xff]
    %v462 = vld [vmem:[#allocation2 + $0x78] sm:$0xff]
    %v463 = vld [vmem:[#allocation2 + $0x80] sm:$0xff]
    %v464 = vld [vmem:[#allocation2 + $0x88] sm:$0xff]
    %v465 = vld [vmem:[#allocation2 + $0x90] sm:$0xff]
    %v466 = vld [vmem:[#allocation2 + $0x98] sm:$0xff]
    %v467 = vld [vmem:[#allocation2 + $0xa0] sm:$0xff]
    %v468 = vld [vmem:[#allocation2 + $0xa8] sm:$0xff]
    %v469 = vld [vmem:[#allocation2 + $0xb0] sm:$0xff]
    %v470 = vld [vmem:[#allocation2 + $0xb8] sm:$0xff]
    %v471 = vld [vmem:[#allocation2 + $0xc0] sm:$0xff]
    %v472 = vld [vmem:[#allocation2 + $0xc8] sm:$0xff]
    %v473 = vld [vmem:[#allocation2 + $0xd0] sm:$0xff]
    %v474 = vld [vmem:[#allocation2 + $0xd8] sm:$0xff]
    %v475 = vld [vmem:[#allocation2 + $0xe0] sm:$0xff]
    %v476 = vld [vmem:[#allocation2 + $0xe8] sm:$0xff]
    %v477 = vld [vmem:[#allocation2 + $0xf0] sm:$0xff]
    %v478 = vld [vmem:[#allocation2 + $0xf8] sm:$0xff]
    %v479 = vld [vmem:[#allocation2 + $0x100] sm:$0xff]
    %v480 = vld [vmem:[#allocation2 + $0x108] sm:$0xff]
    %v481 = vld [vmem:[#allocation2 + $0x110] sm:$0xff]
    %v482 = vld [vmem:[#allocation2 + $0x118] sm:$0xff]
    %v483 = vld [vmem:[#allocation2 + $0x120] sm:$0xff]
    %v484 = vld [vmem:[#allocation2 + $0x128] sm:$0xff]
    %v485 = vld [vmem:[#allocation2 + $0x130] sm:$0xff]
    %v486 = vld [vmem:[#allocation2 + $0x138] sm:$0xff]
    %v487 = vld [vmem:[#allocation2 + $0x140] sm:$0xff]
    %v488 = vld [vmem:[#allocation2 + $0x148] sm:$0xff]
    %v489 = vld [vmem:[#allocation2 + $0x150] sm:$0xff]
    %v490 = vld [vmem:[#allocation2 + $0x158] sm:$0xff]
    %v491 = vld [vmem:[#allocation2 + $0x160] sm:$0xff]
    %v492 = vld [vmem:[#allocation2 + $0x168] sm:$0xff]
    %v493 = vld [vmem:[#allocation2 + $0x170] sm:$0xff]
    %v494 = vld [vmem:[#allocation2 + $0x178] sm:$0xff]
    %v495 = vld [vmem:[#allocation2 + $0x180] sm:$0xff]
    %v496 = vld [vmem:[#allocation2 + $0x188] sm:$0xff]
    %v497 = vld [vmem:[#allocation2 + $0x190] sm:$0xff]
    %v498 = vld [vmem:[#allocation2 + $0x198] sm:$0xff]
    %v499 = vld [vmem:[#allocation2 + $0x1a0] sm:$0xff]
    %v500 = vld [vmem:[#allocation2 + $0x1a8] sm:$0xff]
    %v501 = vld [vmem:[#allocation2 + $0x1b0] sm:$0xff]
    %v502 = vld [vmem:[#allocation2 + $0x1b8] sm:$0xff]
    %v503 = vld [vmem:[#allocation2 + $0x1c0] sm:$0xff]
    %v504 = vld [vmem:[#allocation2 + $0x1c8] sm:$0xff]
    %v505 = vld [vmem:[#allocation2 + $0x1d0] sm:$0xff]
    %v506 = vld [vmem:[#allocation2 + $0x1d8] sm:$0xff]
    %v507 = vld [vmem:[#allocation2 + $0x1e0] sm:$0xff]
    %v508 = vld [vmem:[#allocation2 + $0x1e8] sm:$0xff]
    %v509 = vld [vmem:[#allocation2 + $0x1f0] sm:$0xff]
    %v510 = vld [vmem:[#allocation2 + $0x1f8] sm:$0xff]
    %v511 = vld [vmem:[#allocation2 + $0x200] sm:$0xff]
    %v512 = vld [vmem:[#allocation2 + $0x208] sm:$0xff]
    %v513 = vld [vmem:[#allocation2 + $0x210] sm:$0xff]
    %v514 = vld [vmem:[#allocation2 + $0x218] sm:$0xff]
    %v515 = vld [vmem:[#allocation2 + $0x220] sm:$0xff]
    %v516 = vld [vmem:[#allocation2 + $0x228] sm:$0xff]
    %v517 = vld [vmem:[#allocation2 + $0x230] sm:$0xff]
    %v518 = vld [vmem:[#allocation2 + $0x238] sm:$0xff]
    %v519 = vld [vmem:[#allocation2 + $0x240] sm:$0xff]
    %v520 = vld [vmem:[#allocation2 + $0x248] sm:$0xff]
    %v521 = vld [vmem:[#allocation2 + $0x250] sm:$0xff]
    %v522 = vld [vmem:[#allocation2 + $0x258] sm:$0xff]
    %v523 = vld [vmem:[#allocation2 + $0x260] sm:$0xff]
    %v524 = vld [vmem:[#allocation2 + $0x268] sm:$0xff]
    %v525 = vld [vmem:[#allocation2 + $0x270] sm:$0xff]
    %v526 = vld [vmem:[#allocation2 + $0x278] sm:$0xff]
    %v527 = vld [vmem:[#allocation2 + $0x280] sm:$0xff]
    %v528 = vld [vmem:[#allocation2 + $0x288] sm:$0xff]
    %v529 = vld [vmem:[#allocation2 + $0x290] sm:$0xff]
    %v530 = vld [vmem:[#allocation2 + $0x298] sm:$0xff]
    %v531 = vld [vmem:[#allocation2 + $0x2a0] sm:$0xff]
    %v532 = vld [vmem:[#allocation2 + $0x2a8] sm:$0xff]
    %v533 = vld [vmem:[#allocation2 + $0x2b0] sm:$0xff]
    %v534 = vld [vmem:[#allocation2 + $0x2b8] sm:$0xff]
    %v535 = vld [vmem:[#allocation2 + $0x2c0] sm:$0xff]
    %v536 = vld [vmem:[#allocation2 + $0x2c8] sm:$0xff]
    %v537 = vld [vmem:[#allocation2 + $0x2d0] sm:$0xff]
    %v538 = vld [vmem:[#allocation2 + $0x2d8] sm:$0xff]
    %v539 = vld [vmem:[#allocation2 + $0x2e0] sm:$0xff]
    %v540 = vld [vmem:[#allocation2 + $0x2e8] sm:$0xff]
    %v541 = vld [vmem:[#allocation2 + $0x2f0] sm:$0xff]
    %v542 = vld [vmem:[#allocation2 + $0x2f8] sm:$0xff]
    %v543 = vld [vmem:[#allocation2 + $0x300] sm:$0xff]
    %v544 = vld [vmem:[#allocation2 + $0x308] sm:$0xff]
    %v545 = vld [vmem:[#allocation2 + $0x310] sm:$0xff]
    %v546 = vld [vmem:[#allocation2 + $0x318] sm:$0xff]
    %v547 = vld [vmem:[#allocation2 + $0x320] sm:$0xff]
    %v548 = vld [vmem:[#allocation2 + $0x328] sm:$0xff]
    %v549 = vld [vmem:[#allocation2 + $0x330] sm:$0xff]
    %v550 = vld [vmem:[#allocation2 + $0x338] sm:$0xff]
    %v551 = vld [vmem:[#allocation2 + $0x340] sm:$0xff]
    %v552 = vld [vmem:[#allocation2 + $0x348] sm:$0xff]
    %v553 = vld [vmem:[#allocation2 + $0x350] sm:$0xff]
    %v554 = vld [vmem:[#allocation2 + $0x358] sm:$0xff]
    %v555 = vld [vmem:[#allocation2 + $0x360] sm:$0xff]
    %v556 = vld [vmem:[#allocation2 + $0x368] sm:$0xff]
    %v557 = vld [vmem:[#allocation2 + $0x370] sm:$0xff]
    %v558 = vld [vmem:[#allocation2 + $0x378] sm:$0xff]
    %v559 = vld [vmem:[#allocation2 + $0x380] sm:$0xff]
    %v560 = vld [vmem:[#allocation2 + $0x388] sm:$0xff]
    %v561 = vld [vmem:[#allocation2 + $0x390] sm:$0xff]
    %v562 = vld [vmem:[#allocation2 + $0x398] sm:$0xff]
    %v563 = vld [vmem:[#allocation2 + $0x3a0] sm:$0xff]
    %v564 = vld [vmem:[#allocation2 + $0x3a8] sm:$0xff]
    %v565 = vld [vmem:[#allocation2 + $0x3b0] sm:$0xff]
    %v566 = vld [vmem:[#allocation2 + $0x3b8] sm:$0xff]
    %v567 = vld [vmem:[#allocation2 + $0x3c0] sm:$0xff]
    %v568 = vld [vmem:[#allocation2 + $0x3c8] sm:$0xff]
    %v569 = vld [vmem:[#allocation2 + $0x3d0] sm:$0xff]
    %v570 = vld [vmem:[#allocation2 + $0x3d8] sm:$0xff]
    %v571 = vld [vmem:[#allocation2 + $0x3e0] sm:$0xff]
    %v572 = vld [vmem:[#allocation2 + $0x3e8] sm:$0xff]
    %v573 = vld [vmem:[#allocation2 + $0x3f0] sm:$0xff]
    %v574 = vld [vmem:[#allocation2 + $0x3f8] sm:$0xff]
    %v575 = vld [vmem:[#allocation2 + $0x400] sm:$0xff]
    %v576 = vld [vmem:[#allocation2 + $0x408] sm:$0xff]
    %v577 = vld [vmem:[#allocation2 + $0x410] sm:$0xff]
    %v578 = vld [vmem:[#allocation2 + $0x418] sm:$0xff]
    %v579 = vld [vmem:[#allocation2 + $0x420] sm:$0xff]
    %v580 = vld [vmem:[#allocation2 + $0x428] sm:$0xff]
    %v581 = vld [vmem:[#allocation2 + $0x430] sm:$0xff]
    %v582 = vld [vmem:[#allocation2 + $0x438] sm:$0xff]
    %v583 = vld [vmem:[#allocation2 + $0x440] sm:$0xff]
    %v584 = vld [vmem:[#allocation2 + $0x448] sm:$0xff]
    %v585 = vld [vmem:[#allocation2 + $0x450] sm:$0xff]
    %v586 = vld [vmem:[#allocation2 + $0x458] sm:$0xff]
    %v587 = vld [vmem:[#allocation2 + $0x460] sm:$0xff]
    %v588 = vld [vmem:[#allocation2 + $0x468] sm:$0xff]
    %v589 = vld [vmem:[#allocation2 + $0x470] sm:$0xff]
    %v590 = vld [vmem:[#allocation2 + $0x478] sm:$0xff]
    %vm591 = vcmask 523264
    %v593 = vsel %vm591, %v416, 0
    %v596 = vsel %vm591, %v418, 0
    %v599 = vsel %vm591, %v420, 0
    %v602 = vsel %vm591, %v422, 0
    %v605 = vsel %vm591, %v424, 0
    %v608 = vsel %vm591, %v426, 0
    %v611 = vsel %vm591, %v428, 0
    %v614 = vsel %vm591, %v430, 0
    %v617 = vsel %vm591, %v432, 0
    %v620 = vsel %vm591, %v434, 0
    %v623 = vsel %vm591, %v436, 0
    %v626 = vsel %vm591, %v438, 0
    %v629 = vsel %vm591, %v440, 0
    %v632 = vsel %vm591, %v442, 0
    %v635 = vsel %vm591, %v444, 0
    %v638 = vsel %vm591, %v446, 0
    %640 = vmatprep.subr.mxu0 %v538
    %641 = vmatpush1.msra.mxu0 %v537
    %642 = vmatprep.subr.mxu0 %v532
    %643 = vmatpush1.msra.mxu0 %v531
    %644 = vmatprep.subr.mxu0 %v526
    %645 = vmatpush1.msra.mxu0 %v525
    %646 = vmatprep.subr.mxu0 %v520
    %647 = vmatpush1.msra.mxu0 %v519
    %648 = vmatprep.subr.mxu0 %v514
    %649 = vmatpush1.msra.mxu0 %v513
    %650 = vmatprep.subr.mxu0 %v508
    %651 = vmatpush1.msra.mxu0 %v507
    %652 = vmatprep.subr.mxu0 %v502
    %653 = vmatpush1.msra.mxu0 %v501
    %654 = vmatprep.subr.mxu0 %v496
    %655 = vmatpush1.msra.mxu0 %v495
    %656 = vmatprep.subr.mxu0 %v490
    %657 = vmatpush1.msra.mxu0 %v489
    %658 = vmatprep.subr.mxu0 %v484
    %659 = vmatpush1.msra.mxu0 %v483
    %660 = vmatprep.subr.mxu0 %v478
    %661 = vmatpush1.msra.mxu0 %v477
    %662 = vmatprep.subr.mxu0 %v472
    %663 = vmatpush1.msra.mxu0 %v471
    %664 = vmatprep.subr.mxu0 %v466
    %665 = vmatpush1.msra.mxu0 %v465
    %666 = vmatprep.subr.mxu0 %v460
    %667 = vmatpush1.msra.mxu0 %v459
    %668 = vmatprep.subr.mxu0 %v454
    %669 = vmatpush1.msra.mxu0 %v453
    %670 = vmatprep.subr.mxu0 %v448
    %671 = vmatpush1.msra.mxu0 %v447
    %672 = vmatprep.subr.mxu0 0.0
    %673 = vmatpush2.msra.mxu0 0.0
    %674 = vmatprep.subr.mxu0 0.0
    %675 = vmatpush2.msra.mxu0 0.0
    %676 = vmatprep.subr.mxu0 0.0
    %677 = vmatpush2.msra.mxu0 0.0
    %678 = vmatprep.subr.mxu0 0.0
    %679 = vmatpush2.msra.mxu0 0.0
    %680 = vmatprep.subr.mxu0 0.0
    %681 = vmatpush2.msra.mxu0 0.0
    %682 = vmatprep.subr.mxu0 0.0
    %683 = vmatpush2.msra.mxu0 0.0
    %684 = vmatprep.subr.mxu0 0.0
    %685 = vmatpush2.msra.mxu0 0.0
    %686 = vmatprep.subr.mxu0 0.0
    %687 = vmatpush2.msra.mxu0 0.0
    %688 = vmatprep.subr.mxu0 %v586
    %689 = vmatpush2.msra.mxu0 %v585
    %690 = vmatprep.subr.mxu0 %v580
    %691 = vmatpush2.msra.mxu0 %v579
    %692 = vmatprep.subr.mxu0 %v574
    %693 = vmatpush2.msra.mxu0 %v573
    %694 = vmatprep.subr.mxu0 %v568
    %695 = vmatpush2.msra.mxu0 %v567
    %696 = vmatprep.subr.mxu0 %v562
    %697 = vmatpush2.msra.mxu0 %v561
    %698 = vmatprep.subr.mxu0 %v556
    %699 = vmatpush2.msra.mxu0 %v555
    %700 = vmatprep.subr.mxu0 %v550
    %701 = vmatpush2.msra.mxu0 %v549
    %702 = vmatprep.subr.mxu0 %v544
    %703 = vmatpush2.msra.mxu0 %v543
    %704 = vmatprep.mubr.f32.mxu0 %v593
    %705 = vmatmul.mubr.f32.gmra.mxu0 %v415
    %v706 = vpop.f32.mrf.mxu0
    %v707 = vadd.f32 0.0, %v706
    %v708 = vpop.f32.mrf.mxu0
    %v709 = vadd.f32 0.0, %v708
    %710 = vmatprep.mubr.f32.mxu0 %v596
    %711 = vmatmul.mubr.f32.gmra.mxu0 %v417
    %v712 = vpop.f32.mrf.mxu0
    %v713 = vadd.f32 0.0, %v712
    %v714 = vpop.f32.mrf.mxu0
    %v715 = vadd.f32 0.0, %v714
    %716 = vmatprep.mubr.f32.mxu0 %v599
    %717 = vmatmul.mubr.f32.gmra.mxu0 %v419
    %v718 = vpop.f32.mrf.mxu0
    %v719 = vadd.f32 0.0, %v718
    %v720 = vpop.f32.mrf.mxu0
    %v721 = vadd.f32 0.0, %v720
    %722 = vmatprep.mubr.f32.mxu0 %v602
    %723 = vmatmul.mubr.f32.gmra.mxu0 %v421
    %v724 = vpop.f32.mrf.mxu0
    %v725 = vadd.f32 0.0, %v724
    %v726 = vpop.f32.mrf.mxu0
    %v727 = vadd.f32 0.0, %v726
    %728 = vmatprep.mubr.f32.mxu0 %v605
    %729 = vmatmul.mubr.f32.gmra.mxu0 %v423
    %v730 = vpop.f32.mrf.mxu0
    %v731 = vadd.f32 0.0, %v730
    %v732 = vpop.f32.mrf.mxu0
    %v733 = vadd.f32 0.0, %v732
    %734 = vmatprep.mubr.f32.mxu0 %v608
    %735 = vmatmul.mubr.f32.gmra.mxu0 %v425
    %v736 = vpop.f32.mrf.mxu0
    %v737 = vadd.f32 0.0, %v736
    %v738 = vpop.f32.mrf.mxu0
    %v739 = vadd.f32 0.0, %v738
    %740 = vmatprep.mubr.f32.mxu0 %v611
    %741 = vmatmul.mubr.f32.gmra.mxu0 %v427
    %v742 = vpop.f32.mrf.mxu0
    %v743 = vadd.f32 0.0, %v742
    %v744 = vpop.f32.mrf.mxu0
    %v745 = vadd.f32 0.0, %v744
    %746 = vmatprep.mubr.f32.mxu0 %v614
    %747 = vmatmul.mubr.f32.gmra.mxu0 %v429
    %v748 = vpop.f32.mrf.mxu0
    %v749 = vadd.f32 0.0, %v748
    %v750 = vpop.f32.mrf.mxu0
    %v751 = vadd.f32 0.0, %v750
    %752 = vmatprep.mubr.f32.mxu0 %v617
    %753 = vmatmul.mubr.f32.gmra.mxu0 %v431
    %v754 = vpop.f32.mrf.mxu0
    %v755 = vadd.f32 0.0, %v754
    %v756 = vpop.f32.mrf.mxu0
    %v757 = vadd.f32 0.0, %v756
    %758 = vmatprep.mubr.f32.mxu0 %v620
    %759 = vmatmul.mubr.f32.gmra.mxu0 %v433
    %v760 = vpop.f32.mrf.mxu0
    %v761 = vadd.f32 0.0, %v760
    %v762 = vpop.f32.mrf.mxu0
    %v763 = vadd.f32 0.0, %v762
    %764 = vmatprep.mubr.f32.mxu0 %v623
    %765 = vmatmul.mubr.f32.gmra.mxu0 %v435
    %v766 = vpop.f32.mrf.mxu0
    %v767 = vadd.f32 0.0, %v766
    %v768 = vpop.f32.mrf.mxu0
    %v769 = vadd.f32 0.0, %v768
    %770 = vmatprep.mubr.f32.mxu0 %v626
    %771 = vmatmul.mubr.f32.gmra.mxu0 %v437
    %v772 = vpop.f32.mrf.mxu0
    %v773 = vadd.f32 0.0, %v772
    %v774 = vpop.f32.mrf.mxu0
    %v775 = vadd.f32 0.0, %v774
    %776 = vmatprep.mubr.f32.mxu0 %v629
    %777 = vmatmul.mubr.f32.gmra.mxu0 %v439
    %v778 = vpop.f32.mrf.mxu0
    %v779 = vadd.f32 0.0, %v778
    %v780 = vpop.f32.mrf.mxu0
    %v781 = vadd.f32 0.0, %v780
    %782 = vmatprep.mubr.f32.mxu0 %v632
    %783 = vmatmul.mubr.f32.gmra.mxu0 %v441
    %v784 = vpop.f32.mrf.mxu0
    %v785 = vadd.f32 0.0, %v784
    %v786 = vpop.f32.mrf.mxu0
    %v787 = vadd.f32 0.0, %v786
    %788 = vmatprep.mubr.f32.mxu0 %v635
    %789 = vmatmul.mubr.f32.gmra.mxu0 %v443
    %v790 = vpop.f32.mrf.mxu0
    %v791 = vadd.f32 0.0, %v790
    %v792 = vpop.f32.mrf.mxu0
    %v793 = vadd.f32 0.0, %v792
    %794 = vmatprep.mubr.f32.mxu0 %v638
    %795 = vmatmul.mubr.f32.gmra.mxu0 %v445
    %v796 = vpop.f32.mrf.mxu0
    %v797 = vadd.f32 0.0, %v796
    %v798 = vpop.f32.mrf.mxu0
    %v799 = vadd.f32 0.0, %v798
    %800 = vdwg.mxu0
    %801 = vmatprep.subr.mxu0 %v540
    %802 = vmatpush1.msra.mxu0 %v539
    %803 = vmatprep.subr.mxu0 %v534
    %804 = vmatpush1.msra.mxu0 %v533
    %805 = vmatprep.subr.mxu0 %v528
    %806 = vmatpush1.msra.mxu0 %v527
    %807 = vmatprep.subr.mxu0 %v522
    %808 = vmatpush1.msra.mxu0 %v521
    %809 = vmatprep.subr.mxu0 %v516
    %810 = vmatpush1.msra.mxu0 %v515
    %811 = vmatprep.subr.mxu0 %v510
    %812 = vmatpush1.msra.mxu0 %v509
    %813 = vmatprep.subr.mxu0 %v504
    %814 = vmatpush1.msra.mxu0 %v503
    %815 = vmatprep.subr.mxu0 %v498
    %816 = vmatpush1.msra.mxu0 %v497
    %817 = vmatprep.subr.mxu0 %v492
    %818 = vmatpush1.msra.mxu0 %v491
    %819 = vmatprep.subr.mxu0 %v486
    %820 = vmatpush1.msra.mxu0 %v485
    %821 = vmatprep.subr.mxu0 %v480
    %822 = vmatpush1.msra.mxu0 %v479
    %823 = vmatprep.subr.mxu0 %v474
    %824 = vmatpush1.msra.mxu0 %v473
    %825 = vmatprep.subr.mxu0 %v468
    %826 = vmatpush1.msra.mxu0 %v467
    %827 = vmatprep.subr.mxu0 %v462
    %828 = vmatpush1.msra.mxu0 %v461
    %829 = vmatprep.subr.mxu0 %v456
    %830 = vmatpush1.msra.mxu0 %v455
    %831 = vmatprep.subr.mxu0 %v450
    %832 = vmatpush1.msra.mxu0 %v449
    %833 = vmatprep.subr.mxu0 0.0
    %834 = vmatpush2.msra.mxu0 0.0
    %835 = vmatprep.subr.mxu0 0.0
    %836 = vmatpush2.msra.mxu0 0.0
    %837 = vmatprep.subr.mxu0 0.0
    %838 = vmatpush2.msra.mxu0 0.0
    %839 = vmatprep.subr.mxu0 0.0
    %840 = vmatpush2.msra.mxu0 0.0
    %841 = vmatprep.subr.mxu0 0.0
    %842 = vmatpush2.msra.mxu0 0.0
    %843 = vmatprep.subr.mxu0 0.0
    %844 = vmatpush2.msra.mxu0 0.0
    %845 = vmatprep.subr.mxu0 0.0
    %846 = vmatpush2.msra.mxu0 0.0
    %847 = vmatprep.subr.mxu0 0.0
    %848 = vmatpush2.msra.mxu0 0.0
    %849 = vmatprep.subr.mxu0 %v588
    %850 = vmatpush2.msra.mxu0 %v587
    %851 = vmatprep.subr.mxu0 %v582
    %852 = vmatpush2.msra.mxu0 %v581
    %853 = vmatprep.subr.mxu0 %v576
    %854 = vmatpush2.msra.mxu0 %v575
    %855 = vmatprep.subr.mxu0 %v570
    %856 = vmatpush2.msra.mxu0 %v569
    %857 = vmatprep.subr.mxu0 %v564
    %858 = vmatpush2.msra.mxu0 %v563
    %859 = vmatprep.subr.mxu0 %v558
    %860 = vmatpush2.msra.mxu0 %v557
    %861 = vmatprep.subr.mxu0 %v552
    %862 = vmatpush2.msra.mxu0 %v551
    %863 = vmatprep.subr.mxu0 %v546
    %864 = vmatpush2.msra.mxu0 %v545
    %865 = vmatprep.mubr.f32.mxu0 %v593
    %866 = vmatmul.mubr.f32.gmra.mxu0 %v415
    %v867 = vpop.f32.mrf.mxu0
    %v868 = vadd.f32 0.0, %v867
    %v869 = vpop.f32.mrf.mxu0
    %v870 = vadd.f32 0.0, %v869
    %871 = vmatprep.mubr.f32.mxu0 %v596
    %872 = vmatmul.mubr.f32.gmra.mxu0 %v417
    %v873 = vpop.f32.mrf.mxu0
    %v874 = vadd.f32 0.0, %v873
    %v875 = vpop.f32.mrf.mxu0
    %v876 = vadd.f32 0.0, %v875
    %877 = vmatprep.mubr.f32.mxu0 %v599
    %878 = vmatmul.mubr.f32.gmra.mxu0 %v419
    %v879 = vpop.f32.mrf.mxu0
    %v880 = vadd.f32 0.0, %v879
    %v881 = vpop.f32.mrf.mxu0
    %v882 = vadd.f32 0.0, %v881
    %883 = vmatprep.mubr.f32.mxu0 %v602
    %884 = vmatmul.mubr.f32.gmra.mxu0 %v421
    %v885 = vpop.f32.mrf.mxu0
    %v886 = vadd.f32 0.0, %v885
    %v887 = vpop.f32.mrf.mxu0
    %v888 = vadd.f32 0.0, %v887
    %889 = vmatprep.mubr.f32.mxu0 %v605
    %890 = vmatmul.mubr.f32.gmra.mxu0 %v423
    %v891 = vpop.f32.mrf.mxu0
    %v892 = vadd.f32 0.0, %v891
    %v893 = vpop.f32.mrf.mxu0
    %v894 = vadd.f32 0.0, %v893
    %895 = vmatprep.mubr.f32.mxu0 %v608
    %896 = vmatmul.mubr.f32.gmra.mxu0 %v425
    %v897 = vpop.f32.mrf.mxu0
    %v898 = vadd.f32 0.0, %v897
    %v899 = vpop.f32.mrf.mxu0
    %v900 = vadd.f32 0.0, %v899
    %901 = vmatprep.mubr.f32.mxu0 %v611
    %902 = vmatmul.mubr.f32.gmra.mxu0 %v427
    %v903 = vpop.f32.mrf.mxu0
    %v904 = vadd.f32 0.0, %v903
    %v905 = vpop.f32.mrf.mxu0
    %v906 = vadd.f32 0.0, %v905
    %907 = vmatprep.mubr.f32.mxu0 %v614
    %908 = vmatmul.mubr.f32.gmra.mxu0 %v429
    %v909 = vpop.f32.mrf.mxu0
    %v910 = vadd.f32 0.0, %v909
    %v911 = vpop.f32.mrf.mxu0
    %v912 = vadd.f32 0.0, %v911
    %913 = vmatprep.mubr.f32.mxu0 %v617
    %914 = vmatmul.mubr.f32.gmra.mxu0 %v431
    %v915 = vpop.f32.mrf.mxu0
    %v916 = vadd.f32 0.0, %v915
    %v917 = vpop.f32.mrf.mxu0
    %v918 = vadd.f32 0.0, %v917
    %919 = vmatprep.mubr.f32.mxu0 %v620
    %920 = vmatmul.mubr.f32.gmra.mxu0 %v433
    %v921 = vpop.f32.mrf.mxu0
    %v922 = vadd.f32 0.0, %v921
    %v923 = vpop.f32.mrf.mxu0
    %v924 = vadd.f32 0.0, %v923
    %925 = vmatprep.mubr.f32.mxu0 %v623
    %926 = vmatmul.mubr.f32.gmra.mxu0 %v435
    %v927 = vpop.f32.mrf.mxu0
    %v928 = vadd.f32 0.0, %v927
    %v929 = vpop.f32.mrf.mxu0
    %v930 = vadd.f32 0.0, %v929
    %931 = vmatprep.mubr.f32.mxu0 %v626
    %932 = vmatmul.mubr.f32.gmra.mxu0 %v437
    %v933 = vpop.f32.mrf.mxu0
    %v934 = vadd.f32 0.0, %v933
    %v935 = vpop.f32.mrf.mxu0
    %v936 = vadd.f32 0.0, %v935
    %937 = vmatprep.mubr.f32.mxu0 %v629
    %938 = vmatmul.mubr.f32.gmra.mxu0 %v439
    %v939 = vpop.f32.mrf.mxu0
    %v940 = vadd.f32 0.0, %v939
    %v941 = vpop.f32.mrf.mxu0
    %v942 = vadd.f32 0.0, %v941
    %943 = vmatprep.mubr.f32.mxu0 %v632
    %944 = vmatmul.mubr.f32.gmra.mxu0 %v441
    %v945 = vpop.f32.mrf.mxu0
    %v946 = vadd.f32 0.0, %v945
    %v947 = vpop.f32.mrf.mxu0
    %v948 = vadd.f32 0.0, %v947
    %949 = vmatprep.mubr.f32.mxu0 %v635
    %950 = vmatmul.mubr.f32.gmra.mxu0 %v443
    %v951 = vpop.f32.mrf.mxu0
    %v952 = vadd.f32 0.0, %v951
    %v953 = vpop.f32.mrf.mxu0
    %v954 = vadd.f32 0.0, %v953
    %955 = vmatprep.mubr.f32.mxu0 %v638
    %956 = vmatmul.mubr.f32.gmra.mxu0 %v445
    %v957 = vpop.f32.mrf.mxu0
    %v958 = vadd.f32 0.0, %v957
    %v959 = vpop.f32.mrf.mxu0
    %v960 = vadd.f32 0.0, %v959
    %961 = vdwg.mxu0
    %962 = vmatprep.subr.mxu0 %v542
    %963 = vmatpush1.msra.mxu0 %v541
    %964 = vmatprep.subr.mxu0 %v536
    %965 = vmatpush1.msra.mxu0 %v535
    %966 = vmatprep.subr.mxu0 %v530
    %967 = vmatpush1.msra.mxu0 %v529
    %968 = vmatprep.subr.mxu0 %v524
    %969 = vmatpush1.msra.mxu0 %v523
    %970 = vmatprep.subr.mxu0 %v518
    %971 = vmatpush1.msra.mxu0 %v517
    %972 = vmatprep.subr.mxu0 %v512
    %973 = vmatpush1.msra.mxu0 %v511
    %974 = vmatprep.subr.mxu0 %v506
    %975 = vmatpush1.msra.mxu0 %v505
    %976 = vmatprep.subr.mxu0 %v500
    %977 = vmatpush1.msra.mxu0 %v499
    %978 = vmatprep.subr.mxu0 %v494
    %979 = vmatpush1.msra.mxu0 %v493
    %980 = vmatprep.subr.mxu0 %v488
    %981 = vmatpush1.msra.mxu0 %v487
    %982 = vmatprep.subr.mxu0 %v482
    %983 = vmatpush1.msra.mxu0 %v481
    %984 = vmatprep.subr.mxu0 %v476
    %985 = vmatpush1.msra.mxu0 %v475
    %986 = vmatprep.subr.mxu0 %v470
    %987 = vmatpush1.msra.mxu0 %v469
    %988 = vmatprep.subr.mxu0 %v464
    %989 = vmatpush1.msra.mxu0 %v463
    %990 = vmatprep.subr.mxu0 %v458
    %991 = vmatpush1.msra.mxu0 %v457
    %992 = vmatprep.subr.mxu0 %v452
    %993 = vmatpush1.msra.mxu0 %v451
    %994 = vmatprep.subr.mxu0 0.0
    %995 = vmatpush2.msra.mxu0 0.0
    %996 = vmatprep.subr.mxu0 0.0
    %997 = vmatpush2.msra.mxu0 0.0
    %998 = vmatprep.subr.mxu0 0.0
    %999 = vmatpush2.msra.mxu0 0.0
    %1000 = vmatprep.subr.mxu0 0.0
    %1001 = vmatpush2.msra.mxu0 0.0
    %1002 = vmatprep.subr.mxu0 0.0
    %1003 = vmatpush2.msra.mxu0 0.0
    %1004 = vmatprep.subr.mxu0 0.0
    %1005 = vmatpush2.msra.mxu0 0.0
    %1006 = vmatprep.subr.mxu0 0.0
    %1007 = vmatpush2.msra.mxu0 0.0
    %1008 = vmatprep.subr.mxu0 0.0
    %1009 = vmatpush2.msra.mxu0 0.0
    %1010 = vmatprep.subr.mxu0 %v590
    %1011 = vmatpush2.msra.mxu0 %v589
    %1012 = vmatprep.subr.mxu0 %v584
    %1013 = vmatpush2.msra.mxu0 %v583
    %1014 = vmatprep.subr.mxu0 %v578
    %1015 = vmatpush2.msra.mxu0 %v577
    %1016 = vmatprep.subr.mxu0 %v572
    %1017 = vmatpush2.msra.mxu0 %v571
    %1018 = vmatprep.subr.mxu0 %v566
    %1019 = vmatpush2.msra.mxu0 %v565
    %1020 = vmatprep.subr.mxu0 %v560
    %1021 = vmatpush2.msra.mxu0 %v559
    %1022 = vmatprep.subr.mxu0 %v554
    %1023 = vmatpush2.msra.mxu0 %v553
    %1024 = vmatprep.subr.mxu0 %v548
    %1025 = vmatpush2.msra.mxu0 %v547
    %1026 = vmatprep.mubr.f32.mxu0 %v593
    %1027 = vmatmul.mubr.f32.gmra.mxu0 %v415
    %v1028 = vpop.f32.mrf.mxu0
    %v1029 = vadd.f32 0.0, %v1028
    %v1030 = vpop.f32.mrf.mxu0
    %v1031 = vadd.f32 0.0, %v1030
    %1032 = vmatprep.mubr.f32.mxu0 %v596
    %1033 = vmatmul.mubr.f32.gmra.mxu0 %v417
    %v1034 = vpop.f32.mrf.mxu0
    %v1035 = vadd.f32 0.0, %v1034
    %v1036 = vpop.f32.mrf.mxu0
    %v1037 = vadd.f32 0.0, %v1036
    %1038 = vmatprep.mubr.f32.mxu0 %v599
    %1039 = vmatmul.mubr.f32.gmra.mxu0 %v419
    %v1040 = vpop.f32.mrf.mxu0
    %v1041 = vadd.f32 0.0, %v1040
    %v1042 = vpop.f32.mrf.mxu0
    %v1043 = vadd.f32 0.0, %v1042
    %1044 = vmatprep.mubr.f32.mxu0 %v602
    %1045 = vmatmul.mubr.f32.gmra.mxu0 %v421
    %v1046 = vpop.f32.mrf.mxu0
    %v1047 = vadd.f32 0.0, %v1046
    %v1048 = vpop.f32.mrf.mxu0
    %v1049 = vadd.f32 0.0, %v1048
    %1050 = vmatprep.mubr.f32.mxu0 %v605
    %1051 = vmatmul.mubr.f32.gmra.mxu0 %v423
    %v1052 = vpop.f32.mrf.mxu0
    %v1053 = vadd.f32 0.0, %v1052
    %v1054 = vpop.f32.mrf.mxu0
    %v1055 = vadd.f32 0.0, %v1054
    %1056 = vmatprep.mubr.f32.mxu0 %v608
    %1057 = vmatmul.mubr.f32.gmra.mxu0 %v425
    %v1058 = vpop.f32.mrf.mxu0
    %v1059 = vadd.f32 0.0, %v1058
    %v1060 = vpop.f32.mrf.mxu0
    %v1061 = vadd.f32 0.0, %v1060
    %1062 = vmatprep.mubr.f32.mxu0 %v611
    %1063 = vmatmul.mubr.f32.gmra.mxu0 %v427
    %v1064 = vpop.f32.mrf.mxu0
    %v1065 = vadd.f32 0.0, %v1064
    %v1066 = vpop.f32.mrf.mxu0
    %v1067 = vadd.f32 0.0, %v1066
    %1068 = vmatprep.mubr.f32.mxu0 %v614
    %1069 = vmatmul.mubr.f32.gmra.mxu0 %v429
    %v1070 = vpop.f32.mrf.mxu0
    %v1071 = vadd.f32 0.0, %v1070
    %v1072 = vpop.f32.mrf.mxu0
    %v1073 = vadd.f32 0.0, %v1072
    %1074 = vmatprep.mubr.f32.mxu0 %v617
    %1075 = vmatmul.mubr.f32.gmra.mxu0 %v431
    %v1076 = vpop.f32.mrf.mxu0
    %v1077 = vadd.f32 0.0, %v1076
    %v1078 = vpop.f32.mrf.mxu0
    %v1079 = vadd.f32 0.0, %v1078
    %1080 = vmatprep.mubr.f32.mxu0 %v620
    %1081 = vmatmul.mubr.f32.gmra.mxu0 %v433
    %v1082 = vpop.f32.mrf.mxu0
    %v1083 = vadd.f32 0.0, %v1082
    %v1084 = vpop.f32.mrf.mxu0
    %v1085 = vadd.f32 0.0, %v1084
    %1086 = vmatprep.mubr.f32.mxu0 %v623
    %1087 = vmatmul.mubr.f32.gmra.mxu0 %v435
    %v1088 = vpop.f32.mrf.mxu0
    %v1089 = vadd.f32 0.0, %v1088
    %v1090 = vpop.f32.mrf.mxu0
    %v1091 = vadd.f32 0.0, %v1090
    %1092 = vmatprep.mubr.f32.mxu0 %v626
    %1093 = vmatmul.mubr.f32.gmra.mxu0 %v437
    %v1094 = vpop.f32.mrf.mxu0
    %v1095 = vadd.f32 0.0, %v1094
    %v1096 = vpop.f32.mrf.mxu0
    %v1097 = vadd.f32 0.0, %v1096
    %1098 = vmatprep.mubr.f32.mxu0 %v629
    %1099 = vmatmul.mubr.f32.gmra.mxu0 %v439
    %v1100 = vpop.f32.mrf.mxu0
    %v1101 = vadd.f32 0.0, %v1100
    %v1102 = vpop.f32.mrf.mxu0
    %v1103 = vadd.f32 0.0, %v1102
    %1104 = vmatprep.mubr.f32.mxu0 %v632
    %1105 = vmatmul.mubr.f32.gmra.mxu0 %v441
    %v1106 = vpop.f32.mrf.mxu0
    %v1107 = vadd.f32 0.0, %v1106
    %v1108 = vpop.f32.mrf.mxu0
    %v1109 = vadd.f32 0.0, %v1108
    %1110 = vmatprep.mubr.f32.mxu0 %v635
    %1111 = vmatmul.mubr.f32.gmra.mxu0 %v443
    %v1112 = vpop.f32.mrf.mxu0
    %v1113 = vadd.f32 0.0, %v1112
    %v1114 = vpop.f32.mrf.mxu0
    %v1115 = vadd.f32 0.0, %v1114
    %1116 = vmatprep.mubr.f32.mxu0 %v638
    %1117 = vmatmul.mubr.f32.gmra.mxu0 %v445
    %v1118 = vpop.f32.mrf.mxu0
    %v1119 = vadd.f32 0.0, %v1118
    %v1120 = vpop.f32.mrf.mxu0
    %v1121 = vadd.f32 0.0, %v1120
    %1122 = vdwg.mxu0
    %1155 = vrot.lane.b32.xlu0 %v707, 36
    %v1156 = vpop.permute.xlu0 %1155
    %1157 = vrot.lane.b32.xlu0 %v709, 36
    %v1158 = vpop.permute.xlu0 %1157
    %1159 = vrot.lane.b32.xlu0 %v713, 36
    %v1160 = vpop.permute.xlu0 %1159
    %1161 = vrot.lane.b32.xlu0 %v715, 36
    %v1162 = vpop.permute.xlu0 %1161
    %1163 = vrot.lane.b32.xlu0 %v719, 36
    %v1164 = vpop.permute.xlu0 %1163
    %1165 = vrot.lane.b32.xlu0 %v721, 36
    %v1166 = vpop.permute.xlu0 %1165
    %1167 = vrot.lane.b32.xlu0 %v725, 36
    %v1168 = vpop.permute.xlu0 %1167
    %1169 = vrot.lane.b32.xlu0 %v727, 36
    %v1170 = vpop.permute.xlu0 %1169
    %1171 = vrot.lane.b32.xlu0 %v731, 36
    %v1172 = vpop.permute.xlu0 %1171
    %1173 = vrot.lane.b32.xlu0 %v733, 36
    %v1174 = vpop.permute.xlu0 %1173
    %1175 = vrot.lane.b32.xlu0 %v737, 36
    %v1176 = vpop.permute.xlu0 %1175
    %1177 = vrot.lane.b32.xlu0 %v739, 36
    %v1178 = vpop.permute.xlu0 %1177
    %1179 = vrot.lane.b32.xlu0 %v743, 36
    %v1180 = vpop.permute.xlu0 %1179
    %1181 = vrot.lane.b32.xlu0 %v745, 36
    %v1182 = vpop.permute.xlu0 %1181
    %1183 = vrot.lane.b32.xlu0 %v749, 36
    %v1184 = vpop.permute.xlu0 %1183
    %1185 = vrot.lane.b32.xlu0 %v751, 36
    %v1186 = vpop.permute.xlu0 %1185
    %1187 = vrot.lane.b32.xlu0 %v755, 36
    %v1188 = vpop.permute.xlu0 %1187
    %1189 = vrot.lane.b32.xlu0 %v757, 36
    %v1190 = vpop.permute.xlu0 %1189
    %1191 = vrot.lane.b32.xlu0 %v761, 36
    %v1192 = vpop.permute.xlu0 %1191
    %1193 = vrot.lane.b32.xlu0 %v763, 36
    %v1194 = vpop.permute.xlu0 %1193
    %1195 = vrot.lane.b32.xlu0 %v767, 36
    %v1196 = vpop.permute.xlu0 %1195
    %1197 = vrot.lane.b32.xlu0 %v769, 36
    %v1198 = vpop.permute.xlu0 %1197
    %1199 = vrot.lane.b32.xlu0 %v773, 36
    %v1200 = vpop.permute.xlu0 %1199
    %1201 = vrot.lane.b32.xlu0 %v775, 36
    %v1202 = vpop.permute.xlu0 %1201
    %1203 = vrot.lane.b32.xlu0 %v779, 36
    %v1204 = vpop.permute.xlu0 %1203
    %1205 = vrot.lane.b32.xlu0 %v781, 36
    %v1206 = vpop.permute.xlu0 %1205
    %1207 = vrot.lane.b32.xlu0 %v785, 36
    %v1208 = vpop.permute.xlu0 %1207
    %1209 = vrot.lane.b32.xlu0 %v787, 36
    %v1210 = vpop.permute.xlu0 %1209
    %1211 = vrot.lane.b32.xlu0 %v791, 36
    %v1212 = vpop.permute.xlu0 %1211
    %1213 = vrot.lane.b32.xlu0 %v793, 36
    %v1214 = vpop.permute.xlu0 %1213
    %1215 = vrot.lane.b32.xlu0 %v797, 36
    %v1216 = vpop.permute.xlu0 %1215
    %1217 = vrot.lane.b32.xlu0 %v799, 36
    %v1218 = vpop.permute.xlu0 %1217
    %vm1219 = vcmask 293888
    %v1220 = vsel %vm1219, %v1156, %v1158
    %v1221 = vsel %vm1219, %v1160, %v1162
    %v1222 = vsel %vm1219, %v1164, %v1166
    %v1223 = vsel %vm1219, %v1168, %v1170
    %v1224 = vsel %vm1219, %v1172, %v1174
    %v1225 = vsel %vm1219, %v1176, %v1178
    %v1226 = vsel %vm1219, %v1180, %v1182
    %v1227 = vsel %vm1219, %v1184, %v1186
    %v1228 = vsel %vm1219, %v1188, %v1190
    %v1229 = vsel %vm1219, %v1192, %v1194
    %v1230 = vsel %vm1219, %v1196, %v1198
    %v1231 = vsel %vm1219, %v1200, %v1202
    %v1232 = vsel %vm1219, %v1204, %v1206
    %v1233 = vsel %vm1219, %v1208, %v1210
    %v1234 = vsel %vm1219, %v1212, %v1214
    %v1235 = vsel %vm1219, %v1216, %v1218
    %1268 = vrot.lane.b32.xlu0 %v709, 72
    %v1269 = vpop.permute.xlu0 %1268
    %1270 = vrot.lane.b32.xlu0 %v868, 72
    %v1271 = vpop.permute.xlu0 %1270
    %1272 = vrot.lane.b32.xlu0 %v715, 72
    %v1273 = vpop.permute.xlu0 %1272
    %1274 = vrot.lane.b32.xlu0 %v874, 72
    %v1275 = vpop.permute.xlu0 %1274
    %1276 = vrot.lane.b32.xlu0 %v721, 72
    %v1277 = vpop.permute.xlu0 %1276
    %1278 = vrot.lane.b32.xlu0 %v880, 72
    %v1279 = vpop.permute.xlu0 %1278
    %1280 = vrot.lane.b32.xlu0 %v727, 72
    %v1281 = vpop.permute.xlu0 %1280
    %1282 = vrot.lane.b32.xlu0 %v886, 72
    %v1283 = vpop.permute.xlu0 %1282
    %1284 = vrot.lane.b32.xlu0 %v733, 72
    %v1285 = vpop.permute.xlu0 %1284
    %1286 = vrot.lane.b32.xlu0 %v892, 72
    %v1287 = vpop.permute.xlu0 %1286
    %1288 = vrot.lane.b32.xlu0 %v739, 72
    %v1289 = vpop.permute.xlu0 %1288
    %1290 = vrot.lane.b32.xlu0 %v898, 72
    %v1291 = vpop.permute.xlu0 %1290
    %1292 = vrot.lane.b32.xlu0 %v745, 72
    %v1293 = vpop.permute.xlu0 %1292
    %1294 = vrot.lane.b32.xlu0 %v904, 72
    %v1295 = vpop.permute.xlu0 %1294
    %1296 = vrot.lane.b32.xlu0 %v751, 72
    %v1297 = vpop.permute.xlu0 %1296
    %1298 = vrot.lane.b32.xlu0 %v910, 72
    %v1299 = vpop.permute.xlu0 %1298
    %1300 = vrot.lane.b32.xlu0 %v757, 72
    %v1301 = vpop.permute.xlu0 %1300
    %1302 = vrot.lane.b32.xlu0 %v916, 72
    %v1303 = vpop.permute.xlu0 %1302
    %1304 = vrot.lane.b32.xlu0 %v763, 72
    %v1305 = vpop.permute.xlu0 %1304
    %1306 = vrot.lane.b32.xlu0 %v922, 72
    %v1307 = vpop.permute.xlu0 %1306
    %1308 = vrot.lane.b32.xlu0 %v769, 72
    %v1309 = vpop.permute.xlu0 %1308
    %1310 = vrot.lane.b32.xlu0 %v928, 72
    %v1311 = vpop.permute.xlu0 %1310
    %1312 = vrot.lane.b32.xlu0 %v775, 72
    %v1313 = vpop.permute.xlu0 %1312
    %1314 = vrot.lane.b32.xlu0 %v934, 72
    %v1315 = vpop.permute.xlu0 %1314
    %1316 = vrot.lane.b32.xlu0 %v781, 72
    %v1317 = vpop.permute.xlu0 %1316
    %1318 = vrot.lane.b32.xlu0 %v940, 72
    %v1319 = vpop.permute.xlu0 %1318
    %1320 = vrot.lane.b32.xlu0 %v787, 72
    %v1321 = vpop.permute.xlu0 %1320
    %1322 = vrot.lane.b32.xlu0 %v946, 72
    %v1323 = vpop.permute.xlu0 %1322
    %1324 = vrot.lane.b32.xlu0 %v793, 72
    %v1325 = vpop.permute.xlu0 %1324
    %1326 = vrot.lane.b32.xlu0 %v952, 72
    %v1327 = vpop.permute.xlu0 %1326
    %1328 = vrot.lane.b32.xlu0 %v799, 72
    %v1329 = vpop.permute.xlu0 %1328
    %1330 = vrot.lane.b32.xlu0 %v958, 72
    %v1331 = vpop.permute.xlu0 %1330
    %vm1332 = vcmask 588800
    %v1333 = vsel %vm1332, %v1269, %v1271
    %v1334 = vsel %vm1332, %v1273, %v1275
    %v1335 = vsel %vm1332, %v1277, %v1279
    %v1336 = vsel %vm1332, %v1281, %v1283
    %v1337 = vsel %vm1332, %v1285, %v1287
    %v1338 = vsel %vm1332, %v1289, %v1291
    %v1339 = vsel %vm1332, %v1293, %v1295
    %v1340 = vsel %vm1332, %v1297, %v1299
    %v1341 = vsel %vm1332, %v1301, %v1303
    %v1342 = vsel %vm1332, %v1305, %v1307
    %v1343 = vsel %vm1332, %v1309, %v1311
    %v1344 = vsel %vm1332, %v1313, %v1315
    %v1345 = vsel %vm1332, %v1317, %v1319
    %v1346 = vsel %vm1332, %v1321, %v1323
    %v1347 = vsel %vm1332, %v1325, %v1327
    %v1348 = vsel %vm1332, %v1329, %v1331
    %1365 = vrot.lane.b32.xlu0 %v868, 108
    %v1366 = vpop.permute.xlu0 %1365
    %1367 = vrot.lane.b32.xlu0 %v874, 108
    %v1368 = vpop.permute.xlu0 %1367
    %1369 = vrot.lane.b32.xlu0 %v880, 108
    %v1370 = vpop.permute.xlu0 %1369
    %1371 = vrot.lane.b32.xlu0 %v886, 108
    %v1372 = vpop.permute.xlu0 %1371
    %1373 = vrot.lane.b32.xlu0 %v892, 108
    %v1374 = vpop.permute.xlu0 %1373
    %1375 = vrot.lane.b32.xlu0 %v898, 108
    %v1376 = vpop.permute.xlu0 %1375
    %1377 = vrot.lane.b32.xlu0 %v904, 108
    %v1378 = vpop.permute.xlu0 %1377
    %1379 = vrot.lane.b32.xlu0 %v910, 108
    %v1380 = vpop.permute.xlu0 %1379
    %1381 = vrot.lane.b32.xlu0 %v916, 108
    %v1382 = vpop.permute.xlu0 %1381
    %1383 = vrot.lane.b32.xlu0 %v922, 108
    %v1384 = vpop.permute.xlu0 %1383
    %1385 = vrot.lane.b32.xlu0 %v928, 108
    %v1386 = vpop.permute.xlu0 %1385
    %1387 = vrot.lane.b32.xlu0 %v934, 108
    %v1388 = vpop.permute.xlu0 %1387
    %1389 = vrot.lane.b32.xlu0 %v940, 108
    %v1390 = vpop.permute.xlu0 %1389
    %1391 = vrot.lane.b32.xlu0 %v946, 108
    %v1392 = vpop.permute.xlu0 %1391
    %1393 = vrot.lane.b32.xlu0 %v952, 108
    %v1394 = vpop.permute.xlu0 %1393
    %1395 = vrot.lane.b32.xlu0 %v958, 108
    %v1396 = vpop.permute.xlu0 %1395
    %1429 = vrot.lane.b32.xlu0 %v868, 16
    %v1430 = vpop.permute.xlu0 %1429
    %1431 = vrot.lane.b32.xlu0 %v870, 16
    %v1432 = vpop.permute.xlu0 %1431
    %1433 = vrot.lane.b32.xlu0 %v874, 16
    %v1434 = vpop.permute.xlu0 %1433
    %1435 = vrot.lane.b32.xlu0 %v876, 16
    %v1436 = vpop.permute.xlu0 %1435
    %1437 = vrot.lane.b32.xlu0 %v880, 16
    %v1438 = vpop.permute.xlu0 %1437
    %1439 = vrot.lane.b32.xlu0 %v882, 16
    %v1440 = vpop.permute.xlu0 %1439
    %1441 = vrot.lane.b32.xlu0 %v886, 16
    %v1442 = vpop.permute.xlu0 %1441
    %1443 = vrot.lane.b32.xlu0 %v888, 16
    %v1444 = vpop.permute.xlu0 %1443
    %1445 = vrot.lane.b32.xlu0 %v892, 16
    %v1446 = vpop.permute.xlu0 %1445
    %1447 = vrot.lane.b32.xlu0 %v894, 16
    %v1448 = vpop.permute.xlu0 %1447
    %1449 = vrot.lane.b32.xlu0 %v898, 16
    %v1450 = vpop.permute.xlu0 %1449
    %1451 = vrot.lane.b32.xlu0 %v900, 16
    %v1452 = vpop.permute.xlu0 %1451
    %1453 = vrot.lane.b32.xlu0 %v904, 16
    %v1454 = vpop.permute.xlu0 %1453
    %1455 = vrot.lane.b32.xlu0 %v906, 16
    %v1456 = vpop.permute.xlu0 %1455
    %1457 = vrot.lane.b32.xlu0 %v910, 16
    %v1458 = vpop.permute.xlu0 %1457
    %1459 = vrot.lane.b32.xlu0 %v912, 16
    %v1460 = vpop.permute.xlu0 %1459
    %1461 = vrot.lane.b32.xlu0 %v916, 16
    %v1462 = vpop.permute.xlu0 %1461
    %1463 = vrot.lane.b32.xlu0 %v918, 16
    %v1464 = vpop.permute.xlu0 %1463
    %1465 = vrot.lane.b32.xlu0 %v922, 16
    %v1466 = vpop.permute.xlu0 %1465
    %1467 = vrot.lane.b32.xlu0 %v924, 16
    %v1468 = vpop.permute.xlu0 %1467
    %1469 = vrot.lane.b32.xlu0 %v928, 16
    %v1470 = vpop.permute.xlu0 %1469
    %1471 = vrot.lane.b32.xlu0 %v930, 16
    %v1472 = vpop.permute.xlu0 %1471
    %1473 = vrot.lane.b32.xlu0 %v934, 16
    %v1474 = vpop.permute.xlu0 %1473
    %1475 = vrot.lane.b32.xlu0 %v936, 16
    %v1476 = vpop.permute.xlu0 %1475
    %1477 = vrot.lane.b32.xlu0 %v940, 16
    %v1478 = vpop.permute.xlu0 %1477
    %1479 = vrot.lane.b32.xlu0 %v942, 16
    %v1480 = vpop.permute.xlu0 %1479
    %1481 = vrot.lane.b32.xlu0 %v946, 16
    %v1482 = vpop.permute.xlu0 %1481
    %1483 = vrot.lane.b32.xlu0 %v948, 16
    %v1484 = vpop.permute.xlu0 %1483
    %1485 = vrot.lane.b32.xlu0 %v952, 16
    %v1486 = vpop.permute.xlu0 %1485
    %1487 = vrot.lane.b32.xlu0 %v954, 16
    %v1488 = vpop.permute.xlu0 %1487
    %1489 = vrot.lane.b32.xlu0 %v958, 16
    %v1490 = vpop.permute.xlu0 %1489
    %1491 = vrot.lane.b32.xlu0 %v960, 16
    %v1492 = vpop.permute.xlu0 %1491
    %vm1493 = vcmask 130048
    %v1494 = vsel %vm1493, %v1430, %v1432
    %v1495 = vsel %vm1493, %v1434, %v1436
    %v1496 = vsel %vm1493, %v1438, %v1440
    %v1497 = vsel %vm1493, %v1442, %v1444
    %v1498 = vsel %vm1493, %v1446, %v1448
    %v1499 = vsel %vm1493, %v1450, %v1452
    %v1500 = vsel %vm1493, %v1454, %v1456
    %v1501 = vsel %vm1493, %v1458, %v1460
    %v1502 = vsel %vm1493, %v1462, %v1464
    %v1503 = vsel %vm1493, %v1466, %v1468
    %v1504 = vsel %vm1493, %v1470, %v1472
    %v1505 = vsel %vm1493, %v1474, %v1476
    %v1506 = vsel %vm1493, %v1478, %v1480
    %v1507 = vsel %vm1493, %v1482, %v1484
    %v1508 = vsel %vm1493, %v1486, %v1488
    %v1509 = vsel %vm1493, %v1490, %v1492
    %1542 = vrot.lane.b32.xlu0 %v870, 52
    %v1543 = vpop.permute.xlu0 %1542
    %1544 = vrot.lane.b32.xlu0 %v1029, 52
    %v1545 = vpop.permute.xlu0 %1544
    %1546 = vrot.lane.b32.xlu0 %v876, 52
    %v1547 = vpop.permute.xlu0 %1546
    %1548 = vrot.lane.b32.xlu0 %v1035, 52
    %v1549 = vpop.permute.xlu0 %1548
    %1550 = vrot.lane.b32.xlu0 %v882, 52
    %v1551 = vpop.permute.xlu0 %1550
    %1552 = vrot.lane.b32.xlu0 %v1041, 52
    %v1553 = vpop.permute.xlu0 %1552
    %1554 = vrot.lane.b32.xlu0 %v888, 52
    %v1555 = vpop.permute.xlu0 %1554
    %1556 = vrot.lane.b32.xlu0 %v1047, 52
    %v1557 = vpop.permute.xlu0 %1556
    %1558 = vrot.lane.b32.xlu0 %v894, 52
    %v1559 = vpop.permute.xlu0 %1558
    %1560 = vrot.lane.b32.xlu0 %v1053, 52
    %v1561 = vpop.permute.xlu0 %1560
    %1562 = vrot.lane.b32.xlu0 %v900, 52
    %v1563 = vpop.permute.xlu0 %1562
    %1564 = vrot.lane.b32.xlu0 %v1059, 52
    %v1565 = vpop.permute.xlu0 %1564
    %1566 = vrot.lane.b32.xlu0 %v906, 52
    %v1567 = vpop.permute.xlu0 %1566
    %1568 = vrot.lane.b32.xlu0 %v1065, 52
    %v1569 = vpop.permute.xlu0 %1568
    %1570 = vrot.lane.b32.xlu0 %v912, 52
    %v1571 = vpop.permute.xlu0 %1570
    %1572 = vrot.lane.b32.xlu0 %v1071, 52
    %v1573 = vpop.permute.xlu0 %1572
    %1574 = vrot.lane.b32.xlu0 %v918, 52
    %v1575 = vpop.permute.xlu0 %1574
    %1576 = vrot.lane.b32.xlu0 %v1077, 52
    %v1577 = vpop.permute.xlu0 %1576
    %1578 = vrot.lane.b32.xlu0 %v924, 52
    %v1579 = vpop.permute.xlu0 %1578
    %1580 = vrot.lane.b32.xlu0 %v1083, 52
    %v1581 = vpop.permute.xlu0 %1580
    %1582 = vrot.lane.b32.xlu0 %v930, 52
    %v1583 = vpop.permute.xlu0 %1582
    %1584 = vrot.lane.b32.xlu0 %v1089, 52
    %v1585 = vpop.permute.xlu0 %1584
    %1586 = vrot.lane.b32.xlu0 %v936, 52
    %v1587 = vpop.permute.xlu0 %1586
    %1588 = vrot.lane.b32.xlu0 %v1095, 52
    %v1589 = vpop.permute.xlu0 %1588
    %1590 = vrot.lane.b32.xlu0 %v942, 52
    %v1591 = vpop.permute.xlu0 %1590
    %1592 = vrot.lane.b32.xlu0 %v1101, 52
    %v1593 = vpop.permute.xlu0 %1592
    %1594 = vrot.lane.b32.xlu0 %v948, 52
    %v1595 = vpop.permute.xlu0 %1594
    %1596 = vrot.lane.b32.xlu0 %v1107, 52
    %v1597 = vpop.permute.xlu0 %1596
    %1598 = vrot.lane.b32.xlu0 %v954, 52
    %v1599 = vpop.permute.xlu0 %1598
    %1600 = vrot.lane.b32.xlu0 %v1113, 52
    %v1601 = vpop.permute.xlu0 %1600
    %1602 = vrot.lane.b32.xlu0 %v960, 52
    %v1603 = vpop.permute.xlu0 %1602
    %1604 = vrot.lane.b32.xlu0 %v1119, 52
    %v1605 = vpop.permute.xlu0 %1604
    %vm1606 = vcmask 424960
    %v1607 = vsel %vm1606, %v1543, %v1545
    %v1608 = vsel %vm1606, %v1547, %v1549
    %v1609 = vsel %vm1606, %v1551, %v1553
    %v1610 = vsel %vm1606, %v1555, %v1557
    %v1611 = vsel %vm1606, %v1559, %v1561
    %v1612 = vsel %vm1606, %v1563, %v1565
    %v1613 = vsel %vm1606, %v1567, %v1569
    %v1614 = vsel %vm1606, %v1571, %v1573
    %v1615 = vsel %vm1606, %v1575, %v1577
    %v1616 = vsel %vm1606, %v1579, %v1581
    %v1617 = vsel %vm1606, %v1583, %v1585
    %v1618 = vsel %vm1606, %v1587, %v1589
    %v1619 = vsel %vm1606, %v1591, %v1593
    %v1620 = vsel %vm1606, %v1595, %v1597
    %v1621 = vsel %vm1606, %v1599, %v1601
    %v1622 = vsel %vm1606, %v1603, %v1605
    %1655 = vrot.lane.b32.xlu0 %v1029, 88
    %v1656 = vpop.permute.xlu0 %1655
    %1657 = vrot.lane.b32.xlu0 %v1031, 88
    %v1658 = vpop.permute.xlu0 %1657
    %1659 = vrot.lane.b32.xlu0 %v1035, 88
    %v1660 = vpop.permute.xlu0 %1659
    %1661 = vrot.lane.b32.xlu0 %v1037, 88
    %v1662 = vpop.permute.xlu0 %1661
    %1663 = vrot.lane.b32.xlu0 %v1041, 88
    %v1664 = vpop.permute.xlu0 %1663
    %1665 = vrot.lane.b32.xlu0 %v1043, 88
    %v1666 = vpop.permute.xlu0 %1665
    %1667 = vrot.lane.b32.xlu0 %v1047, 88
    %v1668 = vpop.permute.xlu0 %1667
    %1669 = vrot.lane.b32.xlu0 %v1049, 88
    %v1670 = vpop.permute.xlu0 %1669
    %1671 = vrot.lane.b32.xlu0 %v1053, 88
    %v1672 = vpop.permute.xlu0 %1671
    %1673 = vrot.lane.b32.xlu0 %v1055, 88
    %v1674 = vpop.permute.xlu0 %1673
    %1675 = vrot.lane.b32.xlu0 %v1059, 88
    %v1676 = vpop.permute.xlu0 %1675
    %1677 = vrot.lane.b32.xlu0 %v1061, 88
    %v1678 = vpop.permute.xlu0 %1677
    %1679 = vrot.lane.b32.xlu0 %v1065, 88
    %v1680 = vpop.permute.xlu0 %1679
    %1681 = vrot.lane.b32.xlu0 %v1067, 88
    %v1682 = vpop.permute.xlu0 %1681
    %1683 = vrot.lane.b32.xlu0 %v1071, 88
    %v1684 = vpop.permute.xlu0 %1683
    %1685 = vrot.lane.b32.xlu0 %v1073, 88
    %v1686 = vpop.permute.xlu0 %1685
    %1687 = vrot.lane.b32.xlu0 %v1077, 88
    %v1688 = vpop.permute.xlu0 %1687
    %1689 = vrot.lane.b32.xlu0 %v1079, 88
    %v1690 = vpop.permute.xlu0 %1689
    %1691 = vrot.lane.b32.xlu0 %v1083, 88
    %v1692 = vpop.permute.xlu0 %1691
    %1693 = vrot.lane.b32.xlu0 %v1085, 88
    %v1694 = vpop.permute.xlu0 %1693
    %1695 = vrot.lane.b32.xlu0 %v1089, 88
    %v1696 = vpop.permute.xlu0 %1695
    %1697 = vrot.lane.b32.xlu0 %v1091, 88
    %v1698 = vpop.permute.xlu0 %1697
    %1699 = vrot.lane.b32.xlu0 %v1095, 88
    %v1700 = vpop.permute.xlu0 %1699
    %1701 = vrot.lane.b32.xlu0 %v1097, 88
    %v1702 = vpop.permute.xlu0 %1701
    %1703 = vrot.lane.b32.xlu0 %v1101, 88
    %v1704 = vpop.permute.xlu0 %1703
    %1705 = vrot.lane.b32.xlu0 %v1103, 88
    %v1706 = vpop.permute.xlu0 %1705
    %1707 = vrot.lane.b32.xlu0 %v1107, 88
    %v1708 = vpop.permute.xlu0 %1707
    %1709 = vrot.lane.b32.xlu0 %v1109, 88
    %v1710 = vpop.permute.xlu0 %1709
    %1711 = vrot.lane.b32.xlu0 %v1113, 88
    %v1712 = vpop.permute.xlu0 %1711
    %1713 = vrot.lane.b32.xlu0 %v1115, 88
    %v1714 = vpop.permute.xlu0 %1713
    %1715 = vrot.lane.b32.xlu0 %v1119, 88
    %v1716 = vpop.permute.xlu0 %1715
    %1717 = vrot.lane.b32.xlu0 %v1121, 88
    %v1718 = vpop.permute.xlu0 %1717
    %vm1719 = vcmask 719872
    %v1720 = vsel %vm1719, %v1656, %v1658
    %v1721 = vsel %vm1719, %v1660, %v1662
    %v1722 = vsel %vm1719, %v1664, %v1666
    %v1723 = vsel %vm1719, %v1668, %v1670
    %v1724 = vsel %vm1719, %v1672, %v1674
    %v1725 = vsel %vm1719, %v1676, %v1678
    %v1726 = vsel %vm1719, %v1680, %v1682
    %v1727 = vsel %vm1719, %v1684, %v1686
    %v1728 = vsel %vm1719, %v1688, %v1690
    %v1729 = vsel %vm1719, %v1692, %v1694
    %v1730 = vsel %vm1719, %v1696, %v1698
    %v1731 = vsel %vm1719, %v1700, %v1702
    %v1732 = vsel %vm1719, %v1704, %v1706
    %v1733 = vsel %vm1719, %v1708, %v1710
    %v1734 = vsel %vm1719, %v1712, %v1714
    %v1735 = vsel %vm1719, %v1716, %v1718
    %v1752 = vld [vmem:[%s5] sm:$0xff]
    %v1753 = vld [vmem:[%s5 + $0x8] sm:$0xff]
    %v1754 = vld [vmem:[%s5 + $0x10] sm:$0xff]
    %v1755 = vld [vmem:[%s5 + $0x18] sm:$0xff]
    %v1756 = vld [vmem:[%s5 + $0x20] sm:$0xff]
    %v1757 = vld [vmem:[%s5 + $0x28] sm:$0xff]
    %v1758 = vld [vmem:[%s5 + $0x30] sm:$0xff]
    %v1759 = vld [vmem:[%s5 + $0x38] sm:$0xff]
    %v1760 = vld [vmem:[%s5 + $0x40] sm:$0xff]
    %v1761 = vld [vmem:[%s5 + $0x48] sm:$0xff]
    %v1762 = vld [vmem:[%s5 + $0x50] sm:$0xff]
    %v1763 = vld [vmem:[%s5 + $0x58] sm:$0xff]
    %v1764 = vld [vmem:[%s5 + $0x60] sm:$0xff]
    %v1765 = vld [vmem:[%s5 + $0x68] sm:$0xff]
    %v1766 = vld [vmem:[%s5 + $0x70] sm:$0xff]
    %v1767 = vld [vmem:[%s5 + $0x78] sm:$0xff]
    %v1768 = vld [vmem:[%s5 + $0x80] sm:$0xff]
    %v1769 = vld [vmem:[%s5 + $0x88] sm:$0xff]
    %v1770 = vld [vmem:[%s5 + $0x90] sm:$0xff]
    %v1771 = vld [vmem:[%s5 + $0x98] sm:$0xff]
    %v1772 = vld [vmem:[%s5 + $0xa0] sm:$0xff]
    %v1773 = vld [vmem:[%s5 + $0xa8] sm:$0xff]
    %v1774 = vld [vmem:[%s5 + $0xb0] sm:$0xff]
    %v1775 = vld [vmem:[%s5 + $0xb8] sm:$0xff]
    %v1776 = vld [vmem:[%s5 + $0xc0] sm:$0xff]
    %v1777 = vld [vmem:[%s5 + $0xc8] sm:$0xff]
    %v1778 = vld [vmem:[%s5 + $0xd0] sm:$0xff]
    %v1779 = vld [vmem:[%s5 + $0xd8] sm:$0xff]
    %v1780 = vld [vmem:[%s5 + $0xe0] sm:$0xff]
    %v1781 = vld [vmem:[%s5 + $0xe8] sm:$0xff]
    %v1782 = vld [vmem:[%s5 + $0xf0] sm:$0xff]
    %v1783 = vld [vmem:[%s5 + $0xf8] sm:$0xff]
    %v1784 = vld [vmem:[%s5 + $0x100] sm:$0xff]
    %v1785 = vld [vmem:[%s5 + $0x108] sm:$0xff]
    %v1786 = vld [vmem:[%s5 + $0x110] sm:$0xff]
    %v1787 = vld [vmem:[%s5 + $0x118] sm:$0xff]
    %v1788 = vld [vmem:[%s5 + $0x120] sm:$0xff]
    %v1789 = vld [vmem:[%s5 + $0x128] sm:$0xff]
    %v1790 = vld [vmem:[%s5 + $0x130] sm:$0xff]
    %v1791 = vld [vmem:[%s5 + $0x138] sm:$0xff]
    %v1792 = vld [vmem:[%s5 + $0x140] sm:$0xff]
    %v1793 = vld [vmem:[%s5 + $0x148] sm:$0xff]
    %v1794 = vld [vmem:[%s5 + $0x150] sm:$0xff]
    %v1795 = vld [vmem:[%s5 + $0x158] sm:$0xff]
    %v1796 = vld [vmem:[%s5 + $0x160] sm:$0xff]
    %v1797 = vld [vmem:[%s5 + $0x168] sm:$0xff]
    %v1798 = vld [vmem:[%s5 + $0x170] sm:$0xff]
    %v1799 = vld [vmem:[%s5 + $0x178] sm:$0xff]
    %v1800 = vld [vmem:[%s5 + $0x180] sm:$0xff]
    %v1801 = vld [vmem:[%s5 + $0x188] sm:$0xff]
    %v1802 = vld [vmem:[%s5 + $0x190] sm:$0xff]
    %v1803 = vld [vmem:[%s5 + $0x198] sm:$0xff]
    %v1804 = vld [vmem:[%s5 + $0x1a0] sm:$0xff]
    %v1805 = vld [vmem:[%s5 + $0x1a8] sm:$0xff]
    %v1806 = vld [vmem:[%s5 + $0x1b0] sm:$0xff]
    %v1807 = vld [vmem:[%s5 + $0x1b8] sm:$0xff]
    %1808 = vmatprep.subr.mxu0 0.0
    %1809 = vmatpush1.msra.mxu0 %v797
    %1810 = vmatprep.subr.mxu0 0.0
    %1811 = vmatpush1.msra.mxu0 %v791
    %1812 = vmatprep.subr.mxu0 0.0
    %1813 = vmatpush1.msra.mxu0 %v785
    %1814 = vmatprep.subr.mxu0 0.0
    %1815 = vmatpush1.msra.mxu0 %v779
    %1816 = vmatprep.subr.mxu0 0.0
    %1817 = vmatpush1.msra.mxu0 %v773
    %1818 = vmatprep.subr.mxu0 0.0
    %1819 = vmatpush1.msra.mxu0 %v767
    %1820 = vmatprep.subr.mxu0 0.0
    %1821 = vmatpush1.msra.mxu0 %v761
    %1822 = vmatprep.subr.mxu0 0.0
    %1823 = vmatpush1.msra.mxu0 %v755
    %1824 = vmatprep.subr.mxu0 0.0
    %1825 = vmatpush1.msra.mxu0 %v749
    %1826 = vmatprep.subr.mxu0 0.0
    %1827 = vmatpush1.msra.mxu0 %v743
    %1828 = vmatprep.subr.mxu0 0.0
    %1829 = vmatpush1.msra.mxu0 %v737
    %1830 = vmatprep.subr.mxu0 0.0
    %1831 = vmatpush1.msra.mxu0 %v731
    %1832 = vmatprep.subr.mxu0 0.0
    %1833 = vmatpush1.msra.mxu0 %v725
    %1834 = vmatprep.subr.mxu0 0.0
    %1835 = vmatpush1.msra.mxu0 %v719
    %1836 = vmatprep.subr.mxu0 0.0
    %1837 = vmatpush1.msra.mxu0 %v713
    %1838 = vmatprep.subr.mxu0 0.0
    %1839 = vmatpush1.msra.mxu0 %v707
    %1840 = vmatprep.subr.mxu0 0.0
    %1841 = vmatpush2.msra.mxu0 %v1235
    %1842 = vmatprep.subr.mxu0 0.0
    %1843 = vmatpush2.msra.mxu0 %v1234
    %1844 = vmatprep.subr.mxu0 0.0
    %1845 = vmatpush2.msra.mxu0 %v1233
    %1846 = vmatprep.subr.mxu0 0.0
    %1847 = vmatpush2.msra.mxu0 %v1232
    %1848 = vmatprep.subr.mxu0 0.0
    %1849 = vmatpush2.msra.mxu0 %v1231
    %1850 = vmatprep.subr.mxu0 0.0
    %1851 = vmatpush2.msra.mxu0 %v1230
    %1852 = vmatprep.subr.mxu0 0.0
    %1853 = vmatpush2.msra.mxu0 %v1229
    %1854 = vmatprep.subr.mxu0 0.0
    %1855 = vmatpush2.msra.mxu0 %v1228
    %1856 = vmatprep.subr.mxu0 0.0
    %1857 = vmatpush2.msra.mxu0 %v1227
    %1858 = vmatprep.subr.mxu0 0.0
    %1859 = vmatpush2.msra.mxu0 %v1226
    %1860 = vmatprep.subr.mxu0 0.0
    %1861 = vmatpush2.msra.mxu0 %v1225
    %1862 = vmatprep.subr.mxu0 0.0
    %1863 = vmatpush2.msra.mxu0 %v1224
    %1864 = vmatprep.subr.mxu0 0.0
    %1865 = vmatpush2.msra.mxu0 %v1223
    %1866 = vmatprep.subr.mxu0 0.0
    %1867 = vmatpush2.msra.mxu0 %v1222
    %1868 = vmatprep.subr.mxu0 0.0
    %1869 = vmatpush2.msra.mxu0 %v1221
    %1870 = vmatprep.subr.mxu0 0.0
    %1871 = vmatpush2.msra.mxu0 %v1220
    %1872 = vmatprep.mubr.f32.mxu0 %v1753
    %1873 = vmatmul.mubr.f32.gmra.mxu0 %v1752
    %v1874 = vpop.f32.mrf.mxu0
    %v1875 = vadd.f32 0.0, %v1874
    %v1876 = vpop.f32.mrf.mxu0
    %1877 = vmatprep.mubr.f32.mxu0 %v1760
    %1878 = vmatmul.mubr.f32.gmra.mxu0 %v1759
    %v1879 = vpop.f32.mrf.mxu0
    %v1880 = vadd.f32 0.0, %v1879
    %v1881 = vpop.f32.mrf.mxu0
    %1882 = vmatprep.mubr.f32.mxu0 %v1767
    %1883 = vmatmul.mubr.f32.gmra.mxu0 %v1766
    %v1884 = vpop.f32.mrf.mxu0
    %v1885 = vadd.f32 0.0, %v1884
    %v1886 = vpop.f32.mrf.mxu0
    %1887 = vmatprep.mubr.f32.mxu0 %v1774
    %1888 = vmatmul.mubr.f32.gmra.mxu0 %v1773
    %v1889 = vpop.f32.mrf.mxu0
    %v1890 = vadd.f32 0.0, %v1889
    %v1891 = vpop.f32.mrf.mxu0
    %1892 = vmatprep.mubr.f32.mxu0 %v1781
    %1893 = vmatmul.mubr.f32.gmra.mxu0 %v1780
    %v1894 = vpop.f32.mrf.mxu0
    %v1895 = vadd.f32 0.0, %v1894
    %v1896 = vpop.f32.mrf.mxu0
    %1897 = vmatprep.mubr.f32.mxu0 %v1788
    %1898 = vmatmul.mubr.f32.gmra.mxu0 %v1787
    %v1899 = vpop.f32.mrf.mxu0
    %v1900 = vadd.f32 0.0, %v1899
    %v1901 = vpop.f32.mrf.mxu0
    %1902 = vmatprep.mubr.f32.mxu0 %v1795
    %1903 = vmatmul.mubr.f32.gmra.mxu0 %v1794
    %v1904 = vpop.f32.mrf.mxu0
    %v1905 = vadd.f32 0.0, %v1904
    %v1906 = vpop.f32.mrf.mxu0
    %1907 = vmatprep.mubr.f32.mxu0 %v1802
    %1908 = vmatmul.mubr.f32.gmra.mxu0 %v1801
    %v1909 = vpop.f32.mrf.mxu0
    %v1910 = vadd.f32 0.0, %v1909
    %v1911 = vpop.f32.mrf.mxu0
    %1912 = vdwg.mxu0
    %1913 = vmatprep.subr.mxu0 0.0
    %1914 = vmatpush1.msra.mxu0 %v1348
    %1915 = vmatprep.subr.mxu0 0.0
    %1916 = vmatpush1.msra.mxu0 %v1347
    %1917 = vmatprep.subr.mxu0 0.0
    %1918 = vmatpush1.msra.mxu0 %v1346
    %1919 = vmatprep.subr.mxu0 0.0
    %1920 = vmatpush1.msra.mxu0 %v1345
    %1921 = vmatprep.subr.mxu0 0.0
    %1922 = vmatpush1.msra.mxu0 %v1344
    %1923 = vmatprep.subr.mxu0 0.0
    %1924 = vmatpush1.msra.mxu0 %v1343
    %1925 = vmatprep.subr.mxu0 0.0
    %1926 = vmatpush1.msra.mxu0 %v1342
    %1927 = vmatprep.subr.mxu0 0.0
    %1928 = vmatpush1.msra.mxu0 %v1341
    %1929 = vmatprep.subr.mxu0 0.0
    %1930 = vmatpush1.msra.mxu0 %v1340
    %1931 = vmatprep.subr.mxu0 0.0
    %1932 = vmatpush1.msra.mxu0 %v1339
    %1933 = vmatprep.subr.mxu0 0.0
    %1934 = vmatpush1.msra.mxu0 %v1338
    %1935 = vmatprep.subr.mxu0 0.0
    %1936 = vmatpush1.msra.mxu0 %v1337
    %1937 = vmatprep.subr.mxu0 0.0
    %1938 = vmatpush1.msra.mxu0 %v1336
    %1939 = vmatprep.subr.mxu0 0.0
    %1940 = vmatpush1.msra.mxu0 %v1335
    %1941 = vmatprep.subr.mxu0 0.0
    %1942 = vmatpush1.msra.mxu0 %v1334
    %1943 = vmatprep.subr.mxu0 0.0
    %1944 = vmatpush1.msra.mxu0 %v1333
    %1945 = vmatprep.subr.mxu0 0.0
    %1946 = vmatpush2.msra.mxu0 %v1396
    %1947 = vmatprep.subr.mxu0 0.0
    %1948 = vmatpush2.msra.mxu0 %v1394
    %1949 = vmatprep.subr.mxu0 0.0
    %1950 = vmatpush2.msra.mxu0 %v1392
    %1951 = vmatprep.subr.mxu0 0.0
    %1952 = vmatpush2.msra.mxu0 %v1390
    %1953 = vmatprep.subr.mxu0 0.0
    %1954 = vmatpush2.msra.mxu0 %v1388
    %1955 = vmatprep.subr.mxu0 0.0
    %1956 = vmatpush2.msra.mxu0 %v1386
    %1957 = vmatprep.subr.mxu0 0.0
    %1958 = vmatpush2.msra.mxu0 %v1384
    %1959 = vmatprep.subr.mxu0 0.0
    %1960 = vmatpush2.msra.mxu0 %v1382
    %1961 = vmatprep.subr.mxu0 0.0
    %1962 = vmatpush2.msra.mxu0 %v1380
    %1963 = vmatprep.subr.mxu0 0.0
    %1964 = vmatpush2.msra.mxu0 %v1378
    %1965 = vmatprep.subr.mxu0 0.0
    %1966 = vmatpush2.msra.mxu0 %v1376
    %1967 = vmatprep.subr.mxu0 0.0
    %1968 = vmatpush2.msra.mxu0 %v1374
    %1969 = vmatprep.subr.mxu0 0.0
    %1970 = vmatpush2.msra.mxu0 %v1372
    %1971 = vmatprep.subr.mxu0 0.0
    %1972 = vmatpush2.msra.mxu0 %v1370
    %1973 = vmatprep.subr.mxu0 0.0
    %1974 = vmatpush2.msra.mxu0 %v1368
    %1975 = vmatprep.subr.mxu0 0.0
    %1976 = vmatpush2.msra.mxu0 %v1366
    %1977 = vmatprep.mubr.f32.mxu0 %v1755
    %1978 = vmatmul.mubr.f32.gmra.mxu0 %v1754
    %v1979 = vpop.f32.mrf.mxu0
    %v1980 = vadd.f32 %v1875, %v1979
    %v1981 = vpop.f32.mrf.mxu0
    %1982 = vmatprep.mubr.f32.mxu0 %v1762
    %1983 = vmatmul.mubr.f32.gmra.mxu0 %v1761
    %v1984 = vpop.f32.mrf.mxu0
    %v1985 = vadd.f32 %v1880, %v1984
    %v1986 = vpop.f32.mrf.mxu0
    %1987 = vmatprep.mubr.f32.mxu0 %v1769
    %1988 = vmatmul.mubr.f32.gmra.mxu0 %v1768
    %v1989 = vpop.f32.mrf.mxu0
    %v1990 = vadd.f32 %v1885, %v1989
    %v1991 = vpop.f32.mrf.mxu0
    %1992 = vmatprep.mubr.f32.mxu0 %v1776
    %1993 = vmatmul.mubr.f32.gmra.mxu0 %v1775
    %v1994 = vpop.f32.mrf.mxu0
    %v1995 = vadd.f32 %v1890, %v1994
    %v1996 = vpop.f32.mrf.mxu0
    %1997 = vmatprep.mubr.f32.mxu0 %v1783
    %1998 = vmatmul.mubr.f32.gmra.mxu0 %v1782
    %v1999 = vpop.f32.mrf.mxu0
    %v2000 = vadd.f32 %v1895, %v1999
    %v2001 = vpop.f32.mrf.mxu0
    %2002 = vmatprep.mubr.f32.mxu0 %v1790
    %2003 = vmatmul.mubr.f32.gmra.mxu0 %v1789
    %v2004 = vpop.f32.mrf.mxu0
    %v2005 = vadd.f32 %v1900, %v2004
    %v2006 = vpop.f32.mrf.mxu0
    %2007 = vmatprep.mubr.f32.mxu0 %v1797
    %2008 = vmatmul.mubr.f32.gmra.mxu0 %v1796
    %v2009 = vpop.f32.mrf.mxu0
    %v2010 = vadd.f32 %v1905, %v2009
    %v2011 = vpop.f32.mrf.mxu0
    %2012 = vmatprep.mubr.f32.mxu0 %v1804
    %2013 = vmatmul.mubr.f32.gmra.mxu0 %v1803
    %v2014 = vpop.f32.mrf.mxu0
    %v2015 = vadd.f32 %v1910, %v2014
    %v2016 = vpop.f32.mrf.mxu0
    %2017 = vdwg.mxu0
    %2018 = vmatprep.subr.mxu0 0.0
    %2019 = vmatpush1.msra.mxu0 %v1509
    %2020 = vmatprep.subr.mxu0 0.0
    %2021 = vmatpush1.msra.mxu0 %v1508
    %2022 = vmatprep.subr.mxu0 0.0
    %2023 = vmatpush1.msra.mxu0 %v1507
    %2024 = vmatprep.subr.mxu0 0.0
    %2025 = vmatpush1.msra.mxu0 %v1506
    %2026 = vmatprep.subr.mxu0 0.0
    %2027 = vmatpush1.msra.mxu0 %v1505
    %2028 = vmatprep.subr.mxu0 0.0
    %2029 = vmatpush1.msra.mxu0 %v1504
    %2030 = vmatprep.subr.mxu0 0.0
    %2031 = vmatpush1.msra.mxu0 %v1503
    %2032 = vmatprep.subr.mxu0 0.0
    %2033 = vmatpush1.msra.mxu0 %v1502
    %2034 = vmatprep.subr.mxu0 0.0
    %2035 = vmatpush1.msra.mxu0 %v1501
    %2036 = vmatprep.subr.mxu0 0.0
    %2037 = vmatpush1.msra.mxu0 %v1500
    %2038 = vmatprep.subr.mxu0 0.0
    %2039 = vmatpush1.msra.mxu0 %v1499
    %2040 = vmatprep.subr.mxu0 0.0
    %2041 = vmatpush1.msra.mxu0 %v1498
    %2042 = vmatprep.subr.mxu0 0.0
    %2043 = vmatpush1.msra.mxu0 %v1497
    %2044 = vmatprep.subr.mxu0 0.0
    %2045 = vmatpush1.msra.mxu0 %v1496
    %2046 = vmatprep.subr.mxu0 0.0
    %2047 = vmatpush1.msra.mxu0 %v1495
    %2048 = vmatprep.subr.mxu0 0.0
    %2049 = vmatpush1.msra.mxu0 %v1494
    %2050 = vmatprep.subr.mxu0 0.0
    %2051 = vmatpush2.msra.mxu0 %v1622
    %2052 = vmatprep.subr.mxu0 0.0
    %2053 = vmatpush2.msra.mxu0 %v1621
    %2054 = vmatprep.subr.mxu0 0.0
    %2055 = vmatpush2.msra.mxu0 %v1620
    %2056 = vmatprep.subr.mxu0 0.0
    %2057 = vmatpush2.msra.mxu0 %v1619
    %2058 = vmatprep.subr.mxu0 0.0
    %2059 = vmatpush2.msra.mxu0 %v1618
    %2060 = vmatprep.subr.mxu0 0.0
    %2061 = vmatpush2.msra.mxu0 %v1617
    %2062 = vmatprep.subr.mxu0 0.0
    %2063 = vmatpush2.msra.mxu0 %v1616
    %2064 = vmatprep.subr.mxu0 0.0
    %2065 = vmatpush2.msra.mxu0 %v1615
    %2066 = vmatprep.subr.mxu0 0.0
    %2067 = vmatpush2.msra.mxu0 %v1614
    %2068 = vmatprep.subr.mxu0 0.0
    %2069 = vmatpush2.msra.mxu0 %v1613
    %2070 = vmatprep.subr.mxu0 0.0
    %2071 = vmatpush2.msra.mxu0 %v1612
    %2072 = vmatprep.subr.mxu0 0.0
    %2073 = vmatpush2.msra.mxu0 %v1611
    %2074 = vmatprep.subr.mxu0 0.0
    %2075 = vmatpush2.msra.mxu0 %v1610
    %2076 = vmatprep.subr.mxu0 0.0
    %2077 = vmatpush2.msra.mxu0 %v1609
    %2078 = vmatprep.subr.mxu0 0.0
    %2079 = vmatpush2.msra.mxu0 %v1608
    %2080 = vmatprep.subr.mxu0 0.0
    %2081 = vmatpush2.msra.mxu0 %v1607
    %2082 = vmatprep.mubr.f32.mxu0 %v1757
    %2083 = vmatmul.mubr.f32.gmra.mxu0 %v1756
    %v2084 = vpop.f32.mrf.mxu0
    %v2085 = vadd.f32 %v1980, %v2084
    %v2086 = vpop.f32.mrf.mxu0
    %2087 = vmatprep.mubr.f32.mxu0 %v1764
    %2088 = vmatmul.mubr.f32.gmra.mxu0 %v1763
    %v2089 = vpop.f32.mrf.mxu0
    %v2090 = vadd.f32 %v1985, %v2089
    %v2091 = vpop.f32.mrf.mxu0
    %2092 = vmatprep.mubr.f32.mxu0 %v1771
    %2093 = vmatmul.mubr.f32.gmra.mxu0 %v1770
    %v2094 = vpop.f32.mrf.mxu0
    %v2095 = vadd.f32 %v1990, %v2094
    %v2096 = vpop.f32.mrf.mxu0
    %2097 = vmatprep.mubr.f32.mxu0 %v1778
    %2098 = vmatmul.mubr.f32.gmra.mxu0 %v1777
    %v2099 = vpop.f32.mrf.mxu0
    %v2100 = vadd.f32 %v1995, %v2099
    %v2101 = vpop.f32.mrf.mxu0
    %2102 = vmatprep.mubr.f32.mxu0 %v1785
    %2103 = vmatmul.mubr.f32.gmra.mxu0 %v1784
    %v2104 = vpop.f32.mrf.mxu0
    %v2105 = vadd.f32 %v2000, %v2104
    %v2106 = vpop.f32.mrf.mxu0
    %2107 = vmatprep.mubr.f32.mxu0 %v1792
    %2108 = vmatmul.mubr.f32.gmra.mxu0 %v1791
    %v2109 = vpop.f32.mrf.mxu0
    %v2110 = vadd.f32 %v2005, %v2109
    %v2111 = vpop.f32.mrf.mxu0
    %2112 = vmatprep.mubr.f32.mxu0 %v1799
    %2113 = vmatmul.mubr.f32.gmra.mxu0 %v1798
    %v2114 = vpop.f32.mrf.mxu0
    %v2115 = vadd.f32 %v2010, %v2114
    %v2116 = vpop.f32.mrf.mxu0
    %2117 = vmatprep.mubr.f32.mxu0 %v1806
    %2118 = vmatmul.mubr.f32.gmra.mxu0 %v1805
    %v2119 = vpop.f32.mrf.mxu0
    %v2120 = vadd.f32 %v2015, %v2119
    %v2121 = vpop.f32.mrf.mxu0
    %2122 = vdwg.mxu0
    %2123 = vmatprep.subr.mxu0 0.0
    %2124 = vmatpush1.msra.mxu0 %v1735
    %2125 = vmatprep.subr.mxu0 0.0
    %2126 = vmatpush1.msra.mxu0 %v1734
    %2127 = vmatprep.subr.mxu0 0.0
    %2128 = vmatpush1.msra.mxu0 %v1733
    %2129 = vmatprep.subr.mxu0 0.0
    %2130 = vmatpush1.msra.mxu0 %v1732
    %2131 = vmatprep.subr.mxu0 0.0
    %2132 = vmatpush1.msra.mxu0 %v1731
    %2133 = vmatprep.subr.mxu0 0.0
    %2134 = vmatpush1.msra.mxu0 %v1730
    %2135 = vmatprep.subr.mxu0 0.0
    %2136 = vmatpush1.msra.mxu0 %v1729
    %2137 = vmatprep.subr.mxu0 0.0
    %2138 = vmatpush1.msra.mxu0 %v1728
    %2139 = vmatprep.subr.mxu0 0.0
    %2140 = vmatpush1.msra.mxu0 %v1727
    %2141 = vmatprep.subr.mxu0 0.0
    %2142 = vmatpush1.msra.mxu0 %v1726
    %2143 = vmatprep.subr.mxu0 0.0
    %2144 = vmatpush1.msra.mxu0 %v1725
    %2145 = vmatprep.subr.mxu0 0.0
    %2146 = vmatpush1.msra.mxu0 %v1724
    %2147 = vmatprep.subr.mxu0 0.0
    %2148 = vmatpush1.msra.mxu0 %v1723
    %2149 = vmatprep.subr.mxu0 0.0
    %2150 = vmatpush1.msra.mxu0 %v1722
    %2151 = vmatprep.subr.mxu0 0.0
    %2152 = vmatpush1.msra.mxu0 %v1721
    %2153 = vmatprep.subr.mxu0 0.0
    %2154 = vmatpush1.msra.mxu0 %v1720
    %2155 = vmatprep.subr.mxu0 0.0
    %2156 = vmatpush2.msra.mxu0 0.0
    %2157 = vmatprep.subr.mxu0 0.0
    %2158 = vmatpush2.msra.mxu0 0.0
    %2159 = vmatprep.subr.mxu0 0.0
    %2160 = vmatpush2.msra.mxu0 0.0
    %2161 = vmatprep.subr.mxu0 0.0
    %2162 = vmatpush2.msra.mxu0 0.0
    %2163 = vmatprep.subr.mxu0 0.0
    %2164 = vmatpush2.msra.mxu0 0.0
    %2165 = vmatprep.subr.mxu0 0.0
    %2166 = vmatpush2.msra.mxu0 0.0
    %2167 = vmatprep.subr.mxu0 0.0
    %2168 = vmatpush2.msra.mxu0 0.0
    %2169 = vmatprep.subr.mxu0 0.0
    %2170 = vmatpush2.msra.mxu0 0.0
    %2171 = vmatprep.subr.mxu0 0.0
    %2172 = vmatpush2.msra.mxu0 0.0
    %2173 = vmatprep.subr.mxu0 0.0
    %2174 = vmatpush2.msra.mxu0 0.0
    %2175 = vmatprep.subr.mxu0 0.0
    %2176 = vmatpush2.msra.mxu0 0.0
    %2177 = vmatprep.subr.mxu0 0.0
    %2178 = vmatpush2.msra.mxu0 0.0
    %2179 = vmatprep.subr.mxu0 0.0
    %2180 = vmatpush2.msra.mxu0 0.0
    %2181 = vmatprep.subr.mxu0 0.0
    %2182 = vmatpush2.msra.mxu0 0.0
    %2183 = vmatprep.subr.mxu0 0.0
    %2184 = vmatpush2.msra.mxu0 0.0
    %2185 = vmatprep.subr.mxu0 0.0
    %2186 = vmatpush2.msra.mxu0 0.0
    %2187 = vmatprep.mubr.f32.mxu0 0.0
    %2188 = vmatmul.mubr.f32.gmra.mxu0 %v1758
    %v2189 = vpop.f32.mrf.mxu0
    %v2190 = vadd.f32 %v2085, %v2189
    %v2191 = vpop.f32.mrf.mxu0
    %2192 = vmatprep.mubr.f32.mxu0 0.0
    %2193 = vmatmul.mubr.f32.gmra.mxu0 %v1765
    %v2194 = vpop.f32.mrf.mxu0
    %v2195 = vadd.f32 %v2090, %v2194
    %v2196 = vpop.f32.mrf.mxu0
    %2197 = vmatprep.mubr.f32.mxu0 0.0
    %2198 = vmatmul.mubr.f32.gmra.mxu0 %v1772
    %v2199 = vpop.f32.mrf.mxu0
    %v2200 = vadd.f32 %v2095, %v2199
    %v2201 = vpop.f32.mrf.mxu0
    %2202 = vmatprep.mubr.f32.mxu0 0.0
    %2203 = vmatmul.mubr.f32.gmra.mxu0 %v1779
    %v2204 = vpop.f32.mrf.mxu0
    %v2205 = vadd.f32 %v2100, %v2204
    %v2206 = vpop.f32.mrf.mxu0
    %2207 = vmatprep.mubr.f32.mxu0 0.0
    %2208 = vmatmul.mubr.f32.gmra.mxu0 %v1786
    %v2209 = vpop.f32.mrf.mxu0
    %v2210 = vadd.f32 %v2105, %v2209
    %v2211 = vpop.f32.mrf.mxu0
    %2212 = vmatprep.mubr.f32.mxu0 0.0
    %2213 = vmatmul.mubr.f32.gmra.mxu0 %v1793
    %v2214 = vpop.f32.mrf.mxu0
    %v2215 = vadd.f32 %v2110, %v2214
    %v2216 = vpop.f32.mrf.mxu0
    %2217 = vmatprep.mubr.f32.mxu0 0.0
    %2218 = vmatmul.mubr.f32.gmra.mxu0 %v1800
    %v2219 = vpop.f32.mrf.mxu0
    %v2220 = vadd.f32 %v2115, %v2219
    %v2221 = vpop.f32.mrf.mxu0
    %2222 = vmatprep.mubr.f32.mxu0 0.0
    %2223 = vmatmul.mubr.f32.gmra.mxu0 %v1807
    %v2224 = vpop.f32.mrf.mxu0
    %v2225 = vadd.f32 %v2120, %v2224
    %v2226 = vpop.f32.mrf.mxu0
    %2227 = vdwg.mxu0
    %v2228 = vld [vmem:[#allocation4] sm:$0xff]
    %v2229 = vld [vmem:[#allocation4 + $0x8] sm:$0xff]
    %v2230 = vld [vmem:[#allocation4 + $0x10] sm:$0xff]
    %v2231 = vld [vmem:[#allocation4 + $0x18] sm:$0xff]
    %v2232 = vld [vmem:[#allocation4 + $0x20] sm:$0xff]
    %v2233 = vld [vmem:[#allocation4 + $0x28] sm:$0xff]
    %v2234 = vld [vmem:[#allocation4 + $0x30] sm:$0xff]
    %v2235 = vld [vmem:[#allocation4 + $0x38] sm:$0xff]
    %2237 = vset.pattern.permute.xlu0 0
    %2238 = vperm.xlu0 %2237, %v2228
    %v2239 = vpop.permute.xlu0 %2238
    %2242 = vset.pattern.permute.xlu0 0
    %2243 = vperm.xlu0 %2242, %v2229
    %v2244 = vpop.permute.xlu0 %2243
    %2247 = vset.pattern.permute.xlu0 0
    %2248 = vperm.xlu0 %2247, %v2230
    %v2249 = vpop.permute.xlu0 %2248
    %2252 = vset.pattern.permute.xlu0 0
    %2253 = vperm.xlu0 %2252, %v2231
    %v2254 = vpop.permute.xlu0 %2253
    %2257 = vset.pattern.permute.xlu0 0
    %2258 = vperm.xlu0 %2257, %v2232
    %v2259 = vpop.permute.xlu0 %2258
    %2262 = vset.pattern.permute.xlu0 0
    %2263 = vperm.xlu0 %2262, %v2233
    %v2264 = vpop.permute.xlu0 %2263
    %2267 = vset.pattern.permute.xlu0 0
    %2268 = vperm.xlu0 %2267, %v2234
    %v2269 = vpop.permute.xlu0 %2268
    %2272 = vset.pattern.permute.xlu0 0
    %2273 = vperm.xlu0 %2272, %v2235
    %v2274 = vpop.permute.xlu0 %2273
    %v2276 = vmul.f32 %v2190, %v2239
    %v2277 = vmul.f32 %v2195, %v2244
    %v2278 = vmul.f32 %v2200, %v2249
    %v2279 = vmul.f32 %v2205, %v2254
    %v2280 = vmul.f32 %v2210, %v2259
    %v2281 = vmul.f32 %v2215, %v2264
    %v2282 = vmul.f32 %v2220, %v2269
    %v2283 = vmul.f32 %v2225, %v2274
    %v2284 = vld [vmem:[#allocation6] sm:$0xff]
    %v2285 = vld [vmem:[#allocation6 + $0x8] sm:$0xff]
    %v2286 = vld [vmem:[#allocation6 + $0x10] sm:$0xff]
    %v2287 = vld [vmem:[#allocation6 + $0x18] sm:$0xff]
    %v2288 = vld [vmem:[#allocation6 + $0x20] sm:$0xff]
    %v2289 = vld [vmem:[#allocation6 + $0x28] sm:$0xff]
    %v2290 = vld [vmem:[#allocation6 + $0x30] sm:$0xff]
    %v2291 = vld [vmem:[#allocation6 + $0x38] sm:$0xff]
    %2293 = vset.pattern.permute.xlu0 0
    %2294 = vperm.xlu0 %2293, %v2284
    %v2295 = vpop.permute.xlu0 %2294
    %2298 = vset.pattern.permute.xlu0 0
    %2299 = vperm.xlu0 %2298, %v2285
    %v2300 = vpop.permute.xlu0 %2299
    %2303 = vset.pattern.permute.xlu0 0
    %2304 = vperm.xlu0 %2303, %v2286
    %v2305 = vpop.permute.xlu0 %2304
    %2308 = vset.pattern.permute.xlu0 0
    %2309 = vperm.xlu0 %2308, %v2287
    %v2310 = vpop.permute.xlu0 %2309
    %2313 = vset.pattern.permute.xlu0 0
    %2314 = vperm.xlu0 %2313, %v2288
    %v2315 = vpop.permute.xlu0 %2314
    %2318 = vset.pattern.permute.xlu0 0
    %2319 = vperm.xlu0 %2318, %v2289
    %v2320 = vpop.permute.xlu0 %2319
    %2323 = vset.pattern.permute.xlu0 0
    %2324 = vperm.xlu0 %2323, %v2290
    %v2325 = vpop.permute.xlu0 %2324
    %2328 = vset.pattern.permute.xlu0 0
    %2329 = vperm.xlu0 %2328, %v2291
    %v2330 = vpop.permute.xlu0 %2329
    %v2332 = vadd.f32 %v2276, %v2295
    %v2333 = vadd.f32 %v2277, %v2300
    %v2334 = vadd.f32 %v2278, %v2305
    %v2335 = vadd.f32 %v2279, %v2310
    %v2336 = vadd.f32 %v2280, %v2315
    %v2337 = vadd.f32 %v2281, %v2320
    %v2338 = vadd.f32 %v2282, %v2325
    %v2339 = vadd.f32 %v2283, %v2330
    %v2340 = vmax.f32 %v2332, 0.0
    %v2341 = vmax.f32 %v2333, 0.0
    %v2342 = vmax.f32 %v2334, 0.0
    %v2343 = vmax.f32 %v2335, 0.0
    %v2344 = vmax.f32 %v2336, 0.0
    %v2345 = vmax.f32 %v2337, 0.0
    %v2346 = vmax.f32 %v2338, 0.0
    %v2347 = vmax.f32 %v2339, 0.0
    %v2348 = vld [vmem:[#allocation7] sm:$0xff]
    %v2349 = vld [vmem:[#allocation7 + $0x8] sm:$0xff]
    %v2350 = vld [vmem:[#allocation7 + $0x10] sm:$0xff]
    %v2351 = vld [vmem:[#allocation7 + $0x18] sm:$0xff]
    %v2352 = vld [vmem:[#allocation7 + $0x20] sm:$0xff]
    %v2353 = vld [vmem:[#allocation7 + $0x28] sm:$0xff]
    %v2354 = vld [vmem:[#allocation7 + $0x30] sm:$0xff]
    %v2355 = vld [vmem:[#allocation7 + $0x38] sm:$0xff]
    %v2356 = vld [vmem:[#allocation7 + $0x40] sm:$0xff]
    %v2357 = vld [vmem:[#allocation7 + $0x48] sm:$0xff]
    %v2358 = vld [vmem:[#allocation7 + $0x50] sm:$0xff]
    %v2359 = vld [vmem:[#allocation7 + $0x58] sm:$0xff]
    %v2360 = vld [vmem:[#allocation7 + $0x60] sm:$0xff]
    %v2361 = vld [vmem:[#allocation7 + $0x68] sm:$0xff]
    %v2362 = vld [vmem:[#allocation7 + $0x70] sm:$0xff]
    %v2363 = vld [vmem:[#allocation7 + $0x78] sm:$0xff]
    %v2364 = vld [vmem:[#allocation7 + $0x80] sm:$0xff]
    %v2365 = vld [vmem:[#allocation7 + $0x88] sm:$0xff]
    %v2366 = vld [vmem:[#allocation7 + $0x90] sm:$0xff]
    %v2367 = vld [vmem:[#allocation7 + $0x98] sm:$0xff]
    %v2368 = vld [vmem:[#allocation7 + $0xa0] sm:$0xff]
    %v2369 = vld [vmem:[#allocation7 + $0xa8] sm:$0xff]
    %v2370 = vld [vmem:[#allocation7 + $0xb0] sm:$0xff]
    %v2371 = vld [vmem:[#allocation7 + $0xb8] sm:$0xff]
    %v2372 = vld [vmem:[#allocation7 + $0xc0] sm:$0xff]
    %v2373 = vld [vmem:[#allocation7 + $0xc8] sm:$0xff]
    %v2374 = vld [vmem:[#allocation7 + $0xd0] sm:$0xff]
    %v2375 = vld [vmem:[#allocation7 + $0xd8] sm:$0xff]
    %v2376 = vld [vmem:[#allocation7 + $0xe0] sm:$0xff]
    %v2377 = vld [vmem:[#allocation7 + $0xe8] sm:$0xff]
    %v2378 = vld [vmem:[#allocation7 + $0xf0] sm:$0xff]
    %v2379 = vld [vmem:[#allocation7 + $0xf8] sm:$0xff]
    %v2380 = vld [vmem:[#allocation7 + $0x100] sm:$0xff]
    %v2381 = vld [vmem:[#allocation7 + $0x108] sm:$0xf]
    %v2382 = vld [vmem:[#allocation7 + $0x110] sm:$0xf]
    %v2383 = vld [vmem:[#allocation7 + $0x118] sm:$0xf]
    %vm2384 = vcmask 752640
    %v2386 = vsel %vm2384, %v2340, 0
    %v2389 = vsel %vm2384, %v2341, 0
    %v2392 = vsel %vm2384, %v2342, 0
    %v2395 = vsel %vm2384, %v2343, 0
    %v2398 = vsel %vm2384, %v2344, 0
    %v2401 = vsel %vm2384, %v2345, 0
    %v2404 = vsel %vm2384, %v2346, 0
    %v2407 = vsel %vm2384, %v2347, 0
    %vm2409 = vcmask 1043456
    %v2411 = vsel %vm2409, %v2381, 0
    %v2414 = vsel %vm2409, %v2382, 0
    %v2417 = vsel %vm2409, %v2383, 0
    %2419 = vmatprep.subr.mxu0 0.0
    %2420 = vmatpush1.msra.mxu0 0.0
    %2421 = vmatprep.subr.mxu0 0.0
    %2422 = vmatpush1.msra.mxu0 0.0
    %2423 = vmatprep.subr.mxu0 0.0
    %2424 = vmatpush1.msra.mxu0 0.0
    %2425 = vmatprep.subr.mxu0 0.0
    %2426 = vmatpush1.msra.mxu0 0.0
    %2427 = vmatprep.subr.mxu0 %v2414
    %2428 = vmatpush1.msra.mxu0 %v2411
    %2429 = vmatprep.subr.mxu0 %v2379
    %2430 = vmatpush1.msra.mxu0 %v2378
    %2431 = vmatprep.subr.mxu0 %v2376
    %2432 = vmatpush1.msra.mxu0 %v2375
    %2433 = vmatprep.subr.mxu0 %v2373
    %2434 = vmatpush1.msra.mxu0 %v2372
    %2435 = vmatprep.subr.mxu0 %v2370
    %2436 = vmatpush1.msra.mxu0 %v2369
    %2437 = vmatprep.subr.mxu0 %v2367
    %2438 = vmatpush1.msra.mxu0 %v2366
    %2439 = vmatprep.subr.mxu0 %v2364
    %2440 = vmatpush1.msra.mxu0 %v2363
    %2441 = vmatprep.subr.mxu0 %v2361
    %2442 = vmatpush1.msra.mxu0 %v2360
    %2443 = vmatprep.subr.mxu0 %v2358
    %2444 = vmatpush1.msra.mxu0 %v2357
    %2445 = vmatprep.subr.mxu0 %v2355
    %2446 = vmatpush1.msra.mxu0 %v2354
    %2447 = vmatprep.subr.mxu0 %v2352
    %2448 = vmatpush1.msra.mxu0 %v2351
    %2449 = vmatprep.subr.mxu0 %v2349
    %2450 = vmatpush1.msra.mxu0 %v2348
    %2451 = vmatprep.subr.mxu0 0.0
    %2452 = vmatpush2.msra.mxu0 0.0
    %2453 = vmatprep.subr.mxu0 0.0
    %2454 = vmatpush2.msra.mxu0 0.0
    %2455 = vmatprep.subr.mxu0 0.0
    %2456 = vmatpush2.msra.mxu0 0.0
    %2457 = vmatprep.subr.mxu0 0.0
    %2458 = vmatpush2.msra.mxu0 0.0
    %2459 = vmatprep.subr.mxu0 0.0
    %2460 = vmatpush2.msra.mxu0 0.0
    %2461 = vmatprep.subr.mxu0 0.0
    %2462 = vmatpush2.msra.mxu0 0.0
    %2463 = vmatprep.subr.mxu0 0.0
    %2464 = vmatpush2.msra.mxu0 0.0
    %2465 = vmatprep.subr.mxu0 0.0
    %2466 = vmatpush2.msra.mxu0 0.0
    %2467 = vmatprep.subr.mxu0 0.0
    %2468 = vmatpush2.msra.mxu0 0.0
    %2469 = vmatprep.subr.mxu0 0.0
    %2470 = vmatpush2.msra.mxu0 0.0
    %2471 = vmatprep.subr.mxu0 0.0
    %2472 = vmatpush2.msra.mxu0 0.0
    %2473 = vmatprep.subr.mxu0 0.0
    %2474 = vmatpush2.msra.mxu0 0.0
    %2475 = vmatprep.subr.mxu0 0.0
    %2476 = vmatpush2.msra.mxu0 0.0
    %2477 = vmatprep.subr.mxu0 0.0
    %2478 = vmatpush2.msra.mxu0 0.0
    %2479 = vmatprep.subr.mxu0 0.0
    %2480 = vmatpush2.msra.mxu0 0.0
    %2481 = vmatprep.subr.mxu0 0.0
    %2482 = vmatpush2.msra.mxu0 0.0
    %2483 = vmatprep.mubr.f32.mxu0 0.0
    %2484 = vmatmul.mubr.f32.gmra.mxu0 %v2386
    %v2485 = vpop.f32.mrf.mxu0
    %v2486 = vadd.f32 0.0, %v2485
    %v2487 = vpop.f32.mrf.mxu0
    %v2488 = vadd.f32 0.0, %v2487
    %2489 = vmatprep.mubr.f32.mxu0 0.0
    %2490 = vmatmul.mubr.f32.gmra.mxu0 %v2389
    %v2491 = vpop.f32.mrf.mxu0
    %v2492 = vadd.f32 0.0, %v2491
    %v2493 = vpop.f32.mrf.mxu0
    %v2494 = vadd.f32 0.0, %v2493
    %2495 = vmatprep.mubr.f32.mxu0 0.0
    %2496 = vmatmul.mubr.f32.gmra.mxu0 %v2392
    %v2497 = vpop.f32.mrf.mxu0
    %v2498 = vadd.f32 0.0, %v2497
    %v2499 = vpop.f32.mrf.mxu0
    %v2500 = vadd.f32 0.0, %v2499
    %2501 = vmatprep.mubr.f32.mxu0 0.0
    %2502 = vmatmul.mubr.f32.gmra.mxu0 %v2395
    %v2503 = vpop.f32.mrf.mxu0
    %v2504 = vadd.f32 0.0, %v2503
    %v2505 = vpop.f32.mrf.mxu0
    %v2506 = vadd.f32 0.0, %v2505
    %2507 = vmatprep.mubr.f32.mxu0 0.0
    %2508 = vmatmul.mubr.f32.gmra.mxu0 %v2398
    %v2509 = vpop.f32.mrf.mxu0
    %v2510 = vadd.f32 0.0, %v2509
    %v2511 = vpop.f32.mrf.mxu0
    %v2512 = vadd.f32 0.0, %v2511
    %2513 = vmatprep.mubr.f32.mxu0 0.0
    %2514 = vmatmul.mubr.f32.gmra.mxu0 %v2401
    %v2515 = vpop.f32.mrf.mxu0
    %v2516 = vadd.f32 0.0, %v2515
    %v2517 = vpop.f32.mrf.mxu0
    %v2518 = vadd.f32 0.0, %v2517
    %2519 = vmatprep.mubr.f32.mxu0 0.0
    %2520 = vmatmul.mubr.f32.gmra.mxu0 %v2404
    %v2521 = vpop.f32.mrf.mxu0
    %v2522 = vadd.f32 0.0, %v2521
    %v2523 = vpop.f32.mrf.mxu0
    %v2524 = vadd.f32 0.0, %v2523
    %2525 = vmatprep.mubr.f32.mxu0 0.0
    %2526 = vmatmul.mubr.f32.gmra.mxu0 %v2407
    %v2527 = vpop.f32.mrf.mxu0
    %v2528 = vadd.f32 0.0, %v2527
    %v2529 = vpop.f32.mrf.mxu0
    %v2530 = vadd.f32 0.0, %v2529
    %2531 = vdwg.mxu0
    %2532 = vmatprep.subr.mxu0 0.0
    %2533 = vmatpush1.msra.mxu0 0.0
    %2534 = vmatprep.subr.mxu0 0.0
    %2535 = vmatpush1.msra.mxu0 0.0
    %2536 = vmatprep.subr.mxu0 0.0
    %2537 = vmatpush1.msra.mxu0 0.0
    %2538 = vmatprep.subr.mxu0 0.0
    %2539 = vmatpush1.msra.mxu0 0.0
    %2540 = vmatprep.subr.mxu0 0.0
    %2541 = vmatpush1.msra.mxu0 %v2417
    %2542 = vmatprep.subr.mxu0 0.0
    %2543 = vmatpush1.msra.mxu0 %v2380
    %2544 = vmatprep.subr.mxu0 0.0
    %2545 = vmatpush1.msra.mxu0 %v2377
    %2546 = vmatprep.subr.mxu0 0.0
    %2547 = vmatpush1.msra.mxu0 %v2374
    %2548 = vmatprep.subr.mxu0 0.0
    %2549 = vmatpush1.msra.mxu0 %v2371
    %2550 = vmatprep.subr.mxu0 0.0
    %2551 = vmatpush1.msra.mxu0 %v2368
    %2552 = vmatprep.subr.mxu0 0.0
    %2553 = vmatpush1.msra.mxu0 %v2365
    %2554 = vmatprep.subr.mxu0 0.0
    %2555 = vmatpush1.msra.mxu0 %v2362
    %2556 = vmatprep.subr.mxu0 0.0
    %2557 = vmatpush1.msra.mxu0 %v2359
    %2558 = vmatprep.subr.mxu0 0.0
    %2559 = vmatpush1.msra.mxu0 %v2356
    %2560 = vmatprep.subr.mxu0 0.0
    %2561 = vmatpush1.msra.mxu0 %v2353
    %2562 = vmatprep.subr.mxu0 0.0
    %2563 = vmatpush1.msra.mxu0 %v2350
    %2564 = vmatprep.subr.mxu0 0.0
    %2565 = vmatpush2.msra.mxu0 0.0
    %2566 = vmatprep.subr.mxu0 0.0
    %2567 = vmatpush2.msra.mxu0 0.0
    %2568 = vmatprep.subr.mxu0 0.0
    %2569 = vmatpush2.msra.mxu0 0.0
    %2570 = vmatprep.subr.mxu0 0.0
    %2571 = vmatpush2.msra.mxu0 0.0
    %2572 = vmatprep.subr.mxu0 0.0
    %2573 = vmatpush2.msra.mxu0 0.0
    %2574 = vmatprep.subr.mxu0 0.0
    %2575 = vmatpush2.msra.mxu0 0.0
    %2576 = vmatprep.subr.mxu0 0.0
    %2577 = vmatpush2.msra.mxu0 0.0
    %2578 = vmatprep.subr.mxu0 0.0
    %2579 = vmatpush2.msra.mxu0 0.0
    %2580 = vmatprep.subr.mxu0 0.0
    %2581 = vmatpush2.msra.mxu0 0.0
    %2582 = vmatprep.subr.mxu0 0.0
    %2583 = vmatpush2.msra.mxu0 0.0
    %2584 = vmatprep.subr.mxu0 0.0
    %2585 = vmatpush2.msra.mxu0 0.0
    %2586 = vmatprep.subr.mxu0 0.0
    %2587 = vmatpush2.msra.mxu0 0.0
    %2588 = vmatprep.subr.mxu0 0.0
    %2589 = vmatpush2.msra.mxu0 0.0
    %2590 = vmatprep.subr.mxu0 0.0
    %2591 = vmatpush2.msra.mxu0 0.0
    %2592 = vmatprep.subr.mxu0 0.0
    %2593 = vmatpush2.msra.mxu0 0.0
    %2594 = vmatprep.subr.mxu0 0.0
    %2595 = vmatpush2.msra.mxu0 0.0
    %2596 = vmatprep.mubr.f32.mxu0 0.0
    %2597 = vmatmul.mubr.f32.gmra.mxu0 %v2386
    %v2598 = vpop.f32.mrf.mxu0
    %v2599 = vadd.f32 0.0, %v2598
    %v2600 = vpop.f32.mrf.mxu0
    %2601 = vmatprep.mubr.f32.mxu0 0.0
    %2602 = vmatmul.mubr.f32.gmra.mxu0 %v2389
    %v2603 = vpop.f32.mrf.mxu0
    %v2604 = vadd.f32 0.0, %v2603
    %v2605 = vpop.f32.mrf.mxu0
    %2606 = vmatprep.mubr.f32.mxu0 0.0
    %2607 = vmatmul.mubr.f32.gmra.mxu0 %v2392
    %v2608 = vpop.f32.mrf.mxu0
    %v2609 = vadd.f32 0.0, %v2608
    %v2610 = vpop.f32.mrf.mxu0
    %2611 = vmatprep.mubr.f32.mxu0 0.0
    %2612 = vmatmul.mubr.f32.gmra.mxu0 %v2395
    %v2613 = vpop.f32.mrf.mxu0
    %v2614 = vadd.f32 0.0, %v2613
    %v2615 = vpop.f32.mrf.mxu0
    %2616 = vmatprep.mubr.f32.mxu0 0.0
    %2617 = vmatmul.mubr.f32.gmra.mxu0 %v2398
    %v2618 = vpop.f32.mrf.mxu0
    %v2619 = vadd.f32 0.0, %v2618
    %v2620 = vpop.f32.mrf.mxu0
    %2621 = vmatprep.mubr.f32.mxu0 0.0
    %2622 = vmatmul.mubr.f32.gmra.mxu0 %v2401
    %v2623 = vpop.f32.mrf.mxu0
    %v2624 = vadd.f32 0.0, %v2623
    %v2625 = vpop.f32.mrf.mxu0
    %2626 = vmatprep.mubr.f32.mxu0 0.0
    %2627 = vmatmul.mubr.f32.gmra.mxu0 %v2404
    %v2628 = vpop.f32.mrf.mxu0
    %v2629 = vadd.f32 0.0, %v2628
    %v2630 = vpop.f32.mrf.mxu0
    %2631 = vmatprep.mubr.f32.mxu0 0.0
    %2632 = vmatmul.mubr.f32.gmra.mxu0 %v2407
    %v2633 = vpop.f32.mrf.mxu0
    %v2634 = vadd.f32 0.0, %v2633
    %v2635 = vpop.f32.mrf.mxu0
    %2636 = vdwg.mxu0
    %2645 = vrot.lane.b32.xlu0 %v2486, 86
    %v2646 = vpop.permute.xlu0 %2645
    %2647 = vrot.lane.b32.xlu0 %v2492, 86
    %v2648 = vpop.permute.xlu0 %2647
    %2649 = vrot.lane.b32.xlu0 %v2498, 86
    %v2650 = vpop.permute.xlu0 %2649
    %2651 = vrot.lane.b32.xlu0 %v2504, 86
    %v2652 = vpop.permute.xlu0 %2651
    %2653 = vrot.lane.b32.xlu0 %v2510, 86
    %v2654 = vpop.permute.xlu0 %2653
    %2655 = vrot.lane.b32.xlu0 %v2516, 86
    %v2656 = vpop.permute.xlu0 %2655
    %2657 = vrot.lane.b32.xlu0 %v2522, 86
    %v2658 = vpop.permute.xlu0 %2657
    %2659 = vrot.lane.b32.xlu0 %v2528, 86
    %v2660 = vpop.permute.xlu0 %2659
    %2669 = vrot.lane.b32.xlu0 %v2486, 44
    %v2670 = vpop.permute.xlu0 %2669
    %2671 = vrot.lane.b32.xlu0 %v2492, 44
    %v2672 = vpop.permute.xlu0 %2671
    %2673 = vrot.lane.b32.xlu0 %v2498, 44
    %v2674 = vpop.permute.xlu0 %2673
    %2675 = vrot.lane.b32.xlu0 %v2504, 44
    %v2676 = vpop.permute.xlu0 %2675
    %2677 = vrot.lane.b32.xlu0 %v2510, 44
    %v2678 = vpop.permute.xlu0 %2677
    %2679 = vrot.lane.b32.xlu0 %v2516, 44
    %v2680 = vpop.permute.xlu0 %2679
    %2681 = vrot.lane.b32.xlu0 %v2522, 44
    %v2682 = vpop.permute.xlu0 %2681
    %2683 = vrot.lane.b32.xlu0 %v2528, 44
    %v2684 = vpop.permute.xlu0 %2683
    %2701 = vrot.lane.b32.xlu0 %v2486, 2
    %v2702 = vpop.permute.xlu0 %2701
    %2703 = vrot.lane.b32.xlu0 %v2488, 2
    %v2704 = vpop.permute.xlu0 %2703
    %2705 = vrot.lane.b32.xlu0 %v2492, 2
    %v2706 = vpop.permute.xlu0 %2705
    %2707 = vrot.lane.b32.xlu0 %v2494, 2
    %v2708 = vpop.permute.xlu0 %2707
    %2709 = vrot.lane.b32.xlu0 %v2498, 2
    %v2710 = vpop.permute.xlu0 %2709
    %2711 = vrot.lane.b32.xlu0 %v2500, 2
    %v2712 = vpop.permute.xlu0 %2711
    %2713 = vrot.lane.b32.xlu0 %v2504, 2
    %v2714 = vpop.permute.xlu0 %2713
    %2715 = vrot.lane.b32.xlu0 %v2506, 2
    %v2716 = vpop.permute.xlu0 %2715
    %2717 = vrot.lane.b32.xlu0 %v2510, 2
    %v2718 = vpop.permute.xlu0 %2717
    %2719 = vrot.lane.b32.xlu0 %v2512, 2
    %v2720 = vpop.permute.xlu0 %2719
    %2721 = vrot.lane.b32.xlu0 %v2516, 2
    %v2722 = vpop.permute.xlu0 %2721
    %2723 = vrot.lane.b32.xlu0 %v2518, 2
    %v2724 = vpop.permute.xlu0 %2723
    %2725 = vrot.lane.b32.xlu0 %v2522, 2
    %v2726 = vpop.permute.xlu0 %2725
    %2727 = vrot.lane.b32.xlu0 %v2524, 2
    %v2728 = vpop.permute.xlu0 %2727
    %2729 = vrot.lane.b32.xlu0 %v2528, 2
    %v2730 = vpop.permute.xlu0 %2729
    %2731 = vrot.lane.b32.xlu0 %v2530, 2
    %v2732 = vpop.permute.xlu0 %2731
    %vm2733 = vcmask 15360
    %v2734 = vsel %vm2733, %v2702, %v2704
    %v2735 = vsel %vm2733, %v2706, %v2708
    %v2736 = vsel %vm2733, %v2710, %v2712
    %v2737 = vsel %vm2733, %v2714, %v2716
    %v2738 = vsel %vm2733, %v2718, %v2720
    %v2739 = vsel %vm2733, %v2722, %v2724
    %v2740 = vsel %vm2733, %v2726, %v2728
    %v2741 = vsel %vm2733, %v2730, %v2732
    %2750 = vrot.lane.b32.xlu0 %v2488, 88
    %v2751 = vpop.permute.xlu0 %2750
    %2752 = vrot.lane.b32.xlu0 %v2494, 88
    %v2753 = vpop.permute.xlu0 %2752
    %2754 = vrot.lane.b32.xlu0 %v2500, 88
    %v2755 = vpop.permute.xlu0 %2754
    %2756 = vrot.lane.b32.xlu0 %v2506, 88
    %v2757 = vpop.permute.xlu0 %2756
    %2758 = vrot.lane.b32.xlu0 %v2512, 88
    %v2759 = vpop.permute.xlu0 %2758
    %2760 = vrot.lane.b32.xlu0 %v2518, 88
    %v2761 = vpop.permute.xlu0 %2760
    %2762 = vrot.lane.b32.xlu0 %v2524, 88
    %v2763 = vpop.permute.xlu0 %2762
    %2764 = vrot.lane.b32.xlu0 %v2530, 88
    %v2765 = vpop.permute.xlu0 %2764
    %2774 = vrot.lane.b32.xlu0 %v2488, 46
    %v2775 = vpop.permute.xlu0 %2774
    %2776 = vrot.lane.b32.xlu0 %v2494, 46
    %v2777 = vpop.permute.xlu0 %2776
    %2778 = vrot.lane.b32.xlu0 %v2500, 46
    %v2779 = vpop.permute.xlu0 %2778
    %2780 = vrot.lane.b32.xlu0 %v2506, 46
    %v2781 = vpop.permute.xlu0 %2780
    %2782 = vrot.lane.b32.xlu0 %v2512, 46
    %v2783 = vpop.permute.xlu0 %2782
    %2784 = vrot.lane.b32.xlu0 %v2518, 46
    %v2785 = vpop.permute.xlu0 %2784
    %2786 = vrot.lane.b32.xlu0 %v2524, 46
    %v2787 = vpop.permute.xlu0 %2786
    %2788 = vrot.lane.b32.xlu0 %v2530, 46
    %v2789 = vpop.permute.xlu0 %2788
    %2806 = vrot.lane.b32.xlu0 %v2488, 4
    %v2807 = vpop.permute.xlu0 %2806
    %2808 = vrot.lane.b32.xlu0 %v2599, 4
    %v2809 = vpop.permute.xlu0 %2808
    %2810 = vrot.lane.b32.xlu0 %v2494, 4
    %v2811 = vpop.permute.xlu0 %2810
    %2812 = vrot.lane.b32.xlu0 %v2604, 4
    %v2813 = vpop.permute.xlu0 %2812
    %2814 = vrot.lane.b32.xlu0 %v2500, 4
    %v2815 = vpop.permute.xlu0 %2814
    %2816 = vrot.lane.b32.xlu0 %v2609, 4
    %v2817 = vpop.permute.xlu0 %2816
    %2818 = vrot.lane.b32.xlu0 %v2506, 4
    %v2819 = vpop.permute.xlu0 %2818
    %2820 = vrot.lane.b32.xlu0 %v2614, 4
    %v2821 = vpop.permute.xlu0 %2820
    %2822 = vrot.lane.b32.xlu0 %v2512, 4
    %v2823 = vpop.permute.xlu0 %2822
    %2824 = vrot.lane.b32.xlu0 %v2619, 4
    %v2825 = vpop.permute.xlu0 %2824
    %2826 = vrot.lane.b32.xlu0 %v2518, 4
    %v2827 = vpop.permute.xlu0 %2826
    %2828 = vrot.lane.b32.xlu0 %v2624, 4
    %v2829 = vpop.permute.xlu0 %2828
    %2830 = vrot.lane.b32.xlu0 %v2524, 4
    %v2831 = vpop.permute.xlu0 %2830
    %2832 = vrot.lane.b32.xlu0 %v2629, 4
    %v2833 = vpop.permute.xlu0 %2832
    %2834 = vrot.lane.b32.xlu0 %v2530, 4
    %v2835 = vpop.permute.xlu0 %2834
    %2836 = vrot.lane.b32.xlu0 %v2634, 4
    %v2837 = vpop.permute.xlu0 %2836
    %vm2838 = vcmask 31744
    %v2839 = vsel %vm2838, %v2807, %v2809
    %v2840 = vsel %vm2838, %v2811, %v2813
    %v2841 = vsel %vm2838, %v2815, %v2817
    %v2842 = vsel %vm2838, %v2819, %v2821
    %v2843 = vsel %vm2838, %v2823, %v2825
    %v2844 = vsel %vm2838, %v2827, %v2829
    %v2845 = vsel %vm2838, %v2831, %v2833
    %v2846 = vsel %vm2838, %v2835, %v2837
    %v2855 = vld [vmem:[#allocation9] sm:$0xff]
    %v2856 = vld [vmem:[#allocation9 + $0x8] sm:$0xff]
    %v2857 = vld [vmem:[#allocation9 + $0x10] sm:$0xff]
    %v2858 = vld [vmem:[#allocation9 + $0x18] sm:$0xff]
    %v2859 = vld [vmem:[#allocation9 + $0x20] sm:$0xff]
    %v2860 = vld [vmem:[#allocation9 + $0x28] sm:$0xff]
    %v2861 = vld [vmem:[#allocation9 + $0x30] sm:$0xff]
    %v2862 = vld [vmem:[#allocation9 + $0x38] sm:$0xff]
    %v2863 = vld [vmem:[#allocation9 + $0x40] sm:$0xff]
    %v2864 = vld [vmem:[#allocation9 + $0x48] sm:$0xff]
    %v2865 = vld [vmem:[#allocation9 + $0x50] sm:$0xff]
    %v2866 = vld [vmem:[#allocation9 + $0x58] sm:$0xff]
    %v2867 = vld [vmem:[#allocation9 + $0x60] sm:$0xff]
    %v2868 = vld [vmem:[#allocation9 + $0x68] sm:$0xff]
    %v2869 = vld [vmem:[#allocation9 + $0x70] sm:$0xff]
    %v2870 = vld [vmem:[#allocation9 + $0x78] sm:$0xff]
    %v2872 = vsel %vm591, %v2858, 0
    %v2875 = vsel %vm591, %v2862, 0
    %v2878 = vsel %vm591, %v2866, 0
    %v2881 = vsel %vm591, %v2870, 0
    %2883 = vmatprep.subr.mxu0 0.0
    %2884 = vmatpush1.msra.mxu0 %v2660
    %2885 = vmatprep.subr.mxu0 0.0
    %2886 = vmatpush1.msra.mxu0 %v2658
    %2887 = vmatprep.subr.mxu0 0.0
    %2888 = vmatpush1.msra.mxu0 %v2656
    %2889 = vmatprep.subr.mxu0 0.0
    %2890 = vmatpush1.msra.mxu0 %v2654
    %2891 = vmatprep.subr.mxu0 0.0
    %2892 = vmatpush1.msra.mxu0 %v2652
    %2893 = vmatprep.subr.mxu0 0.0
    %2894 = vmatpush1.msra.mxu0 %v2650
    %2895 = vmatprep.subr.mxu0 0.0
    %2896 = vmatpush1.msra.mxu0 %v2648
    %2897 = vmatprep.subr.mxu0 0.0
    %2898 = vmatpush1.msra.mxu0 %v2646
    %2899 = vmatprep.subr.mxu0 0.0
    %2900 = vmatpush1.msra.mxu0 %v2528
    %2901 = vmatprep.subr.mxu0 0.0
    %2902 = vmatpush1.msra.mxu0 %v2522
    %2903 = vmatprep.subr.mxu0 0.0
    %2904 = vmatpush1.msra.mxu0 %v2516
    %2905 = vmatprep.subr.mxu0 0.0
    %2906 = vmatpush1.msra.mxu0 %v2510
    %2907 = vmatprep.subr.mxu0 0.0
    %2908 = vmatpush1.msra.mxu0 %v2504
    %2909 = vmatprep.subr.mxu0 0.0
    %2910 = vmatpush1.msra.mxu0 %v2498
    %2911 = vmatprep.subr.mxu0 0.0
    %2912 = vmatpush1.msra.mxu0 %v2492
    %2913 = vmatprep.subr.mxu0 0.0
    %2914 = vmatpush1.msra.mxu0 %v2486
    %2915 = vmatprep.subr.mxu0 0.0
    %2916 = vmatpush2.msra.mxu0 %v2741
    %2917 = vmatprep.subr.mxu0 0.0
    %2918 = vmatpush2.msra.mxu0 %v2740
    %2919 = vmatprep.subr.mxu0 0.0
    %2920 = vmatpush2.msra.mxu0 %v2739
    %2921 = vmatprep.subr.mxu0 0.0
    %2922 = vmatpush2.msra.mxu0 %v2738
    %2923 = vmatprep.subr.mxu0 0.0
    %2924 = vmatpush2.msra.mxu0 %v2737
    %2925 = vmatprep.subr.mxu0 0.0
    %2926 = vmatpush2.msra.mxu0 %v2736
    %2927 = vmatprep.subr.mxu0 0.0
    %2928 = vmatpush2.msra.mxu0 %v2735
    %2929 = vmatprep.subr.mxu0 0.0
    %2930 = vmatpush2.msra.mxu0 %v2734
    %2931 = vmatprep.subr.mxu0 0.0
    %2932 = vmatpush2.msra.mxu0 %v2684
    %2933 = vmatprep.subr.mxu0 0.0
    %2934 = vmatpush2.msra.mxu0 %v2682
    %2935 = vmatprep.subr.mxu0 0.0
    %2936 = vmatpush2.msra.mxu0 %v2680
    %2937 = vmatprep.subr.mxu0 0.0
    %2938 = vmatpush2.msra.mxu0 %v2678
    %2939 = vmatprep.subr.mxu0 0.0
    %2940 = vmatpush2.msra.mxu0 %v2676
    %2941 = vmatprep.subr.mxu0 0.0
    %2942 = vmatpush2.msra.mxu0 %v2674
    %2943 = vmatprep.subr.mxu0 0.0
    %2944 = vmatpush2.msra.mxu0 %v2672
    %2945 = vmatprep.subr.mxu0 0.0
    %2946 = vmatpush2.msra.mxu0 %v2670
    %2947 = vmatprep.mubr.f32.mxu0 %v2856
    %2948 = vmatmul.mubr.f32.gmra.mxu0 %v2855
    %v2949 = vpop.f32.mrf.mxu0
    %v2950 = vadd.f32 0.0, %v2949
    %v2951 = vpop.f32.mrf.mxu0
    %2952 = vmatprep.mubr.f32.mxu0 %v2860
    %2953 = vmatmul.mubr.f32.gmra.mxu0 %v2859
    %v2954 = vpop.f32.mrf.mxu0
    %v2955 = vadd.f32 0.0, %v2954
    %v2956 = vpop.f32.mrf.mxu0
    %2957 = vmatprep.mubr.f32.mxu0 %v2864
    %2958 = vmatmul.mubr.f32.gmra.mxu0 %v2863
    %v2959 = vpop.f32.mrf.mxu0
    %v2960 = vadd.f32 0.0, %v2959
    %v2961 = vpop.f32.mrf.mxu0
    %2962 = vmatprep.mubr.f32.mxu0 %v2868
    %2963 = vmatmul.mubr.f32.gmra.mxu0 %v2867
    %v2964 = vpop.f32.mrf.mxu0
    %v2965 = vadd.f32 0.0, %v2964
    %v2966 = vpop.f32.mrf.mxu0
    %2967 = vdwg.mxu0
    %2968 = vmatprep.subr.mxu0 0.0
    %2969 = vmatpush1.msra.mxu0 %v2789
    %2970 = vmatprep.subr.mxu0 0.0
    %2971 = vmatpush1.msra.mxu0 %v2787
    %2972 = vmatprep.subr.mxu0 0.0
    %2973 = vmatpush1.msra.mxu0 %v2785
    %2974 = vmatprep.subr.mxu0 0.0
    %2975 = vmatpush1.msra.mxu0 %v2783
    %2976 = vmatprep.subr.mxu0 0.0
    %2977 = vmatpush1.msra.mxu0 %v2781
    %2978 = vmatprep.subr.mxu0 0.0
    %2979 = vmatpush1.msra.mxu0 %v2779
    %2980 = vmatprep.subr.mxu0 0.0
    %2981 = vmatpush1.msra.mxu0 %v2777
    %2982 = vmatprep.subr.mxu0 0.0
    %2983 = vmatpush1.msra.mxu0 %v2775
    %2984 = vmatprep.subr.mxu0 0.0
    %2985 = vmatpush1.msra.mxu0 %v2765
    %2986 = vmatprep.subr.mxu0 0.0
    %2987 = vmatpush1.msra.mxu0 %v2763
    %2988 = vmatprep.subr.mxu0 0.0
    %2989 = vmatpush1.msra.mxu0 %v2761
    %2990 = vmatprep.subr.mxu0 0.0
    %2991 = vmatpush1.msra.mxu0 %v2759
    %2992 = vmatprep.subr.mxu0 0.0
    %2993 = vmatpush1.msra.mxu0 %v2757
    %2994 = vmatprep.subr.mxu0 0.0
    %2995 = vmatpush1.msra.mxu0 %v2755
    %2996 = vmatprep.subr.mxu0 0.0
    %2997 = vmatpush1.msra.mxu0 %v2753
    %2998 = vmatprep.subr.mxu0 0.0
    %2999 = vmatpush1.msra.mxu0 %v2751
    %3000 = vmatprep.subr.mxu0 0.0
    %3001 = vmatpush2.msra.mxu0 0.0
    %3002 = vmatprep.subr.mxu0 0.0
    %3003 = vmatpush2.msra.mxu0 0.0
    %3004 = vmatprep.subr.mxu0 0.0
    %3005 = vmatpush2.msra.mxu0 0.0
    %3006 = vmatprep.subr.mxu0 0.0
    %3007 = vmatpush2.msra.mxu0 0.0
    %3008 = vmatprep.subr.mxu0 0.0
    %3009 = vmatpush2.msra.mxu0 0.0
    %3010 = vmatprep.subr.mxu0 0.0
    %3011 = vmatpush2.msra.mxu0 0.0
    %3012 = vmatprep.subr.mxu0 0.0
    %3013 = vmatpush2.msra.mxu0 0.0
    %3014 = vmatprep.subr.mxu0 0.0
    %3015 = vmatpush2.msra.mxu0 0.0
    %3016 = vmatprep.subr.mxu0 0.0
    %3017 = vmatpush2.msra.mxu0 %v2846
    %3018 = vmatprep.subr.mxu0 0.0
    %3019 = vmatpush2.msra.mxu0 %v2845
    %3020 = vmatprep.subr.mxu0 0.0
    %3021 = vmatpush2.msra.mxu0 %v2844
    %3022 = vmatprep.subr.mxu0 0.0
    %3023 = vmatpush2.msra.mxu0 %v2843
    %3024 = vmatprep.subr.mxu0 0.0
    %3025 = vmatpush2.msra.mxu0 %v2842
    %3026 = vmatprep.subr.mxu0 0.0
    %3027 = vmatpush2.msra.mxu0 %v2841
    %3028 = vmatprep.subr.mxu0 0.0
    %3029 = vmatpush2.msra.mxu0 %v2840
    %3030 = vmatprep.subr.mxu0 0.0
    %3031 = vmatpush2.msra.mxu0 %v2839
    %3032 = vmatprep.mubr.f32.mxu0 %v2872
    %3033 = vmatmul.mubr.f32.gmra.mxu0 %v2857
    %v3034 = vpop.f32.mrf.mxu0
    %v3035 = vadd.f32 %v2950, %v3034
    %v3036 = vpop.f32.mrf.mxu0
    %3037 = vmatprep.mubr.f32.mxu0 %v2875
    %3038 = vmatmul.mubr.f32.gmra.mxu0 %v2861
    %v3039 = vpop.f32.mrf.mxu0
    %v3040 = vadd.f32 %v2955, %v3039
    %v3041 = vpop.f32.mrf.mxu0
    %3042 = vmatprep.mubr.f32.mxu0 %v2878
    %3043 = vmatmul.mubr.f32.gmra.mxu0 %v2865
    %v3044 = vpop.f32.mrf.mxu0
    %v3045 = vadd.f32 %v2960, %v3044
    %v3046 = vpop.f32.mrf.mxu0
    %3047 = vmatprep.mubr.f32.mxu0 %v2881
    %3048 = vmatmul.mubr.f32.gmra.mxu0 %v2869
    %v3049 = vpop.f32.mrf.mxu0
    %v3050 = vadd.f32 %v2965, %v3049
    %v3051 = vpop.f32.mrf.mxu0
    %3052 = vdwg.mxu0
    %v3053 = vld [vmem:[#allocation10] sm:$0xff]
    %v3054 = vld [vmem:[#allocation10 + $0x8] sm:$0xff]
    %v3055 = vld [vmem:[#allocation10 + $0x10] sm:$0xff]
    %v3056 = vld [vmem:[#allocation10 + $0x18] sm:$0xff]
    %3058 = vset.pattern.permute.xlu0 0
    %3059 = vperm.xlu0 %3058, %v3053
    %v3060 = vpop.permute.xlu0 %3059
    %3063 = vset.pattern.permute.xlu0 0
    %3064 = vperm.xlu0 %3063, %v3054
    %v3065 = vpop.permute.xlu0 %3064
    %3068 = vset.pattern.permute.xlu0 0
    %3069 = vperm.xlu0 %3068, %v3055
    %v3070 = vpop.permute.xlu0 %3069
    %3073 = vset.pattern.permute.xlu0 0
    %3074 = vperm.xlu0 %3073, %v3056
    %v3075 = vpop.permute.xlu0 %3074
    %v3077 = vmul.f32 %v3035, %v3060
    %v3078 = vmul.f32 %v3040, %v3065
    %v3079 = vmul.f32 %v3045, %v3070
    %v3080 = vmul.f32 %v3050, %v3075
    %v3081 = vld [vmem:[#allocation12] sm:$0xff]
    %v3082 = vld [vmem:[#allocation12 + $0x8] sm:$0xff]
    %v3083 = vld [vmem:[#allocation12 + $0x10] sm:$0xff]
    %v3084 = vld [vmem:[#allocation12 + $0x18] sm:$0xff]
    %3086 = vset.pattern.permute.xlu0 0
    %3087 = vperm.xlu0 %3086, %v3081
    %v3088 = vpop.permute.xlu0 %3087
    %3091 = vset.pattern.permute.xlu0 0
    %3092 = vperm.xlu0 %3091, %v3082
    %v3093 = vpop.permute.xlu0 %3092
    %3096 = vset.pattern.permute.xlu0 0
    %3097 = vperm.xlu0 %3096, %v3083
    %v3098 = vpop.permute.xlu0 %3097
    %3101 = vset.pattern.permute.xlu0 0
    %3102 = vperm.xlu0 %3101, %v3084
    %v3103 = vpop.permute.xlu0 %3102
    %v3105 = vadd.f32 %v3077, %v3088
    %v3106 = vadd.f32 %v3078, %v3093
    %v3107 = vadd.f32 %v3079, %v3098
    %v3108 = vadd.f32 %v3080, %v3103
    %v3109 = vmax.f32 %v3105, 0.0
    %v3110 = vmax.f32 %v3106, 0.0
    %v3111 = vmax.f32 %v3107, 0.0
    %v3112 = vmax.f32 %v3108, 0.0
    %v3113 = vld [vmem:[#allocation13] sm:$0xff]
    %v3114 = vld [vmem:[#allocation13 + $0x8] sm:$0xff]
    %v3115 = vld [vmem:[#allocation13 + $0x10] sm:$0xff]
    %v3116 = vld [vmem:[#allocation13 + $0x18] sm:$0xff]
    %v3117 = vld [vmem:[#allocation13 + $0x20] sm:$0xff]
    %v3118 = vld [vmem:[#allocation13 + $0x28] sm:$0xff]
    %v3119 = vld [vmem:[#allocation13 + $0x30] sm:$0xff]
    %v3120 = vld [vmem:[#allocation13 + $0x38] sm:$0xff]
    %v3121 = vld [vmem:[#allocation13 + $0x40] sm:$0xff]
    %v3122 = vld [vmem:[#allocation13 + $0x48] sm:$0xff]
    %v3123 = vld [vmem:[#allocation13 + $0x50] sm:$0x3]
    %v3124 = vld [vmem:[#allocation13 + $0x58] sm:$0x3]
    %vm3125 = vcmask 343040
    %v3127 = vsel %vm3125, %v3109, 0
    %v3130 = vsel %vm3125, %v3110, 0
    %v3133 = vsel %vm3125, %v3111, 0
    %v3136 = vsel %vm3125, %v3112, 0
    %vm3138 = vcmask 1041408
    %v3140 = vsel %vm3138, %v3123, 0
    %v3143 = vsel %vm3138, %v3124, 0
    %3145 = vmatprep.subr.mxu0 0.0
    %3146 = vmatpush1.msra.mxu0 0.0
    %3147 = vmatprep.subr.mxu0 0.0
    %3148 = vmatpush1.msra.mxu0 0.0
    %3149 = vmatprep.subr.mxu0 0.0
    %3150 = vmatpush1.msra.mxu0 0.0
    %3151 = vmatprep.subr.mxu0 0.0
    %3152 = vmatpush1.msra.mxu0 0.0
    %3153 = vmatprep.subr.mxu0 0.0
    %3154 = vmatpush1.msra.mxu0 0.0
    %3155 = vmatprep.subr.mxu0 0.0
    %3156 = vmatpush1.msra.mxu0 0.0
    %3157 = vmatprep.subr.mxu0 0.0
    %3158 = vmatpush1.msra.mxu0 0.0
    %3159 = vmatprep.subr.mxu0 0.0
    %3160 = vmatpush1.msra.mxu0 0.0
    %3161 = vmatprep.subr.mxu0 0.0
    %3162 = vmatpush1.msra.mxu0 0.0
    %3163 = vmatprep.subr.mxu0 0.0
    %3164 = vmatpush1.msra.mxu0 0.0
    %3165 = vmatprep.subr.mxu0 %v3143
    %3166 = vmatpush1.msra.mxu0 %v3140
    %3167 = vmatprep.subr.mxu0 %v3122
    %3168 = vmatpush1.msra.mxu0 %v3121
    %3169 = vmatprep.subr.mxu0 %v3120
    %3170 = vmatpush1.msra.mxu0 %v3119
    %3171 = vmatprep.subr.mxu0 %v3118
    %3172 = vmatpush1.msra.mxu0 %v3117
    %3173 = vmatprep.subr.mxu0 %v3116
    %3174 = vmatpush1.msra.mxu0 %v3115
    %3175 = vmatprep.subr.mxu0 %v3114
    %3176 = vmatpush1.msra.mxu0 %v3113
    %3177 = vmatprep.subr.mxu0 0.0
    %3178 = vmatpush2.msra.mxu0 0.0
    %3179 = vmatprep.subr.mxu0 0.0
    %3180 = vmatpush2.msra.mxu0 0.0
    %3181 = vmatprep.subr.mxu0 0.0
    %3182 = vmatpush2.msra.mxu0 0.0
    %3183 = vmatprep.subr.mxu0 0.0
    %3184 = vmatpush2.msra.mxu0 0.0
    %3185 = vmatprep.subr.mxu0 0.0
    %3186 = vmatpush2.msra.mxu0 0.0
    %3187 = vmatprep.subr.mxu0 0.0
    %3188 = vmatpush2.msra.mxu0 0.0
    %3189 = vmatprep.subr.mxu0 0.0
    %3190 = vmatpush2.msra.mxu0 0.0
    %3191 = vmatprep.subr.mxu0 0.0
    %3192 = vmatpush2.msra.mxu0 0.0
    %3193 = vmatprep.subr.mxu0 0.0
    %3194 = vmatpush2.msra.mxu0 0.0
    %3195 = vmatprep.subr.mxu0 0.0
    %3196 = vmatpush2.msra.mxu0 0.0
    %3197 = vmatprep.subr.mxu0 0.0
    %3198 = vmatpush2.msra.mxu0 0.0
    %3199 = vmatprep.subr.mxu0 0.0
    %3200 = vmatpush2.msra.mxu0 0.0
    %3201 = vmatprep.subr.mxu0 0.0
    %3202 = vmatpush2.msra.mxu0 0.0
    %3203 = vmatprep.subr.mxu0 0.0
    %3204 = vmatpush2.msra.mxu0 0.0
    %3205 = vmatprep.subr.mxu0 0.0
    %3206 = vmatpush2.msra.mxu0 0.0
    %3207 = vmatprep.subr.mxu0 0.0
    %3208 = vmatpush2.msra.mxu0 0.0
    %3209 = vmatprep.mubr.f32.mxu0 0.0
    %3210 = vmatmul.mubr.f32.gmra.mxu0 %v3127
    %v3211 = vpop.f32.mrf.mxu0
    %v3212 = vadd.f32 0.0, %v3211
    %v3213 = vpop.f32.mrf.mxu0
    %v3214 = vadd.f32 0.0, %v3213
    %3215 = vmatprep.mubr.f32.mxu0 0.0
    %3216 = vmatmul.mubr.f32.gmra.mxu0 %v3130
    %v3217 = vpop.f32.mrf.mxu0
    %v3218 = vadd.f32 0.0, %v3217
    %v3219 = vpop.f32.mrf.mxu0
    %v3220 = vadd.f32 0.0, %v3219
    %3221 = vmatprep.mubr.f32.mxu0 0.0
    %3222 = vmatmul.mubr.f32.gmra.mxu0 %v3133
    %v3223 = vpop.f32.mrf.mxu0
    %v3224 = vadd.f32 0.0, %v3223
    %v3225 = vpop.f32.mrf.mxu0
    %v3226 = vadd.f32 0.0, %v3225
    %3227 = vmatprep.mubr.f32.mxu0 0.0
    %3228 = vmatmul.mubr.f32.gmra.mxu0 %v3136
    %v3229 = vpop.f32.mrf.mxu0
    %v3230 = vadd.f32 0.0, %v3229
    %v3231 = vpop.f32.mrf.mxu0
    %v3232 = vadd.f32 0.0, %v3231
    %3233 = vdwg.mxu0
    %3238 = vrot.lane.b32.xlu0 %v3212, 94
    %v3239 = vpop.permute.xlu0 %3238
    %3240 = vrot.lane.b32.xlu0 %v3218, 94
    %v3241 = vpop.permute.xlu0 %3240
    %3242 = vrot.lane.b32.xlu0 %v3224, 94
    %v3243 = vpop.permute.xlu0 %3242
    %3244 = vrot.lane.b32.xlu0 %v3230, 94
    %v3245 = vpop.permute.xlu0 %3244
    %3250 = vrot.lane.b32.xlu0 %v3212, 60
    %v3251 = vpop.permute.xlu0 %3250
    %3252 = vrot.lane.b32.xlu0 %v3218, 60
    %v3253 = vpop.permute.xlu0 %3252
    %3254 = vrot.lane.b32.xlu0 %v3224, 60
    %v3255 = vpop.permute.xlu0 %3254
    %3256 = vrot.lane.b32.xlu0 %v3230, 60
    %v3257 = vpop.permute.xlu0 %3256
    %3266 = vrot.lane.b32.xlu0 %v3212, 26
    %v3267 = vpop.permute.xlu0 %3266
    %3268 = vrot.lane.b32.xlu0 %v3214, 26
    %v3269 = vpop.permute.xlu0 %3268
    %3270 = vrot.lane.b32.xlu0 %v3218, 26
    %v3271 = vpop.permute.xlu0 %3270
    %3272 = vrot.lane.b32.xlu0 %v3220, 26
    %v3273 = vpop.permute.xlu0 %3272
    %3274 = vrot.lane.b32.xlu0 %v3224, 26
    %v3275 = vpop.permute.xlu0 %3274
    %3276 = vrot.lane.b32.xlu0 %v3226, 26
    %v3277 = vpop.permute.xlu0 %3276
    %3278 = vrot.lane.b32.xlu0 %v3230, 26
    %v3279 = vpop.permute.xlu0 %3278
    %3280 = vrot.lane.b32.xlu0 %v3232, 26
    %v3281 = vpop.permute.xlu0 %3280
    %vm3282 = vcmask 211968
    %v3283 = vsel %vm3282, %v3267, %v3269
    %v3284 = vsel %vm3282, %v3271, %v3273
    %v3285 = vsel %vm3282, %v3275, %v3277
    %v3286 = vsel %vm3282, %v3279, %v3281
    %3291 = vrot.lane.b32.xlu0 %v3214, 120
    %v3292 = vpop.permute.xlu0 %3291
    %3293 = vrot.lane.b32.xlu0 %v3220, 120
    %v3294 = vpop.permute.xlu0 %3293
    %3295 = vrot.lane.b32.xlu0 %v3226, 120
    %v3296 = vpop.permute.xlu0 %3295
    %3297 = vrot.lane.b32.xlu0 %v3232, 120
    %v3298 = vpop.permute.xlu0 %3297
    %3303 = vrot.lane.b32.xlu0 %v3214, 86
    %v3304 = vpop.permute.xlu0 %3303
    %3305 = vrot.lane.b32.xlu0 %v3220, 86
    %v3306 = vpop.permute.xlu0 %3305
    %3307 = vrot.lane.b32.xlu0 %v3226, 86
    %v3308 = vpop.permute.xlu0 %3307
    %3309 = vrot.lane.b32.xlu0 %v3232, 86
    %v3310 = vpop.permute.xlu0 %3309
    %3315 = vrot.lane.b32.xlu0 %v3214, 52
    %v3316 = vpop.permute.xlu0 %3315
    %3317 = vrot.lane.b32.xlu0 %v3220, 52
    %v3318 = vpop.permute.xlu0 %3317
    %3319 = vrot.lane.b32.xlu0 %v3226, 52
    %v3320 = vpop.permute.xlu0 %3319
    %3321 = vrot.lane.b32.xlu0 %v3232, 52
    %v3322 = vpop.permute.xlu0 %3321
    %v3327 = vld [vmem:[#allocation15] sm:$0xff]
    %v3328 = vld [vmem:[#allocation15 + $0x8] sm:$0xff]
    %v3329 = vld [vmem:[#allocation15 + $0x10] sm:$0xff]
    %v3330 = vld [vmem:[#allocation15 + $0x18] sm:$0xff]
    %vm3331 = vcmask 785408
    %v3333 = vsel %vm3331, %v3328, 0
    %v3336 = vsel %vm3331, %v3330, 0
    %3338 = vmatprep.subr.mxu0 0.0
    %3339 = vmatpush1.msra.mxu0 %v3286
    %3340 = vmatprep.subr.mxu0 0.0
    %3341 = vmatpush1.msra.mxu0 %v3285
    %3342 = vmatprep.subr.mxu0 0.0
    %3343 = vmatpush1.msra.mxu0 %v3284
    %3344 = vmatprep.subr.mxu0 0.0
    %3345 = vmatpush1.msra.mxu0 %v3283
    %3346 = vmatprep.subr.mxu0 0.0
    %3347 = vmatpush1.msra.mxu0 %v3257
    %3348 = vmatprep.subr.mxu0 0.0
    %3349 = vmatpush1.msra.mxu0 %v3255
    %3350 = vmatprep.subr.mxu0 0.0
    %3351 = vmatpush1.msra.mxu0 %v3253
    %3352 = vmatprep.subr.mxu0 0.0
    %3353 = vmatpush1.msra.mxu0 %v3251
    %3354 = vmatprep.subr.mxu0 0.0
    %3355 = vmatpush1.msra.mxu0 %v3245
    %3356 = vmatprep.subr.mxu0 0.0
    %3357 = vmatpush1.msra.mxu0 %v3243
    %3358 = vmatprep.subr.mxu0 0.0
    %3359 = vmatpush1.msra.mxu0 %v3241
    %3360 = vmatprep.subr.mxu0 0.0
    %3361 = vmatpush1.msra.mxu0 %v3239
    %3362 = vmatprep.subr.mxu0 0.0
    %3363 = vmatpush1.msra.mxu0 %v3230
    %3364 = vmatprep.subr.mxu0 0.0
    %3365 = vmatpush1.msra.mxu0 %v3224
    %3366 = vmatprep.subr.mxu0 0.0
    %3367 = vmatpush1.msra.mxu0 %v3218
    %3368 = vmatprep.subr.mxu0 0.0
    %3369 = vmatpush1.msra.mxu0 %v3212
    %3370 = vmatprep.subr.mxu0 0.0
    %3371 = vmatpush2.msra.mxu0 0.0
    %3372 = vmatprep.subr.mxu0 0.0
    %3373 = vmatpush2.msra.mxu0 0.0
    %3374 = vmatprep.subr.mxu0 0.0
    %3375 = vmatpush2.msra.mxu0 0.0
    %3376 = vmatprep.subr.mxu0 0.0
    %3377 = vmatpush2.msra.mxu0 0.0
    %3378 = vmatprep.subr.mxu0 0.0
    %3379 = vmatpush2.msra.mxu0 %v3322
    %3380 = vmatprep.subr.mxu0 0.0
    %3381 = vmatpush2.msra.mxu0 %v3320
    %3382 = vmatprep.subr.mxu0 0.0
    %3383 = vmatpush2.msra.mxu0 %v3318
    %3384 = vmatprep.subr.mxu0 0.0
    %3385 = vmatpush2.msra.mxu0 %v3316
    %3386 = vmatprep.subr.mxu0 0.0
    %3387 = vmatpush2.msra.mxu0 %v3310
    %3388 = vmatprep.subr.mxu0 0.0
    %3389 = vmatpush2.msra.mxu0 %v3308
    %3390 = vmatprep.subr.mxu0 0.0
    %3391 = vmatpush2.msra.mxu0 %v3306
    %3392 = vmatprep.subr.mxu0 0.0
    %3393 = vmatpush2.msra.mxu0 %v3304
    %3394 = vmatprep.subr.mxu0 0.0
    %3395 = vmatpush2.msra.mxu0 %v3298
    %3396 = vmatprep.subr.mxu0 0.0
    %3397 = vmatpush2.msra.mxu0 %v3296
    %3398 = vmatprep.subr.mxu0 0.0
    %3399 = vmatpush2.msra.mxu0 %v3294
    %3400 = vmatprep.subr.mxu0 0.0
    %3401 = vmatpush2.msra.mxu0 %v3292
    %3402 = vmatprep.mubr.f32.mxu0 %v3333
    %3403 = vmatmul.mubr.f32.gmra.mxu0 %v3327
    %v3404 = vpop.f32.mrf.mxu0
    %v3405 = vadd.f32 0.0, %v3404
    %v3406 = vpop.f32.mrf.mxu0
    %3407 = vmatprep.mubr.f32.mxu0 %v3336
    %3408 = vmatmul.mubr.f32.gmra.mxu0 %v3329
    %v3409 = vpop.f32.mrf.mxu0
    %v3410 = vadd.f32 0.0, %v3409
    %v3411 = vpop.f32.mrf.mxu0
    %3412 = vdwg.mxu0
    %v3413 = vld [vmem:[#allocation16] sm:$0xff]
    %v3414 = vld [vmem:[#allocation16 + $0x8] sm:$0xff]
    %3416 = vset.pattern.permute.xlu0 0
    %3417 = vperm.xlu0 %3416, %v3413
    %v3418 = vpop.permute.xlu0 %3417
    %3421 = vset.pattern.permute.xlu0 0
    %3422 = vperm.xlu0 %3421, %v3414
    %v3423 = vpop.permute.xlu0 %3422
    %v3425 = vmul.f32 %v3405, %v3418
    %v3426 = vmul.f32 %v3410, %v3423
    %v3427 = vld [vmem:[#allocation18] sm:$0xff]
    %v3428 = vld [vmem:[#allocation18 + $0x8] sm:$0xff]
    %3430 = vset.pattern.permute.xlu0 0
    %3431 = vperm.xlu0 %3430, %v3427
    %v3432 = vpop.permute.xlu0 %3431
    %3435 = vset.pattern.permute.xlu0 0
    %3436 = vperm.xlu0 %3435, %v3428
    %v3437 = vpop.permute.xlu0 %3436
    %v3439 = vadd.f32 %v3425, %v3432
    %v3440 = vadd.f32 %v3426, %v3437
    %v3441 = vmax.f32 %v3439, 0.0
    %v3442 = vmax.f32 %v3440, 0.0
    %v3443 = vld [vmem:[#allocation19] sm:$0xff]
    %v3444 = vld [vmem:[#allocation19 + $0x8] sm:$0xff]
    %v3445 = vld [vmem:[#allocation19 + $0x10] sm:$0xff]
    %v3446 = vld [vmem:[#allocation19 + $0x18] sm:$0xff]
    %v3447 = vld [vmem:[#allocation19 + $0x20] sm:$0xff]
    %v3448 = vld [vmem:[#allocation19 + $0x28] sm:$0xff]
    %v3449 = vld [vmem:[#allocation19 + $0x30] sm:$0xff]
    %v3450 = vld [vmem:[#allocation19 + $0x38] sm:$0xff]
    %v3451 = vld [vmem:[#allocation19 + $0x40] sm:$0x3]
    %v3452 = vld [vmem:[#allocation19 + $0x48] sm:$0x3]
    %vm3453 = vcmask 277504
    %v3455 = vsel %vm3453, %v3441, 0
    %v3458 = vsel %vm3453, %v3442, 0
    %v3461 = vsel %vm3138, %v3451, 0
    %v3464 = vsel %vm3138, %v3452, 0
    %3466 = vmatprep.subr.mxu0 0.0
    %3467 = vmatpush1.msra.mxu0 0.0
    %3468 = vmatprep.subr.mxu0 0.0
    %3469 = vmatpush1.msra.mxu0 0.0
    %3470 = vmatprep.subr.mxu0 0.0
    %3471 = vmatpush1.msra.mxu0 0.0
    %3472 = vmatprep.subr.mxu0 0.0
    %3473 = vmatpush1.msra.mxu0 0.0
    %3474 = vmatprep.subr.mxu0 0.0
    %3475 = vmatpush1.msra.mxu0 0.0
    %3476 = vmatprep.subr.mxu0 0.0
    %3477 = vmatpush1.msra.mxu0 0.0
    %3478 = vmatprep.subr.mxu0 0.0
    %3479 = vmatpush1.msra.mxu0 0.0
    %3480 = vmatprep.subr.mxu0 0.0
    %3481 = vmatpush1.msra.mxu0 0.0
    %3482 = vmatprep.subr.mxu0 0.0
    %3483 = vmatpush1.msra.mxu0 0.0
    %3484 = vmatprep.subr.mxu0 0.0
    %3485 = vmatpush1.msra.mxu0 0.0
    %3486 = vmatprep.subr.mxu0 0.0
    %3487 = vmatpush1.msra.mxu0 0.0
    %3488 = vmatprep.subr.mxu0 %v3464
    %3489 = vmatpush1.msra.mxu0 %v3461
    %3490 = vmatprep.subr.mxu0 %v3450
    %3491 = vmatpush1.msra.mxu0 %v3449
    %3492 = vmatprep.subr.mxu0 %v3448
    %3493 = vmatpush1.msra.mxu0 %v3447
    %3494 = vmatprep.subr.mxu0 %v3446
    %3495 = vmatpush1.msra.mxu0 %v3445
    %3496 = vmatprep.subr.mxu0 %v3444
    %3497 = vmatpush1.msra.mxu0 %v3443
    %3498 = vmatprep.subr.mxu0 0.0
    %3499 = vmatpush2.msra.mxu0 0.0
    %3500 = vmatprep.subr.mxu0 0.0
    %3501 = vmatpush2.msra.mxu0 0.0
    %3502 = vmatprep.subr.mxu0 0.0
    %3503 = vmatpush2.msra.mxu0 0.0
    %3504 = vmatprep.subr.mxu0 0.0
    %3505 = vmatpush2.msra.mxu0 0.0
    %3506 = vmatprep.subr.mxu0 0.0
    %3507 = vmatpush2.msra.mxu0 0.0
    %3508 = vmatprep.subr.mxu0 0.0
    %3509 = vmatpush2.msra.mxu0 0.0
    %3510 = vmatprep.subr.mxu0 0.0
    %3511 = vmatpush2.msra.mxu0 0.0
    %3512 = vmatprep.subr.mxu0 0.0
    %3513 = vmatpush2.msra.mxu0 0.0
    %3514 = vmatprep.subr.mxu0 0.0
    %3515 = vmatpush2.msra.mxu0 0.0
    %3516 = vmatprep.subr.mxu0 0.0
    %3517 = vmatpush2.msra.mxu0 0.0
    %3518 = vmatprep.subr.mxu0 0.0
    %3519 = vmatpush2.msra.mxu0 0.0
    %3520 = vmatprep.subr.mxu0 0.0
    %3521 = vmatpush2.msra.mxu0 0.0
    %3522 = vmatprep.subr.mxu0 0.0
    %3523 = vmatpush2.msra.mxu0 0.0
    %3524 = vmatprep.subr.mxu0 0.0
    %3525 = vmatpush2.msra.mxu0 0.0
    %3526 = vmatprep.subr.mxu0 0.0
    %3527 = vmatpush2.msra.mxu0 0.0
    %3528 = vmatprep.subr.mxu0 0.0
    %3529 = vmatpush2.msra.mxu0 0.0
    %3530 = vmatprep.mubr.f32.mxu0 0.0
    %3531 = vmatmul.mubr.f32.gmra.mxu0 %v3455
    %v3532 = vpop.f32.mrf.mxu0
    %v3533 = vadd.f32 0.0, %v3532
    %v3534 = vpop.f32.mrf.mxu0
    %v3535 = vadd.f32 0.0, %v3534
    %3536 = vmatprep.mubr.f32.mxu0 0.0
    %3537 = vmatmul.mubr.f32.gmra.mxu0 %v3458
    %v3538 = vpop.f32.mrf.mxu0
    %v3539 = vadd.f32 0.0, %v3538
    %v3540 = vpop.f32.mrf.mxu0
    %v3541 = vadd.f32 0.0, %v3540
    %3542 = vdwg.mxu0
    %3545 = vrot.lane.b32.xlu0 %v3533, 98
    %v3546 = vpop.permute.xlu0 %3545
    %3547 = vrot.lane.b32.xlu0 %v3539, 98
    %v3548 = vpop.permute.xlu0 %3547
    %3551 = vrot.lane.b32.xlu0 %v3533, 68
    %v3552 = vpop.permute.xlu0 %3551
    %3553 = vrot.lane.b32.xlu0 %v3539, 68
    %v3554 = vpop.permute.xlu0 %3553
    %3557 = vrot.lane.b32.xlu0 %v3533, 38
    %v3558 = vpop.permute.xlu0 %3557
    %3559 = vrot.lane.b32.xlu0 %v3539, 38
    %v3560 = vpop.permute.xlu0 %3559
    %3565 = vrot.lane.b32.xlu0 %v3533, 8
    %v3566 = vpop.permute.xlu0 %3565
    %3567 = vrot.lane.b32.xlu0 %v3535, 8
    %v3568 = vpop.permute.xlu0 %3567
    %3569 = vrot.lane.b32.xlu0 %v3539, 8
    %v3570 = vpop.permute.xlu0 %3569
    %3571 = vrot.lane.b32.xlu0 %v3541, 8
    %v3572 = vpop.permute.xlu0 %3571
    %vm3573 = vcmask 64512
    %v3574 = vsel %vm3573, %v3566, %v3568
    %v3575 = vsel %vm3573, %v3570, %v3572
    %v3578 = vld [vmem:[#allocation21] sm:$0xff]
    %vm3579 = vcmask 654336
    %v3581 = vsel %vm3579, %v3578, 0
    %3583 = vmatprep.subr.mxu0 0.0
    %3584 = vmatpush1.msra.mxu0 0.0
    %3585 = vmatprep.subr.mxu0 0.0
    %3586 = vmatpush1.msra.mxu0 0.0
    %3587 = vmatprep.subr.mxu0 0.0
    %3588 = vmatpush1.msra.mxu0 0.0
    %3589 = vmatprep.subr.mxu0 0.0
    %3590 = vmatpush1.msra.mxu0 0.0
    %3591 = vmatprep.subr.mxu0 0.0
    %3592 = vmatpush1.msra.mxu0 0.0
    %3593 = vmatprep.subr.mxu0 0.0
    %3594 = vmatpush1.msra.mxu0 0.0
    %3595 = vmatprep.subr.mxu0 0.0
    %3596 = vmatpush1.msra.mxu0 %v3575
    %3597 = vmatprep.subr.mxu0 0.0
    %3598 = vmatpush1.msra.mxu0 %v3574
    %3599 = vmatprep.subr.mxu0 0.0
    %3600 = vmatpush1.msra.mxu0 %v3560
    %3601 = vmatprep.subr.mxu0 0.0
    %3602 = vmatpush1.msra.mxu0 %v3558
    %3603 = vmatprep.subr.mxu0 0.0
    %3604 = vmatpush1.msra.mxu0 %v3554
    %3605 = vmatprep.subr.mxu0 0.0
    %3606 = vmatpush1.msra.mxu0 %v3552
    %3607 = vmatprep.subr.mxu0 0.0
    %3608 = vmatpush1.msra.mxu0 %v3548
    %3609 = vmatprep.subr.mxu0 0.0
    %3610 = vmatpush1.msra.mxu0 %v3546
    %3611 = vmatprep.subr.mxu0 0.0
    %3612 = vmatpush1.msra.mxu0 %v3539
    %3613 = vmatprep.subr.mxu0 0.0
    %3614 = vmatpush1.msra.mxu0 %v3533
    %3615 = vmatprep.subr.mxu0 0.0
    %3616 = vmatpush2.msra.mxu0 0.0
    %3617 = vmatprep.subr.mxu0 0.0
    %3618 = vmatpush2.msra.mxu0 0.0
    %3619 = vmatprep.subr.mxu0 0.0
    %3620 = vmatpush2.msra.mxu0 0.0
    %3621 = vmatprep.subr.mxu0 0.0
    %3622 = vmatpush2.msra.mxu0 0.0
    %3623 = vmatprep.subr.mxu0 0.0
    %3624 = vmatpush2.msra.mxu0 0.0
    %3625 = vmatprep.subr.mxu0 0.0
    %3626 = vmatpush2.msra.mxu0 0.0
    %3627 = vmatprep.subr.mxu0 0.0
    %3628 = vmatpush2.msra.mxu0 0.0
    %3629 = vmatprep.subr.mxu0 0.0
    %3630 = vmatpush2.msra.mxu0 0.0
    %3631 = vmatprep.subr.mxu0 0.0
    %3632 = vmatpush2.msra.mxu0 0.0
    %3633 = vmatprep.subr.mxu0 0.0
    %3634 = vmatpush2.msra.mxu0 0.0
    %3635 = vmatprep.subr.mxu0 0.0
    %3636 = vmatpush2.msra.mxu0 0.0
    %3637 = vmatprep.subr.mxu0 0.0
    %3638 = vmatpush2.msra.mxu0 0.0
    %3639 = vmatprep.subr.mxu0 0.0
    %3640 = vmatpush2.msra.mxu0 0.0
    %3641 = vmatprep.subr.mxu0 0.0
    %3642 = vmatpush2.msra.mxu0 0.0
    %3643 = vmatprep.subr.mxu0 0.0
    %3644 = vmatpush2.msra.mxu0 0.0
    %3645 = vmatprep.subr.mxu0 0.0
    %3646 = vmatpush2.msra.mxu0 0.0
    %3647 = vmatprep.mubr.f32.mxu0 0.0
    %3648 = vmatmul.mubr.f32.gmra.mxu0 %v3581
    %v3649 = vpop.f32.mrf.mxu0
    %v3650 = vadd.f32 0.0, %v3649
    %v3651 = vpop.f32.mrf.mxu0
    %3652 = vdwg.mxu0
    %v3653 = vld [vmem:[#allocation22] sm:$0xff]
    %3655 = vset.pattern.permute.xlu0 0
    %3656 = vperm.xlu0 %3655, %v3653
    %v3657 = vpop.permute.xlu0 %3656
    %v3659 = vmul.f32 %v3650, %v3657
    %v3660 = vld [vmem:[#allocation24] sm:$0xff]
    %3662 = vset.pattern.permute.xlu0 0
    %3663 = vperm.xlu0 %3662, %v3660
    %v3664 = vpop.permute.xlu0 %3663
    %v3666 = vadd.f32 %v3659, %v3664
    %v3667 = vmax.f32 %v3666, 0.0
    %v3668 = vld [vmem:[#allocation25] sm:$0xff]
    %v3669 = vld [vmem:[#allocation25 + $0x8] sm:$0xff]
    %v3670 = vld [vmem:[#allocation25 + $0x10] sm:$0xff]
    %v3671 = vld [vmem:[#allocation25 + $0x18] sm:$0xff]
    %v3672 = vld [vmem:[#allocation25 + $0x20] sm:$0xff]
    %v3673 = vld [vmem:[#allocation25 + $0x28] sm:$0xff]
    %v3674 = vld [vmem:[#allocation25 + $0x30] sm:$0x3f]
    %v3675 = vld [vmem:[#allocation25 + $0x38] sm:$0x3f]
    %vm3676 = vcmask 244736
    %v3678 = vsel %vm3676, %v3667, 0
    %vm3680 = vcmask 1045504
    %v3682 = vsel %vm3680, %v3674, 0
    %v3685 = vsel %vm3680, %v3675, 0
    %3687 = vmatprep.subr.mxu0 0.0
    %3688 = vmatpush1.msra.mxu0 0.0
    %3689 = vmatprep.subr.mxu0 0.0
    %3690 = vmatpush1.msra.mxu0 0.0
    %3691 = vmatprep.subr.mxu0 0.0
    %3692 = vmatpush1.msra.mxu0 0.0
    %3693 = vmatprep.subr.mxu0 0.0
    %3694 = vmatpush1.msra.mxu0 0.0
    %3695 = vmatprep.subr.mxu0 0.0
    %3696 = vmatpush1.msra.mxu0 0.0
    %3697 = vmatprep.subr.mxu0 0.0
    %3698 = vmatpush1.msra.mxu0 0.0
    %3699 = vmatprep.subr.mxu0 0.0
    %3700 = vmatpush1.msra.mxu0 0.0
    %3701 = vmatprep.subr.mxu0 0.0
    %3702 = vmatpush1.msra.mxu0 0.0
    %3703 = vmatprep.subr.mxu0 0.0
    %3704 = vmatpush1.msra.mxu0 0.0
    %3705 = vmatprep.subr.mxu0 0.0
    %3706 = vmatpush1.msra.mxu0 0.0
    %3707 = vmatprep.subr.mxu0 0.0
    %3708 = vmatpush1.msra.mxu0 0.0
    %3709 = vmatprep.subr.mxu0 0.0
    %3710 = vmatpush1.msra.mxu0 0.0
    %3711 = vmatprep.subr.mxu0 %v3685
    %3712 = vmatpush1.msra.mxu0 %v3682
    %3713 = vmatprep.subr.mxu0 %v3673
    %3714 = vmatpush1.msra.mxu0 %v3672
    %3715 = vmatprep.subr.mxu0 %v3671
    %3716 = vmatpush1.msra.mxu0 %v3670
    %3717 = vmatprep.subr.mxu0 %v3669
    %3718 = vmatpush1.msra.mxu0 %v3668
    %3719 = vmatprep.subr.mxu0 0.0
    %3720 = vmatpush2.msra.mxu0 0.0
    %3721 = vmatprep.subr.mxu0 0.0
    %3722 = vmatpush2.msra.mxu0 0.0
    %3723 = vmatprep.subr.mxu0 0.0
    %3724 = vmatpush2.msra.mxu0 0.0
    %3725 = vmatprep.subr.mxu0 0.0
    %3726 = vmatpush2.msra.mxu0 0.0
    %3727 = vmatprep.subr.mxu0 0.0
    %3728 = vmatpush2.msra.mxu0 0.0
    %3729 = vmatprep.subr.mxu0 0.0
    %3730 = vmatpush2.msra.mxu0 0.0
    %3731 = vmatprep.subr.mxu0 0.0
    %3732 = vmatpush2.msra.mxu0 0.0
    %3733 = vmatprep.subr.mxu0 0.0
    %3734 = vmatpush2.msra.mxu0 0.0
    %3735 = vmatprep.subr.mxu0 0.0
    %3736 = vmatpush2.msra.mxu0 0.0
    %3737 = vmatprep.subr.mxu0 0.0
    %3738 = vmatpush2.msra.mxu0 0.0
    %3739 = vmatprep.subr.mxu0 0.0
    %3740 = vmatpush2.msra.mxu0 0.0
    %3741 = vmatprep.subr.mxu0 0.0
    %3742 = vmatpush2.msra.mxu0 0.0
    %3743 = vmatprep.subr.mxu0 0.0
    %3744 = vmatpush2.msra.mxu0 0.0
    %3745 = vmatprep.subr.mxu0 0.0
    %3746 = vmatpush2.msra.mxu0 0.0
    %3747 = vmatprep.subr.mxu0 0.0
    %3748 = vmatpush2.msra.mxu0 0.0
    %3749 = vmatprep.subr.mxu0 0.0
    %3750 = vmatpush2.msra.mxu0 0.0
    %3751 = vmatprep.mubr.f32.mxu0 0.0
    %3752 = vmatmul.mubr.f32.gmra.mxu0 %v3678
    %v3753 = vpop.f32.mrf.mxu0
    %v3754 = vadd.f32 0.0, %v3753
    %v3755 = vpop.f32.mrf.mxu0
    %v3756 = vadd.f32 0.0, %v3755
    %3757 = vdwg.mxu0
    %3759 = vrot.lane.b32.xlu0 %v3754, 106
    %v3760 = vpop.permute.xlu0 %3759
    %3762 = vrot.lane.b32.xlu0 %v3754, 84
    %v3763 = vpop.permute.xlu0 %3762
    %3765 = vrot.lane.b32.xlu0 %v3754, 62
    %v3766 = vpop.permute.xlu0 %3765
    %3768 = vrot.lane.b32.xlu0 %v3754, 40
    %v3769 = vpop.permute.xlu0 %3768
    %3772 = vrot.lane.b32.xlu0 %v3754, 18
    %v3773 = vpop.permute.xlu0 %3772
    %3774 = vrot.lane.b32.xlu0 %v3756, 18
    %v3775 = vpop.permute.xlu0 %3774
    %vm3776 = vcmask 146432
    %v3777 = vsel %vm3776, %v3773, %v3775
    %3779 = vrot.lane.b32.xlu0 %v3756, 124
    %v3780 = vpop.permute.xlu0 %3779
    %v3782 = vld [vmem:[#allocation27] sm:$0xff]
    %vm3783 = vcmask 457728
    %v3785 = vsel %vm3783, %v3782, 0
    %3787 = vmatprep.subr.mxu0 0.0
    %3788 = vmatpush1.msra.mxu0 0.0
    %3789 = vmatprep.subr.mxu0 0.0
    %3790 = vmatpush1.msra.mxu0 0.0
    %3791 = vmatprep.subr.mxu0 0.0
    %3792 = vmatpush1.msra.mxu0 0.0
    %3793 = vmatprep.subr.mxu0 0.0
    %3794 = vmatpush1.msra.mxu0 0.0
    %3795 = vmatprep.subr.mxu0 0.0
    %3796 = vmatpush1.msra.mxu0 0.0
    %3797 = vmatprep.subr.mxu0 0.0
    %3798 = vmatpush1.msra.mxu0 0.0
    %3799 = vmatprep.subr.mxu0 0.0
    %3800 = vmatpush1.msra.mxu0 0.0
    %3801 = vmatprep.subr.mxu0 0.0
    %3802 = vmatpush1.msra.mxu0 0.0
    %3803 = vmatprep.subr.mxu0 0.0
    %3804 = vmatpush1.msra.mxu0 0.0
    %3805 = vmatprep.subr.mxu0 0.0
    %3806 = vmatpush1.msra.mxu0 %v3780
    %3807 = vmatprep.subr.mxu0 0.0
    %3808 = vmatpush1.msra.mxu0 %v3777
    %3809 = vmatprep.subr.mxu0 0.0
    %3810 = vmatpush1.msra.mxu0 %v3769
    %3811 = vmatprep.subr.mxu0 0.0
    %3812 = vmatpush1.msra.mxu0 %v3766
    %3813 = vmatprep.subr.mxu0 0.0
    %3814 = vmatpush1.msra.mxu0 %v3763
    %3815 = vmatprep.subr.mxu0 0.0
    %3816 = vmatpush1.msra.mxu0 %v3760
    %3817 = vmatprep.subr.mxu0 0.0
    %3818 = vmatpush1.msra.mxu0 %v3754
    %3819 = vmatprep.subr.mxu0 0.0
    %3820 = vmatpush2.msra.mxu0 0.0
    %3821 = vmatprep.subr.mxu0 0.0
    %3822 = vmatpush2.msra.mxu0 0.0
    %3823 = vmatprep.subr.mxu0 0.0
    %3824 = vmatpush2.msra.mxu0 0.0
    %3825 = vmatprep.subr.mxu0 0.0
    %3826 = vmatpush2.msra.mxu0 0.0
    %3827 = vmatprep.subr.mxu0 0.0
    %3828 = vmatpush2.msra.mxu0 0.0
    %3829 = vmatprep.subr.mxu0 0.0
    %3830 = vmatpush2.msra.mxu0 0.0
    %3831 = vmatprep.subr.mxu0 0.0
    %3832 = vmatpush2.msra.mxu0 0.0
    %3833 = vmatprep.subr.mxu0 0.0
    %3834 = vmatpush2.msra.mxu0 0.0
    %3835 = vmatprep.subr.mxu0 0.0
    %3836 = vmatpush2.msra.mxu0 0.0
    %3837 = vmatprep.subr.mxu0 0.0
    %3838 = vmatpush2.msra.mxu0 0.0
    %3839 = vmatprep.subr.mxu0 0.0
    %3840 = vmatpush2.msra.mxu0 0.0
    %3841 = vmatprep.subr.mxu0 0.0
    %3842 = vmatpush2.msra.mxu0 0.0
    %3843 = vmatprep.subr.mxu0 0.0
    %3844 = vmatpush2.msra.mxu0 0.0
    %3845 = vmatprep.subr.mxu0 0.0
    %3846 = vmatpush2.msra.mxu0 0.0
    %3847 = vmatprep.subr.mxu0 0.0
    %3848 = vmatpush2.msra.mxu0 0.0
    %3849 = vmatprep.subr.mxu0 0.0
    %3850 = vmatpush2.msra.mxu0 0.0
    %3851 = vmatprep.mubr.f32.mxu0 0.0
    %3852 = vmatmul.mubr.f32.gmra.mxu0 %v3785
    %v3853 = vpop.f32.mrf.mxu0
    %v3854 = vadd.f32 0.0, %v3853
    %v3855 = vpop.f32.mrf.mxu0
    %3856 = vdwg.mxu0
    %v3857 = vld [vmem:[#allocation28] sm:$0xff]
    %3859 = vset.pattern.permute.xlu0 0
    %3860 = vperm.xlu0 %3859, %v3857
    %v3861 = vpop.permute.xlu0 %3860
    %v3863 = vmul.f32 %v3854, %v3861
    %v3864 = vld [vmem:[#allocation30] sm:$0xff]
    %3866 = vset.pattern.permute.xlu0 0
    %3867 = vperm.xlu0 %3866, %v3864
    %v3868 = vpop.permute.xlu0 %3867
    %v3870 = vadd.f32 %v3863, %v3868
    %v3871 = vld [vmem:[#allocation31] sm:$0xff]
    %v3872 = vld [vmem:[#allocation31 + $0x8] sm:$0xff]
    %v3873 = vld [vmem:[#allocation31 + $0x10] sm:$0x3f]
    %vm3874 = vcmask 179200
    %v3876 = vsel %vm3874, %v3870, 0
    %v3879 = vsel %vm3680, %v3873, 0
    %3881 = vmatprep.subr.mxu0 0.0
    %3882 = vmatpush1.msra.mxu0 0.0
    %3883 = vmatprep.subr.mxu0 0.0
    %3884 = vmatpush1.msra.mxu0 0.0
    %3885 = vmatprep.subr.mxu0 0.0
    %3886 = vmatpush1.msra.mxu0 0.0
    %3887 = vmatprep.subr.mxu0 0.0
    %3888 = vmatpush1.msra.mxu0 0.0
    %3889 = vmatprep.subr.mxu0 0.0
    %3890 = vmatpush1.msra.mxu0 0.0
    %3891 = vmatprep.subr.mxu0 0.0
    %3892 = vmatpush1.msra.mxu0 0.0
    %3893 = vmatprep.subr.mxu0 0.0
    %3894 = vmatpush1.msra.mxu0 0.0
    %3895 = vmatprep.subr.mxu0 0.0
    %3896 = vmatpush1.msra.mxu0 0.0
    %3897 = vmatprep.subr.mxu0 0.0
    %3898 = vmatpush1.msra.mxu0 0.0
    %3899 = vmatprep.subr.mxu0 0.0
    %3900 = vmatpush1.msra.mxu0 0.0
    %3901 = vmatprep.subr.mxu0 0.0
    %3902 = vmatpush1.msra.mxu0 0.0
    %3903 = vmatprep.subr.mxu0 0.0
    %3904 = vmatpush1.msra.mxu0 0.0
    %3905 = vmatprep.subr.mxu0 0.0
    %3906 = vmatpush1.msra.mxu0 0.0
    %3907 = vmatprep.subr.mxu0 0.0
    %3908 = vmatpush1.msra.mxu0 %v3879
    %3909 = vmatprep.subr.mxu0 0.0
    %3910 = vmatpush1.msra.mxu0 %v3872
    %3911 = vmatprep.subr.mxu0 0.0
    %3912 = vmatpush1.msra.mxu0 %v3871
    %3913 = vmatprep.subr.mxu0 0.0
    %3914 = vmatpush2.msra.mxu0 0.0
    %3915 = vmatprep.subr.mxu0 0.0
    %3916 = vmatpush2.msra.mxu0 0.0
    %3917 = vmatprep.subr.mxu0 0.0
    %3918 = vmatpush2.msra.mxu0 0.0
    %3919 = vmatprep.subr.mxu0 0.0
    %3920 = vmatpush2.msra.mxu0 0.0
    %3921 = vmatprep.subr.mxu0 0.0
    %3922 = vmatpush2.msra.mxu0 0.0
    %3923 = vmatprep.subr.mxu0 0.0
    %3924 = vmatpush2.msra.mxu0 0.0
    %3925 = vmatprep.subr.mxu0 0.0
    %3926 = vmatpush2.msra.mxu0 0.0
    %3927 = vmatprep.subr.mxu0 0.0
    %3928 = vmatpush2.msra.mxu0 0.0
    %3929 = vmatprep.subr.mxu0 0.0
    %3930 = vmatpush2.msra.mxu0 0.0
    %3931 = vmatprep.subr.mxu0 0.0
    %3932 = vmatpush2.msra.mxu0 0.0
    %3933 = vmatprep.subr.mxu0 0.0
    %3934 = vmatpush2.msra.mxu0 0.0
    %3935 = vmatprep.subr.mxu0 0.0
    %3936 = vmatpush2.msra.mxu0 0.0
    %3937 = vmatprep.subr.mxu0 0.0
    %3938 = vmatpush2.msra.mxu0 0.0
    %3939 = vmatprep.subr.mxu0 0.0
    %3940 = vmatpush2.msra.mxu0 0.0
    %3941 = vmatprep.subr.mxu0 0.0
    %3942 = vmatpush2.msra.mxu0 0.0
    %3943 = vmatprep.subr.mxu0 0.0
    %3944 = vmatpush2.msra.mxu0 0.0
    %3945 = vmatprep.mubr.f32.mxu0 0.0
    %3946 = vmatmul.mubr.f32.gmra.mxu0 %v3876
    %v3947 = vpop.f32.mrf.mxu0
    %v3948 = vadd.f32 0.0, %v3947
    %v3949 = vpop.f32.mrf.mxu0
    %3950 = vdwg.mxu0
    %3952 = vrot.lane.b32.xlu0 %v3948, 110
    %v3953 = vpop.permute.xlu0 %3952
    %3955 = vrot.lane.b32.xlu0 %v3948, 92
    %v3956 = vpop.permute.xlu0 %3955
    %3958 = vrot.lane.b32.xlu0 %v3948, 74
    %v3959 = vpop.permute.xlu0 %3958
    %3961 = vrot.lane.b32.xlu0 %v3948, 56
    %v3962 = vpop.permute.xlu0 %3961
    %v3964 = vld [vmem:[#allocation33] sm:$0xff]
    %vm3965 = vcmask 326656
    %v3967 = vsel %vm3965, %v3964, 0
    %3969 = vmatprep.subr.mxu0 0.0
    %3970 = vmatpush1.msra.mxu0 0.0
    %3971 = vmatprep.subr.mxu0 0.0
    %3972 = vmatpush1.msra.mxu0 0.0
    %3973 = vmatprep.subr.mxu0 0.0
    %3974 = vmatpush1.msra.mxu0 0.0
    %3975 = vmatprep.subr.mxu0 0.0
    %3976 = vmatpush1.msra.mxu0 0.0
    %3977 = vmatprep.subr.mxu0 0.0
    %3978 = vmatpush1.msra.mxu0 0.0
    %3979 = vmatprep.subr.mxu0 0.0
    %3980 = vmatpush1.msra.mxu0 0.0
    %3981 = vmatprep.subr.mxu0 0.0
    %3982 = vmatpush1.msra.mxu0 0.0
    %3983 = vmatprep.subr.mxu0 0.0
    %3984 = vmatpush1.msra.mxu0 0.0
    %3985 = vmatprep.subr.mxu0 0.0
    %3986 = vmatpush1.msra.mxu0 0.0
    %3987 = vmatprep.subr.mxu0 0.0
    %3988 = vmatpush1.msra.mxu0 0.0
    %3989 = vmatprep.subr.mxu0 0.0
    %3990 = vmatpush1.msra.mxu0 0.0
    %3991 = vmatprep.subr.mxu0 0.0
    %3992 = vmatpush1.msra.mxu0 %v3962
    %3993 = vmatprep.subr.mxu0 0.0
    %3994 = vmatpush1.msra.mxu0 %v3959
    %3995 = vmatprep.subr.mxu0 0.0
    %3996 = vmatpush1.msra.mxu0 %v3956
    %3997 = vmatprep.subr.mxu0 0.0
    %3998 = vmatpush1.msra.mxu0 %v3953
    %3999 = vmatprep.subr.mxu0 0.0
    %4000 = vmatpush1.msra.mxu0 %v3948
    %4001 = vmatprep.subr.mxu0 0.0
    %4002 = vmatpush2.msra.mxu0 0.0
    %4003 = vmatprep.subr.mxu0 0.0
    %4004 = vmatpush2.msra.mxu0 0.0
    %4005 = vmatprep.subr.mxu0 0.0
    %4006 = vmatpush2.msra.mxu0 0.0
    %4007 = vmatprep.subr.mxu0 0.0
    %4008 = vmatpush2.msra.mxu0 0.0
    %4009 = vmatprep.subr.mxu0 0.0
    %4010 = vmatpush2.msra.mxu0 0.0
    %4011 = vmatprep.subr.mxu0 0.0
    %4012 = vmatpush2.msra.mxu0 0.0
    %4013 = vmatprep.subr.mxu0 0.0
    %4014 = vmatpush2.msra.mxu0 0.0
    %4015 = vmatprep.subr.mxu0 0.0
    %4016 = vmatpush2.msra.mxu0 0.0
    %4017 = vmatprep.subr.mxu0 0.0
    %4018 = vmatpush2.msra.mxu0 0.0
    %4019 = vmatprep.subr.mxu0 0.0
    %4020 = vmatpush2.msra.mxu0 0.0
    %4021 = vmatprep.subr.mxu0 0.0
    %4022 = vmatpush2.msra.mxu0 0.0
    %4023 = vmatprep.subr.mxu0 0.0
    %4024 = vmatpush2.msra.mxu0 0.0
    %4025 = vmatprep.subr.mxu0 0.0
    %4026 = vmatpush2.msra.mxu0 0.0
    %4027 = vmatprep.subr.mxu0 0.0
    %4028 = vmatpush2.msra.mxu0 0.0
    %4029 = vmatprep.subr.mxu0 0.0
    %4030 = vmatpush2.msra.mxu0 0.0
    %4031 = vmatprep.subr.mxu0 0.0
    %4032 = vmatpush2.msra.mxu0 0.0
    %4033 = vmatprep.mubr.f32.mxu0 0.0
    %4034 = vmatmul.mubr.f32.gmra.mxu0 %v3967
    %v4035 = vpop.f32.mrf.mxu0
    %v4036 = vadd.f32 0.0, %v4035
    %v4037 = vpop.f32.mrf.mxu0
    %4038 = vdwg.mxu0
    %v4039 = vld [vmem:[#allocation34] sm:$0xff]
    %4041 = vset.pattern.permute.xlu0 0
    %4042 = vperm.xlu0 %4041, %v4039
    %v4043 = vpop.permute.xlu0 %4042
    %v4045 = vmul.f32 %v4036, %v4043
    %v4046 = vld [vmem:[#allocation36] sm:$0xff]
    %4048 = vset.pattern.permute.xlu0 0
    %4049 = vperm.xlu0 %4048, %v4046
    %v4050 = vpop.permute.xlu0 %4049
    %v4052 = vadd.f32 %v4045, %v4050
    %v4053 = vld [vmem:[%s51] sm:$0xff]
    %v4054 = vld [vmem:[%s51 + $0x8] sm:$0xff]
    %v4055 = vld [vmem:[%s51 + $0x10] sm:$0x3]
    %v4057 = vsel %vm3776, %v4052, 0
    %v4060 = vsel %vm3138, %v4055, 0
    %4062 = vmatprep.subr.mxu0 0.0
    %4063 = vmatpush1.msra.mxu0 0.0
    %4064 = vmatprep.subr.mxu0 0.0
    %4065 = vmatpush1.msra.mxu0 0.0
    %4066 = vmatprep.subr.mxu0 0.0
    %4067 = vmatpush1.msra.mxu0 0.0
    %4068 = vmatprep.subr.mxu0 0.0
    %4069 = vmatpush1.msra.mxu0 0.0
    %4070 = vmatprep.subr.mxu0 0.0
    %4071 = vmatpush1.msra.mxu0 0.0
    %4072 = vmatprep.subr.mxu0 0.0
    %4073 = vmatpush1.msra.mxu0 0.0
    %4074 = vmatprep.subr.mxu0 0.0
    %4075 = vmatpush1.msra.mxu0 0.0
    %4076 = vmatprep.subr.mxu0 0.0
    %4077 = vmatpush1.msra.mxu0 0.0
    %4078 = vmatprep.subr.mxu0 0.0
    %4079 = vmatpush1.msra.mxu0 0.0
    %4080 = vmatprep.subr.mxu0 0.0
    %4081 = vmatpush1.msra.mxu0 0.0
    %4082 = vmatprep.subr.mxu0 0.0
    %4083 = vmatpush1.msra.mxu0 0.0
    %4084 = vmatprep.subr.mxu0 0.0
    %4085 = vmatpush1.msra.mxu0 0.0
    %4086 = vmatprep.subr.mxu0 0.0
    %4087 = vmatpush1.msra.mxu0 0.0
    %4088 = vmatprep.subr.mxu0 0.0
    %4089 = vmatpush1.msra.mxu0 %v4060
    %4090 = vmatprep.subr.mxu0 0.0
    %4091 = vmatpush1.msra.mxu0 %v4054
    %4092 = vmatprep.subr.mxu0 0.0
    %4093 = vmatpush1.msra.mxu0 %v4053
    %4094 = vmatprep.subr.mxu0 0.0
    %4095 = vmatpush2.msra.mxu0 0.0
    %4096 = vmatprep.subr.mxu0 0.0
    %4097 = vmatpush2.msra.mxu0 0.0
    %4098 = vmatprep.subr.mxu0 0.0
    %4099 = vmatpush2.msra.mxu0 0.0
    %4100 = vmatprep.subr.mxu0 0.0
    %4101 = vmatpush2.msra.mxu0 0.0
    %4102 = vmatprep.subr.mxu0 0.0
    %4103 = vmatpush2.msra.mxu0 0.0
    %4104 = vmatprep.subr.mxu0 0.0
    %4105 = vmatpush2.msra.mxu0 0.0
    %4106 = vmatprep.subr.mxu0 0.0
    %4107 = vmatpush2.msra.mxu0 0.0
    %4108 = vmatprep.subr.mxu0 0.0
    %4109 = vmatpush2.msra.mxu0 0.0
    %4110 = vmatprep.subr.mxu0 0.0
    %4111 = vmatpush2.msra.mxu0 0.0
    %4112 = vmatprep.subr.mxu0 0.0
    %4113 = vmatpush2.msra.mxu0 0.0
    %4114 = vmatprep.subr.mxu0 0.0
    %4115 = vmatpush2.msra.mxu0 0.0
    %4116 = vmatprep.subr.mxu0 0.0
    %4117 = vmatpush2.msra.mxu0 0.0
    %4118 = vmatprep.subr.mxu0 0.0
    %4119 = vmatpush2.msra.mxu0 0.0
    %4120 = vmatprep.subr.mxu0 0.0
    %4121 = vmatpush2.msra.mxu0 0.0
    %4122 = vmatprep.subr.mxu0 0.0
    %4123 = vmatpush2.msra.mxu0 0.0
    %4124 = vmatprep.subr.mxu0 0.0
    %4125 = vmatpush2.msra.mxu0 0.0
    %4126 = vmatprep.mubr.f32.mxu0 0.0
    %4127 = vmatmul.mubr.f32.gmra.mxu0 %v4057
    %v4128 = vpop.f32.mrf.mxu0
    %v4129 = vadd.f32 0.0, %v4128
    %v4130 = vpop.f32.mrf.mxu0
    %4131 = vdwg.mxu0
    %4133 = vrot.lane.b32.xlu0 %v4129, 112
    %v4134 = vpop.permute.xlu0 %4133
    %v4136 = vld [vmem:[%s53] sm:$0xff]
    %v4138 = vsel %vm1493, %v4136, 0
    %4140 = vmatprep.subr.mxu0 0.0
    %4141 = vmatpush1.msra.mxu0 0.0
    %4142 = vmatprep.subr.mxu0 0.0
    %4143 = vmatpush1.msra.mxu0 0.0
    %4144 = vmatprep.subr.mxu0 0.0
    %4145 = vmatpush1.msra.mxu0 0.0
    %4146 = vmatprep.subr.mxu0 0.0
    %4147 = vmatpush1.msra.mxu0 0.0
    %4148 = vmatprep.subr.mxu0 0.0
    %4149 = vmatpush1.msra.mxu0 0.0
    %4150 = vmatprep.subr.mxu0 0.0
    %4151 = vmatpush1.msra.mxu0 0.0
    %4152 = vmatprep.subr.mxu0 0.0
    %4153 = vmatpush1.msra.mxu0 0.0
    %4154 = vmatprep.subr.mxu0 0.0
    %4155 = vmatpush1.msra.mxu0 0.0
    %4156 = vmatprep.subr.mxu0 0.0
    %4157 = vmatpush1.msra.mxu0 0.0
    %4158 = vmatprep.subr.mxu0 0.0
    %4159 = vmatpush1.msra.mxu0 0.0
    %4160 = vmatprep.subr.mxu0 0.0
    %4161 = vmatpush1.msra.mxu0 0.0
    %4162 = vmatprep.subr.mxu0 0.0
    %4163 = vmatpush1.msra.mxu0 0.0
    %4164 = vmatprep.subr.mxu0 0.0
    %4165 = vmatpush1.msra.mxu0 0.0
    %4166 = vmatprep.subr.mxu0 0.0
    %4167 = vmatpush1.msra.mxu0 0.0
    %4168 = vmatprep.subr.mxu0 0.0
    %4169 = vmatpush1.msra.mxu0 %v4134
    %4170 = vmatprep.subr.mxu0 0.0
    %4171 = vmatpush1.msra.mxu0 %v4129
    %4172 = vmatprep.subr.mxu0 0.0
    %4173 = vmatpush2.msra.mxu0 0.0
    %4174 = vmatprep.subr.mxu0 0.0
    %4175 = vmatpush2.msra.mxu0 0.0
    %4176 = vmatprep.subr.mxu0 0.0
    %4177 = vmatpush2.msra.mxu0 0.0
    %4178 = vmatprep.subr.mxu0 0.0
    %4179 = vmatpush2.msra.mxu0 0.0
    %4180 = vmatprep.subr.mxu0 0.0
    %4181 = vmatpush2.msra.mxu0 0.0
    %4182 = vmatprep.subr.mxu0 0.0
    %4183 = vmatpush2.msra.mxu0 0.0
    %4184 = vmatprep.subr.mxu0 0.0
    %4185 = vmatpush2.msra.mxu0 0.0
    %4186 = vmatprep.subr.mxu0 0.0
    %4187 = vmatpush2.msra.mxu0 0.0
    %4188 = vmatprep.subr.mxu0 0.0
    %4189 = vmatpush2.msra.mxu0 0.0
    %4190 = vmatprep.subr.mxu0 0.0
    %4191 = vmatpush2.msra.mxu0 0.0
    %4192 = vmatprep.subr.mxu0 0.0
    %4193 = vmatpush2.msra.mxu0 0.0
    %4194 = vmatprep.subr.mxu0 0.0
    %4195 = vmatpush2.msra.mxu0 0.0
    %4196 = vmatprep.subr.mxu0 0.0
    %4197 = vmatpush2.msra.mxu0 0.0
    %4198 = vmatprep.subr.mxu0 0.0
    %4199 = vmatpush2.msra.mxu0 0.0
    %4200 = vmatprep.subr.mxu0 0.0
    %4201 = vmatpush2.msra.mxu0 0.0
    %4202 = vmatprep.subr.mxu0 0.0
    %4203 = vmatpush2.msra.mxu0 0.0
    %4204 = vmatprep.mubr.f32.mxu0 0.0
    %4205 = vmatmul.mubr.f32.gmra.mxu0 %v4138
    %v4206 = vpop.f32.mrf.mxu0
    %v4207 = vadd.f32 0.0, %v4206
    %v4208 = vpop.f32.mrf.mxu0
    %4209 = vdwg.mxu0
    %v4210 = vld [vmem:[%s55] sm:$0xff]
    %4212 = vset.pattern.permute.xlu0 0
    %4213 = vperm.xlu0 %4212, %v4210
    %v4214 = vpop.permute.xlu0 %4213
    %v4216 = vmul.f32 %v4207, %v4214
    %v4217 = vld [vmem:[%s57] sm:$0xff]
    %4219 = vset.pattern.permute.xlu0 0
    %4220 = vperm.xlu0 %4219, %v4217
    %v4221 = vpop.permute.xlu0 %4220
    %v4223 = vadd.f32 %v4216, %v4221
    %4224 = vst.msk [vmem:[%s59] sm:$0xff] %vm1493, %v4223
    // Predicated region
    $region210: #{forward.1} parent=1 // pred_check
      _
    $region211: #{forward.1} parent=1 // pred_check_branch
      %4226 = sbr.rel (0) target = $region213
    $region212: #{forward.1} parent=1 // pred_region
      _
    $region213: #{forward.1} parent=1 // pred_fallthru
      _
    // Predicated region
    $region214: #{forward.1} parent=1 // pred_check
      _
    $region215: #{forward.1} parent=1 // pred_check_branch
      %4228 = sbr.rel (0) target = $region217
    $region216: #{forward.1} parent=1 // pred_region
      _
    $region217: #{forward.1} parent=1 // pred_fallthru
      _
    %4229 = vsyncpa [#allocation3], 1
    %4230 = vsyncpa [#allocation5], 1
    %4231 = vsyncpa [#allocation8], 1
    %4232 = vsyncpa [#allocation11], 1
    %4233 = vsyncpa [#allocation14], 1
    %4234 = vsyncpa [#allocation17], 1
    %4235 = vsyncpa [#allocation20], 1
    %4236 = vsyncpa [#allocation23], 1
    %4237 = vsyncpa [#allocation26], 1
    %4238 = vsyncpa [#allocation29], 1
    %4239 = vsyncpa [#allocation32], 1
    %4240 = vsyncpa [#allocation35], 1

</llo_original>
